<compile_context>
chip_gen: v5e
topology: v5e:2x2
jax: 0.10.0
libtpu: 0.0.40
codegen_flags: <defaults>
</compile_context>

<pallas_src>
import jax
import jax.numpy as jnp
from jax.experimental import pallas as pl
from jax.experimental.pallas import tpu as pltpu


def _round_up(x, m):
    return ((x + m - 1) // m) * m


# ----------------------------------------------------------------------------
# Fused kernel: BN1 + ReLU + 1x1 conv + BN2 + ReLU + 3x3 conv (one batch elem)
#   x_ref  : (1, H*W, Cin)      f32   flattened NHWC rows of this batch element
#   w1_ref : (Cin, Cip)         bf16  1x1 conv weight (Cinter padded to Cip)
#   s1, b1 : (1, Cin)           f32   folded BN1 scale / bias
#   s2, b2 : (1, Cip)           f32   folded BN2 scale / bias (zero-padded)
#   w2_ref : (9, Cip, Cop)      bf16  3x3 conv weight, taps flattened, padded
#   ml, mr : (H*W, 1)           f32   column-wrap masks (x==0 / x==W-1 -> 0)
#   o_ref  : (1, H*W, Cop)      f32   conv2 output (Cout padded to Cop)
#   hpad   : (P0+H*W+P0, Cip)   f32   VMEM scratch: flat h with zero row-halo
# ----------------------------------------------------------------------------
def _make_bottleneck_kernel(H, W, P0):
    HW = H * W

    def kernel(x_ref, w1_ref, s1_ref, b1_ref, s2_ref, b2_ref, w2_ref,
               ml_ref, mr_ref, o_ref, hpad_ref):
        Cip = hpad_ref.shape[-1]
        Cop = o_ref.shape[-1]

        # ---- Stage 1: BN1 -> ReLU -> 1x1 conv (channel matmul) -> BN2 -> ReLU
        x = x_ref[0]                                           # (HW, Cin) f32
        xb = jnp.maximum(x * s1_ref[...] + b1_ref[...], 0.0)   # BN1 + ReLU
        y = jnp.dot(xb.astype(jnp.bfloat16), w1_ref[...],
                    preferred_element_type=jnp.float32)        # MXU, f32 acc
        h = jnp.maximum(y * s2_ref[...] + b2_ref[...], 0.0)    # BN2 + ReLU

        # ---- Stage 2: 3x3 same-padding conv as 9 shifted matmuls ------------
        # Flat scratch: zero rows above/below handle the dy (row) boundary;
        # masks handle the dx (column) wrap between adjacent rows.
        hpad_ref[0:P0, :] = jnp.zeros((P0, Cip), jnp.float32)
        hpad_ref[P0:P0 + HW, :] = h
        hpad_ref[P0 + HW:P0 + HW + P0, :] = jnp.zeros((P0, Cip), jnp.float32)

        mask_l = ml_ref[...]      # zero where output column x == 0
        mask_r = mr_ref[...]      # zero where output column x == W-1

        acc = jnp.zeros((HW, Cop), jnp.float32)
        for i in range(3):            # kernel row, dy = i - 1
            for j in range(3):        # kernel col, dx = j - 1
                s = (i - 1) * W + (j - 1)            # flat shift
                patch = hpad_ref[P0 + s:P0 + s + HW, :]   # (HW, Cip) f32
                if j == 0:
                    patch = patch * mask_l
                elif j == 2:
                    patch = patch * mask_r
                acc = acc + jnp.dot(patch.astype(jnp.bfloat16),
                                    w2_ref[3 * i + j],
                                    preferred_element_type=jnp.float32)
        o_ref[0] = acc

    return kernel


# ----------------------------------------------------------------------------
# Wrapper (PyTorch-native NCHW in / NCHW out)
# ----------------------------------------------------------------------------
def bottleneck_block(x_nchw, params):
    N, Cin, H, W = x_nchw.shape
    w1 = params["w1"]                       # (Cin, Cinter)
    w2 = params["w2"]                       # (9, Cinter, Cout)
    Cinter, Cout = w1.shape[1], w2.shape[2]
    eps = 1e-5
    HW = H * W

    # Lane-dense channel padding (multiples of 128); padded lanes stay zero.
    Cip = _round_up(Cinter, 128)
    Cop = _round_up(Cout, 128)
    # Zero row-halo size (>= W+1, multiple of 8 so the h store stays aligned).
    P0 = _round_up(W + 1, 8)

    # Fold BatchNorm (running-stats / inference semantics) into scale & bias.
    s1 = params["bn1_gamma"] / jnp.sqrt(params["bn1_var"] + eps)
    b1 = params["bn1_beta"] - params["bn1_mean"] * s1
    s2 = params["bn2_gamma"] / jnp.sqrt(params["bn2_var"] + eps)
    b2 = params["bn2_beta"] - params["bn2_mean"] * s2

    # Pad + cast the (small) weights; MXU operands are bf16.
    w1p = jnp.zeros((Cin, Cip), jnp.bfloat16).at[:, :Cinter].set(
        w1.astype(jnp.bfloat16))
    w2p = jnp.zeros((9, Cip, Cop), jnp.bfloat16).at[:, :Cinter, :Cout].set(
        w2.astype(jnp.bfloat16))
    s1r = s1.reshape(1, Cin).astype(jnp.float32)
    b1r = b1.reshape(1, Cin).astype(jnp.float32)
    s2p = jnp.zeros((1, Cip), jnp.float32).at[:, :Cinter].set(
        s2.reshape(1, Cinter))
    b2p = jnp.zeros((1, Cip), jnp.float32).at[:, :Cinter].set(
        b2.reshape(1, Cinter))

    # Column-wrap masks (built once at trace time, resident in VMEM).
    col = jnp.arange(HW, dtype=jnp.int32) % W
    mask_l = (col != 0).astype(jnp.float32).reshape(HW, 1)
    mask_r = (col != W - 1).astype(jnp.float32).reshape(HW, 1)

    # NCHW -> flattened NHWC rows.
    x_rows = jnp.transpose(x_nchw, (0, 2, 3, 1)).reshape(N, HW, Cin)

    kernel = _make_bottleneck_kernel(H, W, P0)
    out_rows = pl.pallas_call(
        kernel,
        out_shape=jax.ShapeDtypeStruct((N, HW, Cop), jnp.float32),
        grid=(N,),
        in_specs=[
            pl.BlockSpec((1, HW, Cin), lambda b: (b, 0, 0)),      # x rows
            pl.BlockSpec((Cin, Cip), lambda b: (0, 0)),           # w1 (resident)
            pl.BlockSpec((1, Cin), lambda b: (0, 0)),             # s1
            pl.BlockSpec((1, Cin), lambda b: (0, 0)),             # b1
            pl.BlockSpec((1, Cip), lambda b: (0, 0)),             # s2
            pl.BlockSpec((1, Cip), lambda b: (0, 0)),             # b2
            pl.BlockSpec((9, Cip, Cop), lambda b: (0, 0, 0)),     # w2 (resident)
            pl.BlockSpec((HW, 1), lambda b: (0, 0)),              # mask_l
            pl.BlockSpec((HW, 1), lambda b: (0, 0)),              # mask_r
        ],
        out_specs=pl.BlockSpec((1, HW, Cop), lambda b: (b, 0, 0)),
        scratch_shapes=[pltpu.VMEM((P0 + HW + P0, Cip), jnp.float32)],
        compiler_params=pltpu.CompilerParams(
            dimension_semantics=("parallel",)),
    )(x_rows, w1p, s1r, b1r, s2p, b2p, w2p, mask_l, mask_r)

    out_nhwc = out_rows.reshape(N, H, W, Cop)[..., :Cout]
    out_nchw = jnp.transpose(out_nhwc, (0, 3, 1, 2))
    return jnp.concatenate([x_nchw, out_nchw], axis=1)   # torch.cat([x, out], 1)


# ----------------------------------------------------------------------------
# Pure-JAX f32 reference (true module semantics) for a correctness check
# ----------------------------------------------------------------------------
def bottleneck_block_ref(x_nchw, params):
    eps = 1e-5
    x = jnp.transpose(x_nchw, (0, 2, 3, 1))  # NHWC
    s1 = params["bn1_gamma"] / jnp.sqrt(params["bn1_var"] + eps)
    b1 = params["bn1_beta"] - params["bn1_mean"] * s1
    s2 = params["bn2_gamma"] / jnp.sqrt(params["bn2_var"] + eps)
    b2 = params["bn2_beta"] - params["bn2_mean"] * s2
    h = jnp.maximum(x * s1 + b1, 0.0)
    h = jnp.einsum("nhwc,cf->nhwf", h, params["w1"])
    h = jnp.maximum(h * s2 + b2, 0.0)
    Cinter, Cout = params["w2"].shape[1], params["w2"].shape[2]
    w2_hwio = params["w2"].reshape(3, 3, Cinter, Cout)
    out = jax.lax.conv_general_dilated(
        h, w2_hwio, window_strides=(1, 1), padding="SAME",
        dimension_numbers=("NHWC", "HWIO", "NHWC"))
    out = jnp.transpose(out, (0, 3, 1, 2))
    return jnp.concatenate([x_nchw, out], axis=1)


def make_params(key, in_planes, out_planes):
    inter_planes = out_planes * 4
    ks = jax.random.split(key, 10)
    return {
        "bn1_gamma": jax.random.uniform(ks[0], (in_planes,), jnp.float32, 0.5, 1.5),
        "bn1_beta":  jax.random.normal(ks[1], (in_planes,), jnp.float32) * 0.1,
        "bn1_mean":  jax.random.normal(ks[2], (in_planes,), jnp.float32) * 0.1,
        "bn1_var":   jax.random.uniform(ks[3], (in_planes,), jnp.float32, 0.5, 1.5),
        "bn2_gamma": jax.random.uniform(ks[4], (inter_planes,), jnp.float32, 0.5, 1.5),
        "bn2_beta":  jax.random.normal(ks[5], (inter_planes,), jnp.float32) * 0.1,
        "bn2_mean":  jax.random.normal(ks[6], (inter_planes,), jnp.float32) * 0.1,
        "bn2_var":   jax.random.uniform(ks[7], (inter_planes,), jnp.float32, 0.5, 1.5),
        "w1": jax.random.normal(ks[8], (in_planes, inter_planes), jnp.float32) * 0.1,
        "w2": jax.random.normal(ks[9], (9, inter_planes, out_planes), jnp.float32) * 0.1,
    }


if __name__ == "__main__":
    key = jax.random.PRNGKey(0)
    k_x, k_p = jax.random.split(key)

    N, Cin, H, W = 2, 4, 16, 16          # in_planes = 4
    out_planes = 4                        # inter_planes = 16
    x = jax.random.normal(k_x, (N, Cin, H, W), jnp.float32)
    params = make_params(k_p, Cin, out_planes)

    fwd = jax.jit(bottleneck_block)
    y = jax.block_until_ready(fwd(x, params))

    y_ref = bottleneck_block_ref(x, params)
    assert y.shape == (N, Cin + out_planes, H, W)
    # bf16 MXU operands (f32 accumulation) vs. pure-f32 reference -> modest tol.
    assert jnp.allclose(y, y_ref, atol=2e-2, rtol=2e-2), float(
        jnp.max(jnp.abs(y - y_ref)))

    print("KERNEL_OK")
</pallas_src>

<mosaic_0001>
module attributes {stable_mosaic.version = 11 : i64} {
  func.func @kernel(%arg0: i32, %arg1: memref<1x256x4xf32, #tpu.memory_space<vmem>>, %arg2: memref<4x128xbf16, #tpu.memory_space<vmem>>, %arg3: memref<1x4xf32, #tpu.memory_space<vmem>>, %arg4: memref<1x4xf32, #tpu.memory_space<vmem>>, %arg5: memref<1x128xf32, #tpu.memory_space<vmem>>, %arg6: memref<1x128xf32, #tpu.memory_space<vmem>>, %arg7: memref<9x128x128xbf16, #tpu.memory_space<vmem>>, %arg8: memref<256x1xf32, #tpu.memory_space<vmem>>, %arg9: memref<256x1xf32, #tpu.memory_space<vmem>>, %arg10: memref<1x256x128xf32, #tpu.memory_space<vmem>>, %arg11: memref<304x128xf32, #tpu.memory_space<vmem>>) attributes {dimension_semantics = [#tpu.dimension_semantics<parallel>], iteration_bounds = array<i64: 2>, scalar_prefetch = 0 : i64, scratch_operands = 1 : i64, tpu.core_type = #tpu.core_type<tc>, window_params = [{transform_indices = @transform_0, window_bounds = array<i64: 1, 256, 4>}, {pipeline_mode = #tpu.pipeline_mode<synchronous>, transform_indices = @transform_1, window_bounds = array<i64: 4, 128>}, {pipeline_mode = #tpu.pipeline_mode<synchronous>, transform_indices = @transform_2, window_bounds = array<i64: 1, 4>}, {pipeline_mode = #tpu.pipeline_mode<synchronous>, transform_indices = @transform_3, window_bounds = array<i64: 1, 4>}, {pipeline_mode = #tpu.pipeline_mode<synchronous>, transform_indices = @transform_4, window_bounds = array<i64: 1, 128>}, {pipeline_mode = #tpu.pipeline_mode<synchronous>, transform_indices = @transform_5, window_bounds = array<i64: 1, 128>}, {pipeline_mode = #tpu.pipeline_mode<synchronous>, transform_indices = @transform_6, window_bounds = array<i64: 9, 128, 128>}, {pipeline_mode = #tpu.pipeline_mode<synchronous>, transform_indices = @transform_7, window_bounds = array<i64: 256, 1>}, {pipeline_mode = #tpu.pipeline_mode<synchronous>, transform_indices = @transform_8, window_bounds = array<i64: 256, 1>}, {transform_indices = @transform_9, window_bounds = array<i64: 1, 256, 128>}]} {
    %c0 = arith.constant 0 : index
    %c0_0 = arith.constant 0 : index
    %c0_1 = arith.constant 0 : index
    %0 = vector.load %arg1[%c0, %c0_0, %c0_1] : memref<1x256x4xf32, #tpu.memory_space<vmem>>, vector<1x256x4xf32>
    %1 = vector.shape_cast %0 : vector<1x256x4xf32> to vector<256x4xf32>
    %c0_2 = arith.constant 0 : index
    %c0_3 = arith.constant 0 : index
    %2 = vector.load %arg3[%c0_2, %c0_3] : memref<1x4xf32, #tpu.memory_space<vmem>>, vector<1x4xf32>
    %3 = vector.broadcast %2 : vector<1x4xf32> to vector<256x4xf32>
    %4 = arith.mulf %1, %3 : vector<256x4xf32>
    %c0_4 = arith.constant 0 : index
    %c0_5 = arith.constant 0 : index
    %5 = vector.load %arg4[%c0_4, %c0_5] : memref<1x4xf32, #tpu.memory_space<vmem>>, vector<1x4xf32>
    %6 = vector.broadcast %5 : vector<1x4xf32> to vector<256x4xf32>
    %7 = arith.addf %4, %6 : vector<256x4xf32>
    %cst = arith.constant 0.000000e+00 : f32
    %8 = vector.broadcast %cst : f32 to vector<256x4xf32>
    %9 = arith.maximumf %7, %8 : vector<256x4xf32>
    %10 = arith.truncf %9 : vector<256x4xf32> to vector<256x4xbf16>
    %c0_6 = arith.constant 0 : index
    %c0_7 = arith.constant 0 : index
    %11 = vector.load %arg2[%c0_6, %c0_7] : memref<4x128xbf16, #tpu.memory_space<vmem>>, vector<4x128xbf16>
    %cst_8 = arith.constant dense<0.000000e+00> : vector<256x128xf32>
    %12 = tpu.matmul %10, %11, %cst_8 {dimension_numbers = #tpu.dot_dimension_numbers<[1], [0], [0], [1], [0, 0, 1, 1], [], []>} : vector<256x4xbf16>, vector<4x128xbf16>, vector<256x128xf32> -> vector<256x128xf32>
    %c0_9 = arith.constant 0 : index
    %c0_10 = arith.constant 0 : index
    %13 = vector.load %arg5[%c0_9, %c0_10] : memref<1x128xf32, #tpu.memory_space<vmem>>, vector<1x128xf32>
    %14 = vector.broadcast %13 : vector<1x128xf32> to vector<256x128xf32>
    %15 = arith.mulf %12, %14 : vector<256x128xf32>
    %c0_11 = arith.constant 0 : index
    %c0_12 = arith.constant 0 : index
    %16 = vector.load %arg6[%c0_11, %c0_12] : memref<1x128xf32, #tpu.memory_space<vmem>>, vector<1x128xf32>
    %17 = vector.broadcast %16 : vector<1x128xf32> to vector<256x128xf32>
    %18 = arith.addf %15, %17 : vector<256x128xf32>
    %cst_13 = arith.constant 0.000000e+00 : f32
    %19 = vector.broadcast %cst_13 : f32 to vector<256x128xf32>
    %20 = arith.maximumf %18, %19 : vector<256x128xf32>
    %cst_14 = arith.constant 0.000000e+00 : f32
    %21 = vector.broadcast %cst_14 : f32 to vector<24x128xf32>
    %c0_15 = arith.constant 0 : index
    %c0_16 = arith.constant 0 : index
    %22 = vector.load %arg11[%c0_15, %c0_16] : memref<304x128xf32, #tpu.memory_space<vmem>>, vector<24x128xf32>
    tpu.vector_store %arg11[%c0_15, %c0_16], %21 {strides = array<i32>} : memref<304x128xf32, #tpu.memory_space<vmem>>, vector<24x128xf32>,
    %c24 = arith.constant 24 : index
    %c0_17 = arith.constant 0 : index
    %23 = vector.load %arg11[%c24, %c0_17] : memref<304x128xf32, #tpu.memory_space<vmem>>, vector<256x128xf32>
    tpu.vector_store %arg11[%c24, %c0_17], %20 {strides = array<i32>} : memref<304x128xf32, #tpu.memory_space<vmem>>, vector<256x128xf32>,
    %cst_18 = arith.constant 0.000000e+00 : f32
    %24 = vector.broadcast %cst_18 : f32 to vector<24x128xf32>
    %c280 = arith.constant 280 : index
    %c0_19 = arith.constant 0 : index
    %25 = vector.load %arg11[%c280, %c0_19] : memref<304x128xf32, #tpu.memory_space<vmem>>, vector<24x128xf32>
    tpu.vector_store %arg11[%c280, %c0_19], %24 {strides = array<i32>} : memref<304x128xf32, #tpu.memory_space<vmem>>, vector<24x128xf32>,
    %c0_20 = arith.constant 0 : index
    %c0_21 = arith.constant 0 : index
    %26 = vector.load %arg8[%c0_20, %c0_21] : memref<256x1xf32, #tpu.memory_space<vmem>>, vector<256x1xf32>
    %c0_22 = arith.constant 0 : index
    %c0_23 = arith.constant 0 : index
    %27 = vector.load %arg9[%c0_22, %c0_23] : memref<256x1xf32, #tpu.memory_space<vmem>>, vector<256x1xf32>
    %cst_24 = arith.constant 0.000000e+00 : f32
    %28 = vector.broadcast %cst_24 : f32 to vector<256x128xf32>
    %c7 = arith.constant 7 : index
    %c0_25 = arith.constant 0 : index
    %29 = vector.load %arg11[%c7, %c0_25] : memref<304x128xf32, #tpu.memory_space<vmem>>, vector<256x128xf32>
    %30 = vector.broadcast %26 : vector<256x1xf32> to vector<256x128xf32>
    %31 = arith.mulf %29, %30 : vector<256x128xf32>
    %32 = arith.truncf %31 : vector<256x128xf32> to vector<256x128xbf16>
    %c0_26 = arith.constant 0 : index
    %c0_27 = arith.constant 0 : index
    %c0_28 = arith.constant 0 : index
    %33 = vector.load %arg7[%c0_26, %c0_27, %c0_28] : memref<9x128x128xbf16, #tpu.memory_space<vmem>>, vector<1x128x128xbf16>
    %34 = vector.shape_cast %33 : vector<1x128x128xbf16> to vector<128x128xbf16>
    %cst_29 = arith.constant dense<0.000000e+00> : vector<256x128xf32>
    %35 = tpu.matmul %32, %34, %cst_29 {dimension_numbers = #tpu.dot_dimension_numbers<[1], [0], [0], [1], [0, 0, 1, 1], [], []>} : vector<256x128xbf16>, vector<128x128xbf16>, vector<256x128xf32> -> vector<256x128xf32>
    %36 = arith.addf %28, %35 : vector<256x128xf32>
    %c8 = arith.constant 8 : index
    %c0_30 = arith.constant 0 : index
    %37 = vector.load %arg11[%c8, %c0_30] : memref<304x128xf32, #tpu.memory_space<vmem>>, vector<256x128xf32>
    %38 = arith.truncf %37 : vector<256x128xf32> to vector<256x128xbf16>
    %c1 = arith.constant 1 : index
    %c0_31 = arith.constant 0 : index
    %c0_32 = arith.constant 0 : index
    %39 = vector.load %arg7[%c1, %c0_31, %c0_32] : memref<9x128x128xbf16, #tpu.memory_space<vmem>>, vector<1x128x128xbf16>
    %40 = vector.shape_cast %39 : vector<1x128x128xbf16> to vector<128x128xbf16>
    %cst_33 = arith.constant dense<0.000000e+00> : vector<256x128xf32>
    %41 = tpu.matmul %38, %40, %cst_33 {dimension_numbers = #tpu.dot_dimension_numbers<[1], [0], [0], [1], [0, 0, 1, 1], [], []>} : vector<256x128xbf16>, vector<128x128xbf16>, vector<256x128xf32> -> vector<256x128xf32>
    %42 = arith.addf %36, %41 : vector<256x128xf32>
    %c9 = arith.constant 9 : index
    %c0_34 = arith.constant 0 : index
    %43 = vector.load %arg11[%c9, %c0_34] : memref<304x128xf32, #tpu.memory_space<vmem>>, vector<256x128xf32>
    %44 = vector.broadcast %27 : vector<256x1xf32> to vector<256x128xf32>
    %45 = arith.mulf %43, %44 : vector<256x128xf32>
    %46 = arith.truncf %45 : vector<256x128xf32> to vector<256x128xbf16>
    %c2 = arith.constant 2 : index
    %c0_35 = arith.constant 0 : index
    %c0_36 = arith.constant 0 : index
    %47 = vector.load %arg7[%c2, %c0_35, %c0_36] : memref<9x128x128xbf16, #tpu.memory_space<vmem>>, vector<1x128x128xbf16>
    %48 = vector.shape_cast %47 : vector<1x128x128xbf16> to vector<128x128xbf16>
    %cst_37 = arith.constant dense<0.000000e+00> : vector<256x128xf32>
    %49 = tpu.matmul %46, %48, %cst_37 {dimension_numbers = #tpu.dot_dimension_numbers<[1], [0], [0], [1], [0, 0, 1, 1], [], []>} : vector<256x128xbf16>, vector<128x128xbf16>, vector<256x128xf32> -> vector<256x128xf32>
    %50 = arith.addf %42, %49 : vector<256x128xf32>
    %c23 = arith.constant 23 : index
    %c0_38 = arith.constant 0 : index
    %51 = vector.load %arg11[%c23, %c0_38] : memref<304x128xf32, #tpu.memory_space<vmem>>, vector<256x128xf32>
    %52 = vector.broadcast %26 : vector<256x1xf32> to vector<256x128xf32>
    %53 = arith.mulf %51, %52 : vector<256x128xf32>
    %54 = arith.truncf %53 : vector<256x128xf32> to vector<256x128xbf16>
    %c3 = arith.constant 3 : index
    %c0_39 = arith.constant 0 : index
    %c0_40 = arith.constant 0 : index
    %55 = vector.load %arg7[%c3, %c0_39, %c0_40] : memref<9x128x128xbf16, #tpu.memory_space<vmem>>, vector<1x128x128xbf16>
    %56 = vector.shape_cast %55 : vector<1x128x128xbf16> to vector<128x128xbf16>
    %cst_41 = arith.constant dense<0.000000e+00> : vector<256x128xf32>
    %57 = tpu.matmul %54, %56, %cst_41 {dimension_numbers = #tpu.dot_dimension_numbers<[1], [0], [0], [1], [0, 0, 1, 1], [], []>} : vector<256x128xbf16>, vector<128x128xbf16>, vector<256x128xf32> -> vector<256x128xf32>
    %58 = arith.addf %50, %57 : vector<256x128xf32>
    %c24_42 = arith.constant 24 : index
    %c0_43 = arith.constant 0 : index
    %59 = vector.load %arg11[%c24_42, %c0_43] : memref<304x128xf32, #tpu.memory_space<vmem>>, vector<256x128xf32>
    %60 = arith.truncf %59 : vector<256x128xf32> to vector<256x128xbf16>
    %c4 = arith.constant 4 : index
    %c0_44 = arith.constant 0 : index
    %c0_45 = arith.constant 0 : index
    %61 = vector.load %arg7[%c4, %c0_44, %c0_45] : memref<9x128x128xbf16, #tpu.memory_space<vmem>>, vector<1x128x128xbf16>
    %62 = vector.shape_cast %61 : vector<1x128x128xbf16> to vector<128x128xbf16>
    %cst_46 = arith.constant dense<0.000000e+00> : vector<256x128xf32>
    %63 = tpu.matmul %60, %62, %cst_46 {dimension_numbers = #tpu.dot_dimension_numbers<[1], [0], [0], [1], [0, 0, 1, 1], [], []>} : vector<256x128xbf16>, vector<128x128xbf16>, vector<256x128xf32> -> vector<256x128xf32>
    %64 = arith.addf %58, %63 : vector<256x128xf32>
    %c25 = arith.constant 25 : index
    %c0_47 = arith.constant 0 : index
    %65 = vector.load %arg11[%c25, %c0_47] : memref<304x128xf32, #tpu.memory_space<vmem>>, vector<256x128xf32>
    %66 = vector.broadcast %27 : vector<256x1xf32> to vector<256x128xf32>
    %67 = arith.mulf %65, %66 : vector<256x128xf32>
    %68 = arith.truncf %67 : vector<256x128xf32> to vector<256x128xbf16>
    %c5 = arith.constant 5 : index
    %c0_48 = arith.constant 0 : index
    %c0_49 = arith.constant 0 : index
    %69 = vector.load %arg7[%c5, %c0_48, %c0_49] : memref<9x128x128xbf16, #tpu.memory_space<vmem>>, vector<1x128x128xbf16>
    %70 = vector.shape_cast %69 : vector<1x128x128xbf16> to vector<128x128xbf16>
    %cst_50 = arith.constant dense<0.000000e+00> : vector<256x128xf32>
    %71 = tpu.matmul %68, %70, %cst_50 {dimension_numbers = #tpu.dot_dimension_numbers<[1], [0], [0], [1], [0, 0, 1, 1], [], []>} : vector<256x128xbf16>, vector<128x128xbf16>, vector<256x128xf32> -> vector<256x128xf32>
    %72 = arith.addf %64, %71 : vector<256x128xf32>
    %c39 = arith.constant 39 : index
    %c0_51 = arith.constant 0 : index
    %73 = vector.load %arg11[%c39, %c0_51] : memref<304x128xf32, #tpu.memory_space<vmem>>, vector<256x128xf32>
    %74 = vector.broadcast %26 : vector<256x1xf32> to vector<256x128xf32>
    %75 = arith.mulf %73, %74 : vector<256x128xf32>
    %76 = arith.truncf %75 : vector<256x128xf32> to vector<256x128xbf16>
    %c6 = arith.constant 6 : index
    %c0_52 = arith.constant 0 : index
    %c0_53 = arith.constant 0 : index
    %77 = vector.load %arg7[%c6, %c0_52, %c0_53] : memref<9x128x128xbf16, #tpu.memory_space<vmem>>, vector<1x128x128xbf16>
    %78 = vector.shape_cast %77 : vector<1x128x128xbf16> to vector<128x128xbf16>
    %cst_54 = arith.constant dense<0.000000e+00> : vector<256x128xf32>
    %79 = tpu.matmul %76, %78, %cst_54 {dimension_numbers = #tpu.dot_dimension_numbers<[1], [0], [0], [1], [0, 0, 1, 1], [], []>} : vector<256x128xbf16>, vector<128x128xbf16>, vector<256x128xf32> -> vector<256x128xf32>
    %80 = arith.addf %72, %79 : vector<256x128xf32>
    %c40 = arith.constant 40 : index
    %c0_55 = arith.constant 0 : index
    %81 = vector.load %arg11[%c40, %c0_55] : memref<304x128xf32, #tpu.memory_space<vmem>>, vector<256x128xf32>
    %82 = arith.truncf %81 : vector<256x128xf32> to vector<256x128xbf16>
    %c7_56 = arith.constant 7 : index
    %c0_57 = arith.constant 0 : index
    %c0_58 = arith.constant 0 : index
    %83 = vector.load %arg7[%c7_56, %c0_57, %c0_58] : memref<9x128x128xbf16, #tpu.memory_space<vmem>>, vector<1x128x128xbf16>
    %84 = vector.shape_cast %83 : vector<1x128x128xbf16> to vector<128x128xbf16>
    %cst_59 = arith.constant dense<0.000000e+00> : vector<256x128xf32>
    %85 = tpu.matmul %82, %84, %cst_59 {dimension_numbers = #tpu.dot_dimension_numbers<[1], [0], [0], [1], [0, 0, 1, 1], [], []>} : vector<256x128xbf16>, vector<128x128xbf16>, vector<256x128xf32> -> vector<256x128xf32>
    %86 = arith.addf %80, %85 : vector<256x128xf32>
    %c41 = arith.constant 41 : index
    %c0_60 = arith.constant 0 : index
    %87 = vector.load %arg11[%c41, %c0_60] : memref<304x128xf32, #tpu.memory_space<vmem>>, vector<256x128xf32>
    %88 = vector.broadcast %27 : vector<256x1xf32> to vector<256x128xf32>
    %89 = arith.mulf %87, %88 : vector<256x128xf32>
    %90 = arith.truncf %89 : vector<256x128xf32> to vector<256x128xbf16>
    %c8_61 = arith.constant 8 : index
    %c0_62 = arith.constant 0 : index
    %c0_63 = arith.constant 0 : index
    %91 = vector.load %arg7[%c8_61, %c0_62, %c0_63] : memref<9x128x128xbf16, #tpu.memory_space<vmem>>, vector<1x128x128xbf16>
    %92 = vector.shape_cast %91 : vector<1x128x128xbf16> to vector<128x128xbf16>
    %cst_64 = arith.constant dense<0.000000e+00> : vector<256x128xf32>
    %93 = tpu.matmul %90, %92, %cst_64 {dimension_numbers = #tpu.dot_dimension_numbers<[1], [0], [0], [1], [0, 0, 1, 1], [], []>} : vector<256x128xbf16>, vector<128x128xbf16>, vector<256x128xf32> -> vector<256x128xf32>
    %94 = arith.addf %86, %93 : vector<256x128xf32>
    %c0_65 = arith.constant 0 : index
    %c0_66 = arith.constant 0 : index
    %c0_67 = arith.constant 0 : index
    %95 = vector.load %arg10[%c0_65, %c0_66, %c0_67] : memref<1x256x128xf32, #tpu.memory_space<vmem>>, vector<1x256x128xf32>
    %96 = vector.shape_cast %95 : vector<1x256x128xf32> to vector<256x128xf32>
    %97 = vector.shape_cast %94 : vector<256x128xf32> to vector<1x256x128xf32>
    tpu.vector_store %arg10[%c0_65, %c0_66, %c0_67], %97 {strides = array<i32>} : memref<1x256x128xf32, #tpu.memory_space<vmem>>, vector<1x256x128xf32>,
    return
  }
  func.func @transform_0(%arg0: i32) -> (i32, i32, i32) {
    %c0_i32 = arith.constant 0 : i32
    %c0_i32_0 = arith.constant 0 : i32
    %c0_i32_1 = arith.constant 0 : i32
    return %arg0, %c0_i32, %c0_i32_0 : i32, i32, i32
  }
  func.func @transform_1(%arg0: i32) -> (i32, i32) {
    %c0_i32 = arith.constant 0 : i32
    %c0_i32_0 = arith.constant 0 : i32
    %c0_i32_1 = arith.constant 0 : i32
    return %c0_i32, %c0_i32_0 : i32, i32
  }
  func.func @transform_2(%arg0: i32) -> (i32, i32) {
    %c0_i32 = arith.constant 0 : i32
    %c0_i32_0 = arith.constant 0 : i32
    %c0_i32_1 = arith.constant 0 : i32
    return %c0_i32, %c0_i32_0 : i32, i32
  }
  func.func @transform_3(%arg0: i32) -> (i32, i32) {
    %c0_i32 = arith.constant 0 : i32
    %c0_i32_0 = arith.constant 0 : i32
    %c0_i32_1 = arith.constant 0 : i32
    return %c0_i32, %c0_i32_0 : i32, i32
  }
  func.func @transform_4(%arg0: i32) -> (i32, i32) {
    %c0_i32 = arith.constant 0 : i32
    %c0_i32_0 = arith.constant 0 : i32
    %c0_i32_1 = arith.constant 0 : i32
    return %c0_i32, %c0_i32_0 : i32, i32
  }
  func.func @transform_5(%arg0: i32) -> (i32, i32) {
    %c0_i32 = arith.constant 0 : i32
    %c0_i32_0 = arith.constant 0 : i32
    %c0_i32_1 = arith.constant 0 : i32
    return %c0_i32, %c0_i32_0 : i32, i32
  }
  func.func @transform_6(%arg0: i32) -> (i32, i32, i32) {
    %c0_i32 = arith.constant 0 : i32
    %c0_i32_0 = arith.constant 0 : i32
    %c0_i32_1 = arith.constant 0 : i32
    %c0_i32_2 = arith.constant 0 : i32
    return %c0_i32, %c0_i32_0, %c0_i32_1 : i32, i32, i32
  }
  func.func @transform_7(%arg0: i32) -> (i32, i32) {
    %c0_i32 = arith.constant 0 : i32
    %c0_i32_0 = arith.constant 0 : i32
    %c0_i32_1 = arith.constant 0 : i32
    return %c0_i32, %c0_i32_0 : i32, i32
  }
  func.func @transform_8(%arg0: i32) -> (i32, i32) {
    %c0_i32 = arith.constant 0 : i32
    %c0_i32_0 = arith.constant 0 : i32
    %c0_i32_1 = arith.constant 0 : i32
    return %c0_i32, %c0_i32_0 : i32, i32
  }
  func.func @transform_9(%arg0: i32) -> (i32, i32, i32) {
    %c0_i32 = arith.constant 0 : i32
    %c0_i32_0 = arith.constant 0 : i32
    %c0_i32_1 = arith.constant 0 : i32
    return %arg0, %c0_i32, %c0_i32_0 : i32, i32, i32
  }
}

</mosaic_0001>

<llo_original>
// kernel: bottleneck_block.1
$region0: #{bottleneck_block.1}
  #allocation0 [shape = 'u32[]', space=smem, size = 0x4, offset = 0x4, fixed_abs, tag = 'smem constant byte address 0x4 - core index']
  #allocation1 [shape = 'u32[72,128]{1,0:T(1,128)}', space=vmem, size = 0x9000, scoped, tag = 'internal scratch']
  #allocation2 [shape = 'f32[304,128]{1,0:T(8,128)}', space=vmem, size = 0x26000, scoped, tag = 'scratch operand']
  %s0 = inlined_call_operand.vmem [shape: f32[2,256,4], index: 0, kind: input, shape index: {}]
  %s1 = inlined_call_operand.vmem [shape: bf16[4,128], index: 1, kind: input, shape index: {}]
  %s2 = inlined_call_operand.vmem [shape: f32[1,4], index: 2, kind: input, shape index: {}]
  %s3 = inlined_call_operand.vmem [shape: f32[1,4], index: 3, kind: input, shape index: {}]
  %s4 = inlined_call_operand.vmem [shape: f32[1,128], index: 4, kind: input, shape index: {}]
  %s5 = inlined_call_operand.vmem [shape: f32[1,128], index: 5, kind: input, shape index: {}]
  %s6 = inlined_call_operand.vmem [shape: bf16[9,128,128], index: 6, kind: input, shape index: {}]
  %s7 = inlined_call_operand.vmem [shape: f32[256,1], index: 7, kind: input, shape index: {}]
  %s8 = inlined_call_operand.vmem [shape: f32[256,1], index: 8, kind: input, shape index: {}]
  %s9 = inlined_call_operand.vmem [shape: f32[2,256,128], index: 9, kind: output, shape index: {}]
  %s10 = sld [smem:[#allocation0]]
  $region69: #{bottleneck_block.1} parent=0
    _
  %s12 = ssub.s32 1, %s10
  %s13 = scalar_select 0, %s12, %s10
  loop: start=0, step=1, limit=4
  $region2: #{bottleneck_block.1} parent=0 // loop_pre_header
    _
  $region3: #{bottleneck_block.1} parent=0 // loop_header
    %s15 = sphi 0, %s19
    %p16 = scmp.ge.s32.totalorder %s15, 4
    %s25 = sphi 0, %s27
    %s28 = sphi 0, %s25
    %s29 = sphi 0, %s28
    %s45 = sphi 0, %s29
    %s49 = sphi 0, %s49
    %s51 = sphi 0, %s49
    %s52 = sphi 0, %s51
    %s66 = sphi 0, %s52
    %s70 = sphi 0, %s70
    %s72 = sphi 0, %s70
    %s73 = sphi 0, %s72
    %s87 = sphi 0, %s73
    %s91 = sphi 0, %s91
    %s93 = sphi 0, %s91
    %s94 = sphi 0, %s93
    %s108 = sphi 0, %s94
    %s112 = sphi 0, %s112
    %s114 = sphi 0, %s112
    %s115 = sphi 0, %s114
    %s129 = sphi 0, %s115
    %s133 = sphi 0, %s133
    %s135 = sphi 0, %s133
    %s136 = sphi 0, %s135
    %s150 = sphi 0, %s136
    %s154 = sphi 0, %s154
    %s156 = sphi 0, %s154
    %s157 = sphi 0, %s156
    %s171 = sphi 0, %s157
    %s175 = sphi 0, %s175
    %s177 = sphi 0, %s175
    %s178 = sphi 0, %s177
    %s192 = sphi 0, %s178
    %s196 = sphi 0, %s196
    %s198 = sphi 0, %s196
    %s199 = sphi 0, %s198
    %s213 = sphi 0, %s199
    %s219 = sphi 0, %s221
    %s222 = sphi 0, %s219
    %s223 = sphi 0, %s222
    %s239 = sphi 0, %s223
  $region4: #{bottleneck_block.1} parent=0 // loop_header_branch
    %18 = sbr.rel (%p16) target = $region8
  $region5: #{bottleneck_block.1} parent=0 // loop_body
    %s20 = ssub.s32 %s15, 1
    %s21 = ssub.s32 %s15, 2
    %s22 = sadd.s32 %s15, 1
    %s23 = ssub.s32 %s15, %s22
    %p24 = scmp.eq.s32.totalorder %s23, 0
    %s26 = sadd.s32 %s25, 1
    %s27 = scalar_select %p24, %s25, %s26
    %p30 = pneg %p24
    %p31 = scmp.eq.s32.totalorder %s15, 1
    %p32 = por %p30, %p31
    %p33 = scmp.ne.s32.totalorder %s25, %s28
    %p34 = scmp.eq.s32.totalorder %s15, 0
    %p35 = por %p33, %p34
    %p36 = scmp.ne.s32.totalorder %s25, %s28
    %p37 = scmp.eq.s32.totalorder %s20, 1
    %p38 = por %p36, %p37
    %p39 = scmp.ne.s32.totalorder %s28, %s29
    %p40 = scmp.eq.s32.totalorder %s20, 0
    %p41 = por %p39, %p40
    %p42 = scmp.ne.s32.totalorder %s28, %s29
    %p43 = scmp.eq.s32.totalorder %s21, 1
    %p44 = por %p42, %p43
    %p46 = scmp.ne.s32.totalorder %s29, %s45
    %p47 = scmp.eq.s32.totalorder %s21, 0
    %p48 = por %p46, %p47
    %s50 = sadd.s32 %s49, 1
    %p53 = scmp.eq.s32.totalorder %s15, 1
    %p54 = scmp.ne.s32.totalorder %s49, %s51
    %p55 = scmp.eq.s32.totalorder %s15, 0
    %p56 = por %p54, %p55
    %p57 = scmp.ne.s32.totalorder %s49, %s51
    %p58 = scmp.eq.s32.totalorder %s20, 1
    %p59 = por %p57, %p58
    %p60 = scmp.ne.s32.totalorder %s51, %s52
    %p61 = scmp.eq.s32.totalorder %s20, 0
    %p62 = por %p60, %p61
    %p63 = scmp.ne.s32.totalorder %s51, %s52
    %p64 = scmp.eq.s32.totalorder %s21, 1
    %p65 = por %p63, %p64
    %p67 = scmp.ne.s32.totalorder %s52, %s66
    %p68 = scmp.eq.s32.totalorder %s21, 0
    %p69 = por %p67, %p68
    %s71 = sadd.s32 %s70, 1
    %p74 = scmp.eq.s32.totalorder %s15, 1
    %p75 = scmp.ne.s32.totalorder %s70, %s72
    %p76 = scmp.eq.s32.totalorder %s15, 0
    %p77 = por %p75, %p76
    %p78 = scmp.ne.s32.totalorder %s70, %s72
    %p79 = scmp.eq.s32.totalorder %s20, 1
    %p80 = por %p78, %p79
    %p81 = scmp.ne.s32.totalorder %s72, %s73
    %p82 = scmp.eq.s32.totalorder %s20, 0
    %p83 = por %p81, %p82
    %p84 = scmp.ne.s32.totalorder %s72, %s73
    %p85 = scmp.eq.s32.totalorder %s21, 1
    %p86 = por %p84, %p85
    %p88 = scmp.ne.s32.totalorder %s73, %s87
    %p89 = scmp.eq.s32.totalorder %s21, 0
    %p90 = por %p88, %p89
    %s92 = sadd.s32 %s91, 1
    %p95 = scmp.eq.s32.totalorder %s15, 1
    %p96 = scmp.ne.s32.totalorder %s91, %s93
    %p97 = scmp.eq.s32.totalorder %s15, 0
    %p98 = por %p96, %p97
    %p99 = scmp.ne.s32.totalorder %s91, %s93
    %p100 = scmp.eq.s32.totalorder %s20, 1
    %p101 = por %p99, %p100
    %p102 = scmp.ne.s32.totalorder %s93, %s94
    %p103 = scmp.eq.s32.totalorder %s20, 0
    %p104 = por %p102, %p103
    %p105 = scmp.ne.s32.totalorder %s93, %s94
    %p106 = scmp.eq.s32.totalorder %s21, 1
    %p107 = por %p105, %p106
    %p109 = scmp.ne.s32.totalorder %s94, %s108
    %p110 = scmp.eq.s32.totalorder %s21, 0
    %p111 = por %p109, %p110
    %s113 = sadd.s32 %s112, 1
    %p116 = scmp.eq.s32.totalorder %s15, 1
    %p117 = scmp.ne.s32.totalorder %s112, %s114
    %p118 = scmp.eq.s32.totalorder %s15, 0
    %p119 = por %p117, %p118
    %p120 = scmp.ne.s32.totalorder %s112, %s114
    %p121 = scmp.eq.s32.totalorder %s20, 1
    %p122 = por %p120, %p121
    %p123 = scmp.ne.s32.totalorder %s114, %s115
    %p124 = scmp.eq.s32.totalorder %s20, 0
    %p125 = por %p123, %p124
    %p126 = scmp.ne.s32.totalorder %s114, %s115
    %p127 = scmp.eq.s32.totalorder %s21, 1
    %p128 = por %p126, %p127
    %p130 = scmp.ne.s32.totalorder %s115, %s129
    %p131 = scmp.eq.s32.totalorder %s21, 0
    %p132 = por %p130, %p131
    %s134 = sadd.s32 %s133, 1
    %p137 = scmp.eq.s32.totalorder %s15, 1
    %p138 = scmp.ne.s32.totalorder %s133, %s135
    %p139 = scmp.eq.s32.totalorder %s15, 0
    %p140 = por %p138, %p139
    %p141 = scmp.ne.s32.totalorder %s133, %s135
    %p142 = scmp.eq.s32.totalorder %s20, 1
    %p143 = por %p141, %p142
    %p144 = scmp.ne.s32.totalorder %s135, %s136
    %p145 = scmp.eq.s32.totalorder %s20, 0
    %p146 = por %p144, %p145
    %p147 = scmp.ne.s32.totalorder %s135, %s136
    %p148 = scmp.eq.s32.totalorder %s21, 1
    %p149 = por %p147, %p148
    %p151 = scmp.ne.s32.totalorder %s136, %s150
    %p152 = scmp.eq.s32.totalorder %s21, 0
    %p153 = por %p151, %p152
    %s155 = sadd.s32 %s154, 1
    %p158 = scmp.eq.s32.totalorder %s15, 1
    %p159 = scmp.ne.s32.totalorder %s154, %s156
    %p160 = scmp.eq.s32.totalorder %s15, 0
    %p161 = por %p159, %p160
    %p162 = scmp.ne.s32.totalorder %s154, %s156
    %p163 = scmp.eq.s32.totalorder %s20, 1
    %p164 = por %p162, %p163
    %p165 = scmp.ne.s32.totalorder %s156, %s157
    %p166 = scmp.eq.s32.totalorder %s20, 0
    %p167 = por %p165, %p166
    %p168 = scmp.ne.s32.totalorder %s156, %s157
    %p169 = scmp.eq.s32.totalorder %s21, 1
    %p170 = por %p168, %p169
    %p172 = scmp.ne.s32.totalorder %s157, %s171
    %p173 = scmp.eq.s32.totalorder %s21, 0
    %p174 = por %p172, %p173
    %s176 = sadd.s32 %s175, 1
    %p179 = scmp.eq.s32.totalorder %s15, 1
    %p180 = scmp.ne.s32.totalorder %s175, %s177
    %p181 = scmp.eq.s32.totalorder %s15, 0
    %p182 = por %p180, %p181
    %p183 = scmp.ne.s32.totalorder %s175, %s177
    %p184 = scmp.eq.s32.totalorder %s20, 1
    %p185 = por %p183, %p184
    %p186 = scmp.ne.s32.totalorder %s177, %s178
    %p187 = scmp.eq.s32.totalorder %s20, 0
    %p188 = por %p186, %p187
    %p189 = scmp.ne.s32.totalorder %s177, %s178
    %p190 = scmp.eq.s32.totalorder %s21, 1
    %p191 = por %p189, %p190
    %p193 = scmp.ne.s32.totalorder %s178, %s192
    %p194 = scmp.eq.s32.totalorder %s21, 0
    %p195 = por %p193, %p194
    %s197 = sadd.s32 %s196, 1
    %p200 = scmp.eq.s32.totalorder %s15, 1
    %p201 = scmp.ne.s32.totalorder %s196, %s198
    %p202 = scmp.eq.s32.totalorder %s15, 0
    %p203 = por %p201, %p202
    %p204 = scmp.ne.s32.totalorder %s196, %s198
    %p205 = scmp.eq.s32.totalorder %s20, 1
    %p206 = por %p204, %p205
    %p207 = scmp.ne.s32.totalorder %s198, %s199
    %p208 = scmp.eq.s32.totalorder %s20, 0
    %p209 = por %p207, %p208
    %p210 = scmp.ne.s32.totalorder %s198, %s199
    %p211 = scmp.eq.s32.totalorder %s21, 1
    %p212 = por %p210, %p211
    %p214 = scmp.ne.s32.totalorder %s199, %s213
    %p215 = scmp.eq.s32.totalorder %s21, 0
    %p216 = por %p214, %p215
    %s217 = ssub.s32 %s15, %s22
    %p218 = scmp.eq.s32.totalorder %s217, 0
    %s220 = sadd.s32 %s219, 1
    %s221 = scalar_select %p218, %s219, %s220
    %p224 = pneg %p218
    %p225 = scmp.eq.s32.totalorder %s15, 1
    %p226 = por %p224, %p225
    %p227 = scmp.ne.s32.totalorder %s219, %s222
    %p228 = scmp.eq.s32.totalorder %s15, 0
    %p229 = por %p227, %p228
    %p230 = scmp.ne.s32.totalorder %s219, %s222
    %p231 = scmp.eq.s32.totalorder %s20, 1
    %p232 = por %p230, %p231
    %p233 = scmp.ne.s32.totalorder %s222, %s223
    %p234 = scmp.eq.s32.totalorder %s20, 0
    %p235 = por %p233, %p234
    %p236 = scmp.ne.s32.totalorder %s222, %s223
    %p237 = scmp.eq.s32.totalorder %s21, 1
    %p238 = por %p236, %p237
    %p240 = scmp.ne.s32.totalorder %s223, %s239
    %p241 = scmp.eq.s32.totalorder %s21, 0
    %p242 = por %p240, %p241
    %p243 = scmp.le.s32.totalorder 1, %s15
    %p244 = scmp.lt.s32.totalorder %s15, 3
    %p245 = pnand %p243, %p244
    %p246 = pneg %p245
    // Predicated region
    $region9: #{bottleneck_block.1} parent=5 // pred_check
      _
    $region10: #{bottleneck_block.1} parent=5 // pred_check_branch
      %248 = sbr.rel (%p245) target = $region12
    $region11: #{bottleneck_block.1} parent=5 // pred_region
      %s249 = ssub.s32 %s15, 1
      // Predicated region
      $region13: #{bottleneck_block.1} parent=11 // pred_check
        %p250 = pneg %p62
      $region14: #{bottleneck_block.1} parent=11 // pred_check_branch
        %252 = sbr.rel (%p250) target = $region16
      $region15: #{bottleneck_block.1} parent=11 // pred_region
        _
      $region16: #{bottleneck_block.1} parent=11 // pred_fallthru
        _
      // Predicated region
      $region17: #{bottleneck_block.1} parent=11 // pred_check
        %p253 = pneg %p83
      $region18: #{bottleneck_block.1} parent=11 // pred_check_branch
        %255 = sbr.rel (%p253) target = $region20
      $region19: #{bottleneck_block.1} parent=11 // pred_region
        _
      $region20: #{bottleneck_block.1} parent=11 // pred_fallthru
        _
      // Predicated region
      $region21: #{bottleneck_block.1} parent=11 // pred_check
        %p256 = pneg %p104
      $region22: #{bottleneck_block.1} parent=11 // pred_check_branch
        %258 = sbr.rel (%p256) target = $region24
      $region23: #{bottleneck_block.1} parent=11 // pred_region
        _
      $region24: #{bottleneck_block.1} parent=11 // pred_fallthru
        _
      // Predicated region
      $region25: #{bottleneck_block.1} parent=11 // pred_check
        %p259 = pneg %p125
      $region26: #{bottleneck_block.1} parent=11 // pred_check_branch
        %261 = sbr.rel (%p259) target = $region28
      $region27: #{bottleneck_block.1} parent=11 // pred_region
        _
      $region28: #{bottleneck_block.1} parent=11 // pred_fallthru
        _
      // Predicated region
      $region29: #{bottleneck_block.1} parent=11 // pred_check
        %p262 = pneg %p146
      $region30: #{bottleneck_block.1} parent=11 // pred_check_branch
        %264 = sbr.rel (%p262) target = $region32
      $region31: #{bottleneck_block.1} parent=11 // pred_region
        _
      $region32: #{bottleneck_block.1} parent=11 // pred_fallthru
        _
      // Predicated region
      $region33: #{bottleneck_block.1} parent=11 // pred_check
        %p265 = pneg %p167
      $region34: #{bottleneck_block.1} parent=11 // pred_check_branch
        %267 = sbr.rel (%p265) target = $region36
      $region35: #{bottleneck_block.1} parent=11 // pred_region
        _
      $region36: #{bottleneck_block.1} parent=11 // pred_fallthru
        _
      // Predicated region
      $region37: #{bottleneck_block.1} parent=11 // pred_check
        %p268 = pneg %p188
      $region38: #{bottleneck_block.1} parent=11 // pred_check_branch
        %270 = sbr.rel (%p268) target = $region40
      $region39: #{bottleneck_block.1} parent=11 // pred_region
        _
      $region40: #{bottleneck_block.1} parent=11 // pred_fallthru
        _
      // Predicated region
      $region41: #{bottleneck_block.1} parent=11 // pred_check
        %p271 = pneg %p209
      $region42: #{bottleneck_block.1} parent=11 // pred_check_branch
        %273 = sbr.rel (%p271) target = $region44
      $region43: #{bottleneck_block.1} parent=11 // pred_region
        _
      $region44: #{bottleneck_block.1} parent=11 // pred_fallthru
        _
    $region12: #{bottleneck_block.1} parent=5 // pred_fallthru
      _
    %p274 = scmp.lt.s32.totalorder %s15, 2
    // Predicated region
    $region45: #{bottleneck_block.1} parent=5 // pred_check
      %p275 = pneg %p274
    $region46: #{bottleneck_block.1} parent=5 // pred_check_branch
      %277 = sbr.rel (%p275) target = $region48
    $region47: #{bottleneck_block.1} parent=5 // pred_region
      // Predicated region
      $region49: #{bottleneck_block.1} parent=47 // pred_check
        %p278 = pneg %p35
      $region50: #{bottleneck_block.1} parent=47 // pred_check_branch
        %280 = sbr.rel (%p278) target = $region52
      $region51: #{bottleneck_block.1} parent=47 // pred_region
        %p281 = scmp.lt.s32.totalorder %s15, 1
        %s282 = scalar_select %p281, %s15, 1
        %s283 = smul.addr %s282, 32
        %s284 = smul.addr %s283, 8
        %s285 = scalar_lea.vmem %s0, %s284
      $region52: #{bottleneck_block.1} parent=47 // pred_fallthru
        _
    $region48: #{bottleneck_block.1} parent=5 // pred_fallthru
      _
    %p286 = scmp.le.s32.totalorder 1, %s15
    %p287 = scmp.lt.s32.totalorder %s15, 3
    %p288 = pnand %p286, %p287
    %p289 = pneg %p288
    // Predicated region
    $region53: #{bottleneck_block.1} parent=5 // pred_check
      _
    $region54: #{bottleneck_block.1} parent=5 // pred_check_branch
      %291 = sbr.rel (%p288) target = $region56
    $region55: #{bottleneck_block.1} parent=5 // pred_region
      %s292 = ssub.s32 %s15, 1
      %p293 = scmp.lt.s32.totalorder %s20, 1
      %s294 = scalar_select %p293, %s20, 1
      %s295 = smul.addr %s294, 32
      %s296 = smul.addr %s295, 8
      %s297 = scalar_lea.vmem %s0, %s296
      %p298 = pneg %p41
      %p299 = pneg %p38
      %p300 = pneg %p62
      %p301 = pneg %p59
      %p302 = pneg %p83
      %p303 = pneg %p80
      %p304 = pneg %p104
      %p305 = pneg %p101
      %p306 = pneg %p125
      %p307 = pneg %p122
      %p308 = pneg %p146
      %p309 = pneg %p143
      %p310 = pneg %p167
      %p311 = pneg %p164
      %p312 = pneg %p188
      %p313 = pneg %p185
      %p314 = pneg %p209
      %p315 = pneg %p206
      %p316 = pneg %p235
      %p317 = pneg %p232
      %p318 = scmp.lt.s32.totalorder %s20, 1
      %s319 = scalar_select %p318, %s20, 1
      %s320 = smul.addr %s319, 32
      %s321 = smul.addr %s320, 8
      %s322 = scalar_lea.vmem %s9, %s321
      %p323 = scmp.lt.s32.totalorder %s20, 1
      %s324 = scalar_select %p323, %s20, 1
      %s325 = smul.addr %s324, 32
      %s326 = smul.addr %s325, 8
      %s327 = scalar_lea.vmem %s0, %s326
      %p328 = scmp.lt.s32.totalorder %s20, 1
      %s329 = scalar_select %p328, %s20, 1
      %s330 = smul.addr %s329, 32
      %s331 = smul.addr %s330, 8
      %s332 = scalar_lea.vmem %s9, %s331
      %v334 = vld [vmem:[%s327] sm:$0xff]
      %v335 = vld [vmem:[%s327 + $0x8] sm:$0xff]
      %v336 = vld [vmem:[%s327 + $0x10] sm:$0xff]
      %v337 = vld [vmem:[%s327 + $0x18] sm:$0xff]
      %v338 = vld [vmem:[%s327 + $0x20] sm:$0xff]
      %v339 = vld [vmem:[%s327 + $0x28] sm:$0xff]
      %v340 = vld [vmem:[%s327 + $0x30] sm:$0xff]
      %v341 = vld [vmem:[%s327 + $0x38] sm:$0xff]
      %v342 = vld [vmem:[%s327 + $0x40] sm:$0xff]
      %v343 = vld [vmem:[%s327 + $0x48] sm:$0xff]
      %v344 = vld [vmem:[%s327 + $0x50] sm:$0xff]
      %v345 = vld [vmem:[%s327 + $0x58] sm:$0xff]
      %v346 = vld [vmem:[%s327 + $0x60] sm:$0xff]
      %v347 = vld [vmem:[%s327 + $0x68] sm:$0xff]
      %v348 = vld [vmem:[%s327 + $0x70] sm:$0xff]
      %v349 = vld [vmem:[%s327 + $0x78] sm:$0xff]
      %v350 = vld [vmem:[%s327 + $0x80] sm:$0xff]
      %v351 = vld [vmem:[%s327 + $0x88] sm:$0xff]
      %v352 = vld [vmem:[%s327 + $0x90] sm:$0xff]
      %v353 = vld [vmem:[%s327 + $0x98] sm:$0xff]
      %v354 = vld [vmem:[%s327 + $0xa0] sm:$0xff]
      %v355 = vld [vmem:[%s327 + $0xa8] sm:$0xff]
      %v356 = vld [vmem:[%s327 + $0xb0] sm:$0xff]
      %v357 = vld [vmem:[%s327 + $0xb8] sm:$0xff]
      %v358 = vld [vmem:[%s327 + $0xc0] sm:$0xff]
      %v359 = vld [vmem:[%s327 + $0xc8] sm:$0xff]
      %v360 = vld [vmem:[%s327 + $0xd0] sm:$0xff]
      %v361 = vld [vmem:[%s327 + $0xd8] sm:$0xff]
      %v362 = vld [vmem:[%s327 + $0xe0] sm:$0xff]
      %v363 = vld [vmem:[%s327 + $0xe8] sm:$0xff]
      %v364 = vld [vmem:[%s327 + $0xf0] sm:$0xff]
      %v365 = vld [vmem:[%s327 + $0xf8] sm:$0xff]
      %v366 = vld [vmem:[%s2] sm:$0x1]
      %v368 = vperm.slane %v366, 0
      %v370 = vmul.f32 %v334, %v368
      %v371 = vmul.f32 %v335, %v368
      %v372 = vmul.f32 %v336, %v368
      %v373 = vmul.f32 %v337, %v368
      %v374 = vmul.f32 %v338, %v368
      %v375 = vmul.f32 %v339, %v368
      %v376 = vmul.f32 %v340, %v368
      %v377 = vmul.f32 %v341, %v368
      %v378 = vmul.f32 %v342, %v368
      %v379 = vmul.f32 %v343, %v368
      %v380 = vmul.f32 %v344, %v368
      %v381 = vmul.f32 %v345, %v368
      %v382 = vmul.f32 %v346, %v368
      %v383 = vmul.f32 %v347, %v368
      %v384 = vmul.f32 %v348, %v368
      %v385 = vmul.f32 %v349, %v368
      %v386 = vmul.f32 %v350, %v368
      %v387 = vmul.f32 %v351, %v368
      %v388 = vmul.f32 %v352, %v368
      %v389 = vmul.f32 %v353, %v368
      %v390 = vmul.f32 %v354, %v368
      %v391 = vmul.f32 %v355, %v368
      %v392 = vmul.f32 %v356, %v368
      %v393 = vmul.f32 %v357, %v368
      %v394 = vmul.f32 %v358, %v368
      %v395 = vmul.f32 %v359, %v368
      %v396 = vmul.f32 %v360, %v368
      %v397 = vmul.f32 %v361, %v368
      %v398 = vmul.f32 %v362, %v368
      %v399 = vmul.f32 %v363, %v368
      %v400 = vmul.f32 %v364, %v368
      %v401 = vmul.f32 %v365, %v368
      %v402 = vld [vmem:[%s3] sm:$0x1]
      %v404 = vperm.slane %v402, 0
      %v406 = vadd.f32 %v370, %v404
      %v407 = vadd.f32 %v371, %v404
      %v408 = vadd.f32 %v372, %v404
      %v409 = vadd.f32 %v373, %v404
      %v410 = vadd.f32 %v374, %v404
      %v411 = vadd.f32 %v375, %v404
      %v412 = vadd.f32 %v376, %v404
      %v413 = vadd.f32 %v377, %v404
      %v414 = vadd.f32 %v378, %v404
      %v415 = vadd.f32 %v379, %v404
      %v416 = vadd.f32 %v380, %v404
      %v417 = vadd.f32 %v381, %v404
      %v418 = vadd.f32 %v382, %v404
      %v419 = vadd.f32 %v383, %v404
      %v420 = vadd.f32 %v384, %v404
      %v421 = vadd.f32 %v385, %v404
      %v422 = vadd.f32 %v386, %v404
      %v423 = vadd.f32 %v387, %v404
      %v424 = vadd.f32 %v388, %v404
      %v425 = vadd.f32 %v389, %v404
      %v426 = vadd.f32 %v390, %v404
      %v427 = vadd.f32 %v391, %v404
      %v428 = vadd.f32 %v392, %v404
      %v429 = vadd.f32 %v393, %v404
      %v430 = vadd.f32 %v394, %v404
      %v431 = vadd.f32 %v395, %v404
      %v432 = vadd.f32 %v396, %v404
      %v433 = vadd.f32 %v397, %v404
      %v434 = vadd.f32 %v398, %v404
      %v435 = vadd.f32 %v399, %v404
      %v436 = vadd.f32 %v400, %v404
      %v437 = vadd.f32 %v401, %v404
      %v438 = vmax.f32 %v406, 0.0
      %v439 = vmax.f32 %v407, 0.0
      %v440 = vmax.f32 %v408, 0.0
      %v441 = vmax.f32 %v409, 0.0
      %v442 = vmax.f32 %v410, 0.0
      %v443 = vmax.f32 %v411, 0.0
      %v444 = vmax.f32 %v412, 0.0
      %v445 = vmax.f32 %v413, 0.0
      %v446 = vmax.f32 %v414, 0.0
      %v447 = vmax.f32 %v415, 0.0
      %v448 = vmax.f32 %v416, 0.0
      %v449 = vmax.f32 %v417, 0.0
      %v450 = vmax.f32 %v418, 0.0
      %v451 = vmax.f32 %v419, 0.0
      %v452 = vmax.f32 %v420, 0.0
      %v453 = vmax.f32 %v421, 0.0
      %v454 = vmax.f32 %v422, 0.0
      %v455 = vmax.f32 %v423, 0.0
      %v456 = vmax.f32 %v424, 0.0
      %v457 = vmax.f32 %v425, 0.0
      %v458 = vmax.f32 %v426, 0.0
      %v459 = vmax.f32 %v427, 0.0
      %v460 = vmax.f32 %v428, 0.0
      %v461 = vmax.f32 %v429, 0.0
      %v462 = vmax.f32 %v430, 0.0
      %v463 = vmax.f32 %v431, 0.0
      %v464 = vmax.f32 %v432, 0.0
      %v465 = vmax.f32 %v433, 0.0
      %v466 = vmax.f32 %v434, 0.0
      %v467 = vmax.f32 %v435, 0.0
      %v468 = vmax.f32 %v436, 0.0
      %v469 = vmax.f32 %v437, 0.0
      %v470 = vpack.c.bf16 %v439, %v438
      %v471 = vpack.c.bf16 %v441, %v440
      %v472 = vpack.c.bf16 %v443, %v442
      %v473 = vpack.c.bf16 %v445, %v444
      %v474 = vpack.c.bf16 %v447, %v446
      %v475 = vpack.c.bf16 %v449, %v448
      %v476 = vpack.c.bf16 %v451, %v450
      %v477 = vpack.c.bf16 %v453, %v452
      %v478 = vpack.c.bf16 %v455, %v454
      %v479 = vpack.c.bf16 %v457, %v456
      %v480 = vpack.c.bf16 %v459, %v458
      %v481 = vpack.c.bf16 %v461, %v460
      %v482 = vpack.c.bf16 %v463, %v462
      %v483 = vpack.c.bf16 %v465, %v464
      %v484 = vpack.c.bf16 %v467, %v466
      %v485 = vpack.c.bf16 %v469, %v468
      %v486 = vld [vmem:[%s1] sm:$0x3]
      %vm487 = vcmask 31744
      %v489 = vsel %vm487, %v470, 0
      %v492 = vsel %vm487, %v471, 0
      %v495 = vsel %vm487, %v472, 0
      %v498 = vsel %vm487, %v473, 0
      %v501 = vsel %vm487, %v474, 0
      %v504 = vsel %vm487, %v475, 0
      %v507 = vsel %vm487, %v476, 0
      %v510 = vsel %vm487, %v477, 0
      %v513 = vsel %vm487, %v478, 0
      %v516 = vsel %vm487, %v479, 0
      %v519 = vsel %vm487, %v480, 0
      %v522 = vsel %vm487, %v481, 0
      %v525 = vsel %vm487, %v482, 0
      %v528 = vsel %vm487, %v483, 0
      %v531 = vsel %vm487, %v484, 0
      %v534 = vsel %vm487, %v485, 0
      %vm536 = vcmask 1041408
      %v538 = vsel %vm536, %v486, 0
      %540 = vmatpush.bf16.msra.mxu0 0
      %541 = vmatpush.bf16.msra.mxu0 0
      %542 = vmatpush.bf16.msra.mxu0 0
      %543 = vmatpush.bf16.msra.mxu0 0
      %544 = vmatpush.bf16.msra.mxu0 0
      %545 = vmatpush.bf16.msra.mxu0 0
      %546 = vmatpush.bf16.msra.mxu0 0
      %547 = vmatpush.bf16.msra.mxu0 %v538
      %548 = vmatmul.bf16.gmra.mxu0 %v489
      %v549 = vpop.f32.mrf.mxu0
      %v550 = vadd.f32 0.0, %v549
      %v551 = vpop.f32.mrf.mxu0
      %v552 = vadd.f32 0.0, %v551
      %553 = vmatmul.bf16.gmra.mxu0 %v492
      %v554 = vpop.f32.mrf.mxu0
      %v555 = vadd.f32 0.0, %v554
      %v556 = vpop.f32.mrf.mxu0
      %v557 = vadd.f32 0.0, %v556
      %558 = vmatmul.bf16.gmra.mxu0 %v495
      %v559 = vpop.f32.mrf.mxu0
      %v560 = vadd.f32 0.0, %v559
      %v561 = vpop.f32.mrf.mxu0
      %v562 = vadd.f32 0.0, %v561
      %563 = vmatmul.bf16.gmra.mxu0 %v498
      %v564 = vpop.f32.mrf.mxu0
      %v565 = vadd.f32 0.0, %v564
      %v566 = vpop.f32.mrf.mxu0
      %v567 = vadd.f32 0.0, %v566
      %568 = vmatmul.bf16.gmra.mxu0 %v501
      %v569 = vpop.f32.mrf.mxu0
      %v570 = vadd.f32 0.0, %v569
      %v571 = vpop.f32.mrf.mxu0
      %v572 = vadd.f32 0.0, %v571
      %573 = vmatmul.bf16.gmra.mxu0 %v504
      %v574 = vpop.f32.mrf.mxu0
      %v575 = vadd.f32 0.0, %v574
      %v576 = vpop.f32.mrf.mxu0
      %v577 = vadd.f32 0.0, %v576
      %578 = vmatmul.bf16.gmra.mxu0 %v507
      %v579 = vpop.f32.mrf.mxu0
      %v580 = vadd.f32 0.0, %v579
      %v581 = vpop.f32.mrf.mxu0
      %v582 = vadd.f32 0.0, %v581
      %583 = vmatmul.bf16.gmra.mxu0 %v510
      %v584 = vpop.f32.mrf.mxu0
      %v585 = vadd.f32 0.0, %v584
      %v586 = vpop.f32.mrf.mxu0
      %v587 = vadd.f32 0.0, %v586
      %588 = vmatmul.bf16.gmra.mxu0 %v513
      %v589 = vpop.f32.mrf.mxu0
      %v590 = vadd.f32 0.0, %v589
      %v591 = vpop.f32.mrf.mxu0
      %v592 = vadd.f32 0.0, %v591
      %593 = vmatmul.bf16.gmra.mxu0 %v516
      %v594 = vpop.f32.mrf.mxu0
      %v595 = vadd.f32 0.0, %v594
      %v596 = vpop.f32.mrf.mxu0
      %v597 = vadd.f32 0.0, %v596
      %598 = vmatmul.bf16.gmra.mxu0 %v519
      %v599 = vpop.f32.mrf.mxu0
      %v600 = vadd.f32 0.0, %v599
      %v601 = vpop.f32.mrf.mxu0
      %v602 = vadd.f32 0.0, %v601
      %603 = vmatmul.bf16.gmra.mxu0 %v522
      %v604 = vpop.f32.mrf.mxu0
      %v605 = vadd.f32 0.0, %v604
      %v606 = vpop.f32.mrf.mxu0
      %v607 = vadd.f32 0.0, %v606
      %608 = vmatmul.bf16.gmra.mxu0 %v525
      %v609 = vpop.f32.mrf.mxu0
      %v610 = vadd.f32 0.0, %v609
      %v611 = vpop.f32.mrf.mxu0
      %v612 = vadd.f32 0.0, %v611
      %613 = vmatmul.bf16.gmra.mxu0 %v528
      %v614 = vpop.f32.mrf.mxu0
      %v615 = vadd.f32 0.0, %v614
      %v616 = vpop.f32.mrf.mxu0
      %v617 = vadd.f32 0.0, %v616
      %618 = vmatmul.bf16.gmra.mxu0 %v531
      %v619 = vpop.f32.mrf.mxu0
      %v620 = vadd.f32 0.0, %v619
      %v621 = vpop.f32.mrf.mxu0
      %v622 = vadd.f32 0.0, %v621
      %623 = vmatmul.bf16.gmra.mxu0 %v534
      %v624 = vpop.f32.mrf.mxu0
      %v625 = vadd.f32 0.0, %v624
      %v626 = vpop.f32.mrf.mxu0
      %v627 = vadd.f32 0.0, %v626
      %628 = vdwg.mxu0
      %v629 = vld [vmem:[%s4] sm:$0x1]
      %v631 = vperm.slane %v629, 0
      %v633 = vmul.f32 %v550, %v631
      %v634 = vmul.f32 %v552, %v631
      %v635 = vmul.f32 %v555, %v631
      %v636 = vmul.f32 %v557, %v631
      %v637 = vmul.f32 %v560, %v631
      %v638 = vmul.f32 %v562, %v631
      %v639 = vmul.f32 %v565, %v631
      %v640 = vmul.f32 %v567, %v631
      %v641 = vmul.f32 %v570, %v631
      %v642 = vmul.f32 %v572, %v631
      %v643 = vmul.f32 %v575, %v631
      %v644 = vmul.f32 %v577, %v631
      %v645 = vmul.f32 %v580, %v631
      %v646 = vmul.f32 %v582, %v631
      %v647 = vmul.f32 %v585, %v631
      %v648 = vmul.f32 %v587, %v631
      %v649 = vmul.f32 %v590, %v631
      %v650 = vmul.f32 %v592, %v631
      %v651 = vmul.f32 %v595, %v631
      %v652 = vmul.f32 %v597, %v631
      %v653 = vmul.f32 %v600, %v631
      %v654 = vmul.f32 %v602, %v631
      %v655 = vmul.f32 %v605, %v631
      %v656 = vmul.f32 %v607, %v631
      %v657 = vmul.f32 %v610, %v631
      %v658 = vmul.f32 %v612, %v631
      %v659 = vmul.f32 %v615, %v631
      %v660 = vmul.f32 %v617, %v631
      %v661 = vmul.f32 %v620, %v631
      %v662 = vmul.f32 %v622, %v631
      %v663 = vmul.f32 %v625, %v631
      %v664 = vmul.f32 %v627, %v631
      %v665 = vld [vmem:[%s5] sm:$0x1]
      %v667 = vperm.slane %v665, 0
      %v669 = vadd.f32 %v633, %v667
      %v670 = vadd.f32 %v634, %v667
      %v671 = vadd.f32 %v635, %v667
      %v672 = vadd.f32 %v636, %v667
      %v673 = vadd.f32 %v637, %v667
      %v674 = vadd.f32 %v638, %v667
      %v675 = vadd.f32 %v639, %v667
      %v676 = vadd.f32 %v640, %v667
      %v677 = vadd.f32 %v641, %v667
      %v678 = vadd.f32 %v642, %v667
      %v679 = vadd.f32 %v643, %v667
      %v680 = vadd.f32 %v644, %v667
      %v681 = vadd.f32 %v645, %v667
      %v682 = vadd.f32 %v646, %v667
      %v683 = vadd.f32 %v647, %v667
      %v684 = vadd.f32 %v648, %v667
      %v685 = vadd.f32 %v649, %v667
      %v686 = vadd.f32 %v650, %v667
      %v687 = vadd.f32 %v651, %v667
      %v688 = vadd.f32 %v652, %v667
      %v689 = vadd.f32 %v653, %v667
      %v690 = vadd.f32 %v654, %v667
      %v691 = vadd.f32 %v655, %v667
      %v692 = vadd.f32 %v656, %v667
      %v693 = vadd.f32 %v657, %v667
      %v694 = vadd.f32 %v658, %v667
      %v695 = vadd.f32 %v659, %v667
      %v696 = vadd.f32 %v660, %v667
      %v697 = vadd.f32 %v661, %v667
      %v698 = vadd.f32 %v662, %v667
      %v699 = vadd.f32 %v663, %v667
      %v700 = vadd.f32 %v664, %v667
      %v701 = vmax.f32 %v669, 0.0
      %v702 = vmax.f32 %v670, 0.0
      %v703 = vmax.f32 %v671, 0.0
      %v704 = vmax.f32 %v672, 0.0
      %v705 = vmax.f32 %v673, 0.0
      %v706 = vmax.f32 %v674, 0.0
      %v707 = vmax.f32 %v675, 0.0
      %v708 = vmax.f32 %v676, 0.0
      %v709 = vmax.f32 %v677, 0.0
      %v710 = vmax.f32 %v678, 0.0
      %v711 = vmax.f32 %v679, 0.0
      %v712 = vmax.f32 %v680, 0.0
      %v713 = vmax.f32 %v681, 0.0
      %v714 = vmax.f32 %v682, 0.0
      %v715 = vmax.f32 %v683, 0.0
      %v716 = vmax.f32 %v684, 0.0
      %v717 = vmax.f32 %v685, 0.0
      %v718 = vmax.f32 %v686, 0.0
      %v719 = vmax.f32 %v687, 0.0
      %v720 = vmax.f32 %v688, 0.0
      %v721 = vmax.f32 %v689, 0.0
      %v722 = vmax.f32 %v690, 0.0
      %v723 = vmax.f32 %v691, 0.0
      %v724 = vmax.f32 %v692, 0.0
      %v725 = vmax.f32 %v693, 0.0
      %v726 = vmax.f32 %v694, 0.0
      %v727 = vmax.f32 %v695, 0.0
      %v728 = vmax.f32 %v696, 0.0
      %v729 = vmax.f32 %v697, 0.0
      %v730 = vmax.f32 %v698, 0.0
      %v731 = vmax.f32 %v699, 0.0
      %v732 = vmax.f32 %v700, 0.0
      %733 = vst [vmem:[#allocation2] sm:$0xff] 0.0
      %734 = vst [vmem:[#allocation2 + $0x8] sm:$0xff] 0.0
      %735 = vst [vmem:[#allocation2 + $0x10] sm:$0xff] 0.0
      %736 = vst [vmem:[#allocation2 + $0x18] sm:$0xff] %v701
      %737 = vst [vmem:[#allocation2 + $0x20] sm:$0xff] %v702
      %738 = vst [vmem:[#allocation2 + $0x28] sm:$0xff] %v703
      %739 = vst [vmem:[#allocation2 + $0x30] sm:$0xff] %v704
      %740 = vst [vmem:[#allocation2 + $0x38] sm:$0xff] %v705
      %741 = vst [vmem:[#allocation2 + $0x40] sm:$0xff] %v706
      %742 = vst [vmem:[#allocation2 + $0x48] sm:$0xff] %v707
      %743 = vst [vmem:[#allocation2 + $0x50] sm:$0xff] %v708
      %744 = vst [vmem:[#allocation2 + $0x58] sm:$0xff] %v709
      %745 = vst [vmem:[#allocation2 + $0x60] sm:$0xff] %v710
      %746 = vst [vmem:[#allocation2 + $0x68] sm:$0xff] %v711
      %747 = vst [vmem:[#allocation2 + $0x70] sm:$0xff] %v712
      %748 = vst [vmem:[#allocation2 + $0x78] sm:$0xff] %v713
      %749 = vst [vmem:[#allocation2 + $0x80] sm:$0xff] %v714
      %750 = vst [vmem:[#allocation2 + $0x88] sm:$0xff] %v715
      %751 = vst [vmem:[#allocation2 + $0x90] sm:$0xff] %v716
      %752 = vst [vmem:[#allocation2 + $0x98] sm:$0xff] %v717
      %753 = vst [vmem:[#allocation2 + $0xa0] sm:$0xff] %v718
      %754 = vst [vmem:[#allocation2 + $0xa8] sm:$0xff] %v719
      %755 = vst [vmem:[#allocation2 + $0xb0] sm:$0xff] %v720
      %756 = vst [vmem:[#allocation2 + $0xb8] sm:$0xff] %v721
      %757 = vst [vmem:[#allocation2 + $0xc0] sm:$0xff] %v722
      %758 = vst [vmem:[#allocation2 + $0xc8] sm:$0xff] %v723
      %759 = vst [vmem:[#allocation2 + $0xd0] sm:$0xff] %v724
      %760 = vst [vmem:[#allocation2 + $0xd8] sm:$0xff] %v725
      %761 = vst [vmem:[#allocation2 + $0xe0] sm:$0xff] %v726
      %762 = vst [vmem:[#allocation2 + $0xe8] sm:$0xff] %v727
      %763 = vst [vmem:[#allocation2 + $0xf0] sm:$0xff] %v728
      %764 = vst [vmem:[#allocation2 + $0xf8] sm:$0xff] %v729
      %765 = vst [vmem:[#allocation2 + $0x100] sm:$0xff] %v730
      %766 = vst [vmem:[#allocation2 + $0x108] sm:$0xff] %v731
      %767 = vst [vmem:[#allocation2 + $0x110] sm:$0xff] %v732
      %768 = vst [vmem:[#allocation2 + $0x118] sm:$0xff] 0.0
      %769 = vst [vmem:[#allocation2 + $0x120] sm:$0xff] 0.0
      %770 = vst [vmem:[#allocation2 + $0x128] sm:$0xff] 0.0
      %v771 = vld [vmem:[%s7] sm:$0xff]
      %v772 = vld [vmem:[%s7 + $0x8] sm:$0xff]
      %v773 = vld [vmem:[%s7 + $0x10] sm:$0xff]
      %v774 = vld [vmem:[%s7 + $0x18] sm:$0xff]
      %v775 = vld [vmem:[%s7 + $0x20] sm:$0xff]
      %v776 = vld [vmem:[%s7 + $0x28] sm:$0xff]
      %v777 = vld [vmem:[%s7 + $0x30] sm:$0xff]
      %v778 = vld [vmem:[%s7 + $0x38] sm:$0xff]
      %v779 = vld [vmem:[%s7 + $0x40] sm:$0xff]
      %v780 = vld [vmem:[%s7 + $0x48] sm:$0xff]
      %v781 = vld [vmem:[%s7 + $0x50] sm:$0xff]
      %v782 = vld [vmem:[%s7 + $0x58] sm:$0xff]
      %v783 = vld [vmem:[%s7 + $0x60] sm:$0xff]
      %v784 = vld [vmem:[%s7 + $0x68] sm:$0xff]
      %v785 = vld [vmem:[%s7 + $0x70] sm:$0xff]
      %v786 = vld [vmem:[%s7 + $0x78] sm:$0xff]
      %v787 = vld [vmem:[%s7 + $0x80] sm:$0xff]
      %v788 = vld [vmem:[%s7 + $0x88] sm:$0xff]
      %v789 = vld [vmem:[%s7 + $0x90] sm:$0xff]
      %v790 = vld [vmem:[%s7 + $0x98] sm:$0xff]
      %v791 = vld [vmem:[%s7 + $0xa0] sm:$0xff]
      %v792 = vld [vmem:[%s7 + $0xa8] sm:$0xff]
      %v793 = vld [vmem:[%s7 + $0xb0] sm:$0xff]
      %v794 = vld [vmem:[%s7 + $0xb8] sm:$0xff]
      %v795 = vld [vmem:[%s7 + $0xc0] sm:$0xff]
      %v796 = vld [vmem:[%s7 + $0xc8] sm:$0xff]
      %v797 = vld [vmem:[%s7 + $0xd0] sm:$0xff]
      %v798 = vld [vmem:[%s7 + $0xd8] sm:$0xff]
      %v799 = vld [vmem:[%s7 + $0xe0] sm:$0xff]
      %v800 = vld [vmem:[%s7 + $0xe8] sm:$0xff]
      %v801 = vld [vmem:[%s7 + $0xf0] sm:$0xff]
      %v802 = vld [vmem:[%s7 + $0xf8] sm:$0xff]
      %v803 = vld [vmem:[%s8] sm:$0xff]
      %v804 = vld [vmem:[%s8 + $0x8] sm:$0xff]
      %v805 = vld [vmem:[%s8 + $0x10] sm:$0xff]
      %v806 = vld [vmem:[%s8 + $0x18] sm:$0xff]
      %v807 = vld [vmem:[%s8 + $0x20] sm:$0xff]
      %v808 = vld [vmem:[%s8 + $0x28] sm:$0xff]
      %v809 = vld [vmem:[%s8 + $0x30] sm:$0xff]
      %v810 = vld [vmem:[%s8 + $0x38] sm:$0xff]
      %v811 = vld [vmem:[%s8 + $0x40] sm:$0xff]
      %v812 = vld [vmem:[%s8 + $0x48] sm:$0xff]
      %v813 = vld [vmem:[%s8 + $0x50] sm:$0xff]
      %v814 = vld [vmem:[%s8 + $0x58] sm:$0xff]
      %v815 = vld [vmem:[%s8 + $0x60] sm:$0xff]
      %v816 = vld [vmem:[%s8 + $0x68] sm:$0xff]
      %v817 = vld [vmem:[%s8 + $0x70] sm:$0xff]
      %v818 = vld [vmem:[%s8 + $0x78] sm:$0xff]
      %v819 = vld [vmem:[%s8 + $0x80] sm:$0xff]
      %v820 = vld [vmem:[%s8 + $0x88] sm:$0xff]
      %v821 = vld [vmem:[%s8 + $0x90] sm:$0xff]
      %v822 = vld [vmem:[%s8 + $0x98] sm:$0xff]
      %v823 = vld [vmem:[%s8 + $0xa0] sm:$0xff]
      %v824 = vld [vmem:[%s8 + $0xa8] sm:$0xff]
      %v825 = vld [vmem:[%s8 + $0xb0] sm:$0xff]
      %v826 = vld [vmem:[%s8 + $0xb8] sm:$0xff]
      %v827 = vld [vmem:[%s8 + $0xc0] sm:$0xff]
      %v828 = vld [vmem:[%s8 + $0xc8] sm:$0xff]
      %v829 = vld [vmem:[%s8 + $0xd0] sm:$0xff]
      %v830 = vld [vmem:[%s8 + $0xd8] sm:$0xff]
      %v831 = vld [vmem:[%s8 + $0xe0] sm:$0xff]
      %v832 = vld [vmem:[%s8 + $0xe8] sm:$0xff]
      %v833 = vld [vmem:[%s8 + $0xf0] sm:$0xff]
      %v834 = vld [vmem:[%s8 + $0xf8] sm:$0xff]
      %v835 = vld [vmem:[#allocation2 + $0x7] sm:$0xff]
      %v836 = vld [vmem:[#allocation2 + $0xf] sm:$0xff]
      %v837 = vld [vmem:[#allocation2 + $0x17] sm:$0xff]
      %v838 = vld [vmem:[#allocation2 + $0x1f] sm:$0xff]
      %v839 = vld [vmem:[#allocation2 + $0x27] sm:$0xff]
      %v840 = vld [vmem:[#allocation2 + $0x2f] sm:$0xff]
      %v841 = vld [vmem:[#allocation2 + $0x37] sm:$0xff]
      %v842 = vld [vmem:[#allocation2 + $0x3f] sm:$0xff]
      %v843 = vld [vmem:[#allocation2 + $0x47] sm:$0xff]
      %v844 = vld [vmem:[#allocation2 + $0x4f] sm:$0xff]
      %v845 = vld [vmem:[#allocation2 + $0x57] sm:$0xff]
      %v846 = vld [vmem:[#allocation2 + $0x5f] sm:$0xff]
      %v847 = vld [vmem:[#allocation2 + $0x67] sm:$0xff]
      %v848 = vld [vmem:[#allocation2 + $0x6f] sm:$0xff]
      %v849 = vld [vmem:[#allocation2 + $0x77] sm:$0xff]
      %v850 = vld [vmem:[#allocation2 + $0x7f] sm:$0xff]
      %v851 = vld [vmem:[#allocation2 + $0x87] sm:$0xff]
      %v852 = vld [vmem:[#allocation2 + $0x8f] sm:$0xff]
      %v853 = vld [vmem:[#allocation2 + $0x97] sm:$0xff]
      %v854 = vld [vmem:[#allocation2 + $0x9f] sm:$0xff]
      %v855 = vld [vmem:[#allocation2 + $0xa7] sm:$0xff]
      %v856 = vld [vmem:[#allocation2 + $0xaf] sm:$0xff]
      %v857 = vld [vmem:[#allocation2 + $0xb7] sm:$0xff]
      %v858 = vld [vmem:[#allocation2 + $0xbf] sm:$0xff]
      %v859 = vld [vmem:[#allocation2 + $0xc7] sm:$0xff]
      %v860 = vld [vmem:[#allocation2 + $0xcf] sm:$0xff]
      %v861 = vld [vmem:[#allocation2 + $0xd7] sm:$0xff]
      %v862 = vld [vmem:[#allocation2 + $0xdf] sm:$0xff]
      %v863 = vld [vmem:[#allocation2 + $0xe7] sm:$0xff]
      %v864 = vld [vmem:[#allocation2 + $0xef] sm:$0xff]
      %v865 = vld [vmem:[#allocation2 + $0xf7] sm:$0xff]
      %v866 = vld [vmem:[#allocation2 + $0xff] sm:$0xff]
      %868 = vset.pattern.permute.xlu0 0
      %869 = vperm.xlu0 %868, %v771
      %v870 = vpop.permute.xlu0 %869
      %873 = vset.pattern.permute.xlu0 0
      %874 = vperm.xlu0 %873, %v772
      %v875 = vpop.permute.xlu0 %874
      %878 = vset.pattern.permute.xlu0 0
      %879 = vperm.xlu0 %878, %v773
      %v880 = vpop.permute.xlu0 %879
      %883 = vset.pattern.permute.xlu0 0
      %884 = vperm.xlu0 %883, %v774
      %v885 = vpop.permute.xlu0 %884
      %888 = vset.pattern.permute.xlu0 0
      %889 = vperm.xlu0 %888, %v775
      %v890 = vpop.permute.xlu0 %889
      %893 = vset.pattern.permute.xlu0 0
      %894 = vperm.xlu0 %893, %v776
      %v895 = vpop.permute.xlu0 %894
      %898 = vset.pattern.permute.xlu0 0
      %899 = vperm.xlu0 %898, %v777
      %v900 = vpop.permute.xlu0 %899
      %903 = vset.pattern.permute.xlu0 0
      %904 = vperm.xlu0 %903, %v778
      %v905 = vpop.permute.xlu0 %904
      %908 = vset.pattern.permute.xlu0 0
      %909 = vperm.xlu0 %908, %v779
      %v910 = vpop.permute.xlu0 %909
      %913 = vset.pattern.permute.xlu0 0
      %914 = vperm.xlu0 %913, %v780
      %v915 = vpop.permute.xlu0 %914
      %918 = vset.pattern.permute.xlu0 0
      %919 = vperm.xlu0 %918, %v781
      %v920 = vpop.permute.xlu0 %919
      %923 = vset.pattern.permute.xlu0 0
      %924 = vperm.xlu0 %923, %v782
      %v925 = vpop.permute.xlu0 %924
      %928 = vset.pattern.permute.xlu0 0
      %929 = vperm.xlu0 %928, %v783
      %v930 = vpop.permute.xlu0 %929
      %933 = vset.pattern.permute.xlu0 0
      %934 = vperm.xlu0 %933, %v784
      %v935 = vpop.permute.xlu0 %934
      %938 = vset.pattern.permute.xlu0 0
      %939 = vperm.xlu0 %938, %v785
      %v940 = vpop.permute.xlu0 %939
      %943 = vset.pattern.permute.xlu0 0
      %944 = vperm.xlu0 %943, %v786
      %v945 = vpop.permute.xlu0 %944
      %948 = vset.pattern.permute.xlu0 0
      %949 = vperm.xlu0 %948, %v787
      %v950 = vpop.permute.xlu0 %949
      %953 = vset.pattern.permute.xlu0 0
      %954 = vperm.xlu0 %953, %v788
      %v955 = vpop.permute.xlu0 %954
      %958 = vset.pattern.permute.xlu0 0
      %959 = vperm.xlu0 %958, %v789
      %v960 = vpop.permute.xlu0 %959
      %963 = vset.pattern.permute.xlu0 0
      %964 = vperm.xlu0 %963, %v790
      %v965 = vpop.permute.xlu0 %964
      %968 = vset.pattern.permute.xlu0 0
      %969 = vperm.xlu0 %968, %v791
      %v970 = vpop.permute.xlu0 %969
      %973 = vset.pattern.permute.xlu0 0
      %974 = vperm.xlu0 %973, %v792
      %v975 = vpop.permute.xlu0 %974
      %978 = vset.pattern.permute.xlu0 0
      %979 = vperm.xlu0 %978, %v793
      %v980 = vpop.permute.xlu0 %979
      %983 = vset.pattern.permute.xlu0 0
      %984 = vperm.xlu0 %983, %v794
      %v985 = vpop.permute.xlu0 %984
      %988 = vset.pattern.permute.xlu0 0
      %989 = vperm.xlu0 %988, %v795
      %v990 = vpop.permute.xlu0 %989
      %993 = vset.pattern.permute.xlu0 0
      %994 = vperm.xlu0 %993, %v796
      %v995 = vpop.permute.xlu0 %994
      %998 = vset.pattern.permute.xlu0 0
      %999 = vperm.xlu0 %998, %v797
      %v1000 = vpop.permute.xlu0 %999
      %1003 = vset.pattern.permute.xlu0 0
      %1004 = vperm.xlu0 %1003, %v798
      %v1005 = vpop.permute.xlu0 %1004
      %1008 = vset.pattern.permute.xlu0 0
      %1009 = vperm.xlu0 %1008, %v799
      %v1010 = vpop.permute.xlu0 %1009
      %1013 = vset.pattern.permute.xlu0 0
      %1014 = vperm.xlu0 %1013, %v800
      %v1015 = vpop.permute.xlu0 %1014
      %1018 = vset.pattern.permute.xlu0 0
      %1019 = vperm.xlu0 %1018, %v801
      %v1020 = vpop.permute.xlu0 %1019
      %1023 = vset.pattern.permute.xlu0 0
      %1024 = vperm.xlu0 %1023, %v802
      %v1025 = vpop.permute.xlu0 %1024
      %v1027 = vmul.f32 %v835, %v870
      %v1028 = vmul.f32 %v836, %v875
      %v1029 = vmul.f32 %v837, %v880
      %v1030 = vmul.f32 %v838, %v885
      %v1031 = vmul.f32 %v839, %v890
      %v1032 = vmul.f32 %v840, %v895
      %v1033 = vmul.f32 %v841, %v900
      %v1034 = vmul.f32 %v842, %v905
      %v1035 = vmul.f32 %v843, %v910
      %v1036 = vmul.f32 %v844, %v915
      %v1037 = vmul.f32 %v845, %v920
      %v1038 = vmul.f32 %v846, %v925
      %v1039 = vmul.f32 %v847, %v930
      %v1040 = vmul.f32 %v848, %v935
      %v1041 = vmul.f32 %v849, %v940
      %v1042 = vmul.f32 %v850, %v945
      %v1043 = vmul.f32 %v851, %v950
      %v1044 = vmul.f32 %v852, %v955
      %v1045 = vmul.f32 %v853, %v960
      %v1046 = vmul.f32 %v854, %v965
      %v1047 = vmul.f32 %v855, %v970
      %v1048 = vmul.f32 %v856, %v975
      %v1049 = vmul.f32 %v857, %v980
      %v1050 = vmul.f32 %v858, %v985
      %v1051 = vmul.f32 %v859, %v990
      %v1052 = vmul.f32 %v860, %v995
      %v1053 = vmul.f32 %v861, %v1000
      %v1054 = vmul.f32 %v862, %v1005
      %v1055 = vmul.f32 %v863, %v1010
      %v1056 = vmul.f32 %v864, %v1015
      %v1057 = vmul.f32 %v865, %v1020
      %v1058 = vmul.f32 %v866, %v1025
      %v1059 = vpack.c.bf16 %v1028, %v1027
      %v1060 = vpack.c.bf16 %v1030, %v1029
      %v1061 = vpack.c.bf16 %v1032, %v1031
      %v1062 = vpack.c.bf16 %v1034, %v1033
      %v1063 = vpack.c.bf16 %v1036, %v1035
      %v1064 = vpack.c.bf16 %v1038, %v1037
      %v1065 = vpack.c.bf16 %v1040, %v1039
      %v1066 = vpack.c.bf16 %v1042, %v1041
      %v1067 = vpack.c.bf16 %v1044, %v1043
      %v1068 = vpack.c.bf16 %v1046, %v1045
      %v1069 = vpack.c.bf16 %v1048, %v1047
      %v1070 = vpack.c.bf16 %v1050, %v1049
      %v1071 = vpack.c.bf16 %v1052, %v1051
      %v1072 = vpack.c.bf16 %v1054, %v1053
      %v1073 = vpack.c.bf16 %v1056, %v1055
      %v1074 = vpack.c.bf16 %v1058, %v1057
      %v1075 = vld [vmem:[%s6] sm:$0xf]
      %v1076 = vld [vmem:[%s6 + $0x4] sm:$0xf]
      %v1077 = vld [vmem:[%s6 + $0x8] sm:$0xf]
      %v1078 = vld [vmem:[%s6 + $0xc] sm:$0xf]
      %v1079 = vld [vmem:[%s6 + $0x10] sm:$0xf]
      %v1080 = vld [vmem:[%s6 + $0x14] sm:$0xf]
      %v1081 = vld [vmem:[%s6 + $0x18] sm:$0xf]
      %v1082 = vld [vmem:[%s6 + $0x1c] sm:$0xf]
      %v1083 = vld [vmem:[%s6 + $0x20] sm:$0xf]
      %v1084 = vld [vmem:[%s6 + $0x24] sm:$0xf]
      %v1085 = vld [vmem:[%s6 + $0x28] sm:$0xf]
      %v1086 = vld [vmem:[%s6 + $0x2c] sm:$0xf]
      %v1087 = vld [vmem:[%s6 + $0x30] sm:$0xf]
      %v1088 = vld [vmem:[%s6 + $0x34] sm:$0xf]
      %v1089 = vld [vmem:[%s6 + $0x38] sm:$0xf]
      %v1090 = vld [vmem:[%s6 + $0x3c] sm:$0xf]
      %v1091 = vld [vmem:[#allocation2 + $0x8] sm:$0xff]
      %v1092 = vld [vmem:[#allocation2 + $0x10] sm:$0xff]
      %v1093 = vld [vmem:[#allocation2 + $0x18] sm:$0xff]
      %v1094 = vld [vmem:[#allocation2 + $0x20] sm:$0xff]
      %v1095 = vld [vmem:[#allocation2 + $0x28] sm:$0xff]
      %v1096 = vld [vmem:[#allocation2 + $0x30] sm:$0xff]
      %v1097 = vld [vmem:[#allocation2 + $0x38] sm:$0xff]
      %v1098 = vld [vmem:[#allocation2 + $0x40] sm:$0xff]
      %v1099 = vld [vmem:[#allocation2 + $0x48] sm:$0xff]
      %v1100 = vld [vmem:[#allocation2 + $0x50] sm:$0xff]
      %v1101 = vld [vmem:[#allocation2 + $0x58] sm:$0xff]
      %v1102 = vld [vmem:[#allocation2 + $0x60] sm:$0xff]
      %v1103 = vld [vmem:[#allocation2 + $0x68] sm:$0xff]
      %v1104 = vld [vmem:[#allocation2 + $0x70] sm:$0xff]
      %v1105 = vld [vmem:[#allocation2 + $0x78] sm:$0xff]
      %v1106 = vld [vmem:[#allocation2 + $0x80] sm:$0xff]
      %v1107 = vld [vmem:[#allocation2 + $0x88] sm:$0xff]
      %v1108 = vld [vmem:[#allocation2 + $0x90] sm:$0xff]
      %v1109 = vld [vmem:[#allocation2 + $0x98] sm:$0xff]
      %v1110 = vld [vmem:[#allocation2 + $0xa0] sm:$0xff]
      %v1111 = vld [vmem:[#allocation2 + $0xa8] sm:$0xff]
      %v1112 = vld [vmem:[#allocation2 + $0xb0] sm:$0xff]
      %v1113 = vld [vmem:[#allocation2 + $0xb8] sm:$0xff]
      %v1114 = vld [vmem:[#allocation2 + $0xc0] sm:$0xff]
      %v1115 = vld [vmem:[#allocation2 + $0xc8] sm:$0xff]
      %v1116 = vld [vmem:[#allocation2 + $0xd0] sm:$0xff]
      %v1117 = vld [vmem:[#allocation2 + $0xd8] sm:$0xff]
      %v1118 = vld [vmem:[#allocation2 + $0xe0] sm:$0xff]
      %v1119 = vld [vmem:[#allocation2 + $0xe8] sm:$0xff]
      %v1120 = vld [vmem:[#allocation2 + $0xf0] sm:$0xff]
      %v1121 = vld [vmem:[#allocation2 + $0xf8] sm:$0xff]
      %v1122 = vld [vmem:[#allocation2 + $0x100] sm:$0xff]
      %v1123 = vpack.c.bf16 %v1092, %v1091
      %v1124 = vpack.c.bf16 %v1094, %v1093
      %v1125 = vpack.c.bf16 %v1096, %v1095
      %v1126 = vpack.c.bf16 %v1098, %v1097
      %v1127 = vpack.c.bf16 %v1100, %v1099
      %v1128 = vpack.c.bf16 %v1102, %v1101
      %v1129 = vpack.c.bf16 %v1104, %v1103
      %v1130 = vpack.c.bf16 %v1106, %v1105
      %v1131 = vpack.c.bf16 %v1108, %v1107
      %v1132 = vpack.c.bf16 %v1110, %v1109
      %v1133 = vpack.c.bf16 %v1112, %v1111
      %v1134 = vpack.c.bf16 %v1114, %v1113
      %v1135 = vpack.c.bf16 %v1116, %v1115
      %v1136 = vpack.c.bf16 %v1118, %v1117
      %v1137 = vpack.c.bf16 %v1120, %v1119
      %v1138 = vpack.c.bf16 %v1122, %v1121
      %s1139 = scalar_lea.vmem %s6, 64
      %v1140 = vld [vmem:[%s1139] sm:$0xf]
      %v1141 = vld [vmem:[%s1139 + $0x4] sm:$0xf]
      %v1142 = vld [vmem:[%s1139 + $0x8] sm:$0xf]
      %v1143 = vld [vmem:[%s1139 + $0xc] sm:$0xf]
      %v1144 = vld [vmem:[%s1139 + $0x10] sm:$0xf]
      %v1145 = vld [vmem:[%s1139 + $0x14] sm:$0xf]
      %v1146 = vld [vmem:[%s1139 + $0x18] sm:$0xf]
      %v1147 = vld [vmem:[%s1139 + $0x1c] sm:$0xf]
      %v1148 = vld [vmem:[%s1139 + $0x20] sm:$0xf]
      %v1149 = vld [vmem:[%s1139 + $0x24] sm:$0xf]
      %v1150 = vld [vmem:[%s1139 + $0x28] sm:$0xf]
      %v1151 = vld [vmem:[%s1139 + $0x2c] sm:$0xf]
      %v1152 = vld [vmem:[%s1139 + $0x30] sm:$0xf]
      %v1153 = vld [vmem:[%s1139 + $0x34] sm:$0xf]
      %v1154 = vld [vmem:[%s1139 + $0x38] sm:$0xf]
      %v1155 = vld [vmem:[%s1139 + $0x3c] sm:$0xf]
      %v1172 = vunpack.c.l.b16 %v1140
      %v1173 = vunpack.c.l.b16 %v1141
      %v1174 = vunpack.c.l.b16 %v1142
      %v1175 = vunpack.c.l.b16 %v1143
      %v1176 = vunpack.c.l.b16 %v1144
      %v1177 = vunpack.c.l.b16 %v1145
      %v1178 = vunpack.c.l.b16 %v1146
      %v1179 = vunpack.c.l.b16 %v1147
      %v1180 = vunpack.c.l.b16 %v1148
      %v1181 = vunpack.c.l.b16 %v1149
      %v1182 = vunpack.c.l.b16 %v1150
      %v1183 = vunpack.c.l.b16 %v1151
      %v1184 = vunpack.c.l.b16 %v1152
      %v1185 = vunpack.c.l.b16 %v1153
      %v1186 = vunpack.c.l.b16 %v1154
      %v1187 = vunpack.c.l.b16 %v1155
      %v1188 = vpack.c.b16 %v1173, %v1172
      %v1189 = vpack.c.b16 %v1175, %v1174
      %v1190 = vpack.c.b16 %v1177, %v1176
      %v1191 = vpack.c.b16 %v1179, %v1178
      %v1192 = vpack.c.b16 %v1181, %v1180
      %v1193 = vpack.c.b16 %v1183, %v1182
      %v1194 = vpack.c.b16 %v1185, %v1184
      %v1195 = vpack.c.b16 %v1187, %v1186
      %1204 = vmatpush.bf16.msra.mxu0 %v1195
      %1205 = vmatpush.bf16.msra.mxu0 %v1194
      %1206 = vmatpush.bf16.msra.mxu0 %v1193
      %1207 = vmatpush.bf16.msra.mxu0 %v1192
      %1208 = vmatpush.bf16.msra.mxu0 %v1191
      %1209 = vmatpush.bf16.msra.mxu0 %v1190
      %1210 = vmatpush.bf16.msra.mxu0 %v1189
      %1211 = vmatpush.bf16.msra.mxu0 %v1188
      %1212 = vmatmul.bf16.gmra.mxu0 %v1123
      %v1213 = vpop.f32.mrf.mxu0
      %v1214 = vadd.f32 0.0, %v1213
      %v1215 = vpop.f32.mrf.mxu0
      %v1216 = vadd.f32 0.0, %v1215
      %1217 = vmatmul.bf16.gmra.mxu0 %v1124
      %v1218 = vpop.f32.mrf.mxu0
      %v1219 = vadd.f32 0.0, %v1218
      %v1220 = vpop.f32.mrf.mxu0
      %v1221 = vadd.f32 0.0, %v1220
      %1222 = vmatmul.bf16.gmra.mxu0 %v1125
      %v1223 = vpop.f32.mrf.mxu0
      %v1224 = vadd.f32 0.0, %v1223
      %v1225 = vpop.f32.mrf.mxu0
      %v1226 = vadd.f32 0.0, %v1225
      %1227 = vmatmul.bf16.gmra.mxu0 %v1126
      %v1228 = vpop.f32.mrf.mxu0
      %v1229 = vadd.f32 0.0, %v1228
      %v1230 = vpop.f32.mrf.mxu0
      %v1231 = vadd.f32 0.0, %v1230
      %1232 = vmatmul.bf16.gmra.mxu0 %v1127
      %v1233 = vpop.f32.mrf.mxu0
      %v1234 = vadd.f32 0.0, %v1233
      %v1235 = vpop.f32.mrf.mxu0
      %v1236 = vadd.f32 0.0, %v1235
      %1237 = vmatmul.bf16.gmra.mxu0 %v1128
      %v1238 = vpop.f32.mrf.mxu0
      %v1239 = vadd.f32 0.0, %v1238
      %v1240 = vpop.f32.mrf.mxu0
      %v1241 = vadd.f32 0.0, %v1240
      %1242 = vmatmul.bf16.gmra.mxu0 %v1129
      %v1243 = vpop.f32.mrf.mxu0
      %v1244 = vadd.f32 0.0, %v1243
      %v1245 = vpop.f32.mrf.mxu0
      %v1246 = vadd.f32 0.0, %v1245
      %1247 = vmatmul.bf16.gmra.mxu0 %v1130
      %v1248 = vpop.f32.mrf.mxu0
      %v1249 = vadd.f32 0.0, %v1248
      %v1250 = vpop.f32.mrf.mxu0
      %v1251 = vadd.f32 0.0, %v1250
      %1252 = vmatmul.bf16.gmra.mxu0 %v1131
      %v1253 = vpop.f32.mrf.mxu0
      %v1254 = vadd.f32 0.0, %v1253
      %v1255 = vpop.f32.mrf.mxu0
      %v1256 = vadd.f32 0.0, %v1255
      %1257 = vmatmul.bf16.gmra.mxu0 %v1132
      %v1258 = vpop.f32.mrf.mxu0
      %v1259 = vadd.f32 0.0, %v1258
      %v1260 = vpop.f32.mrf.mxu0
      %v1261 = vadd.f32 0.0, %v1260
      %1262 = vmatmul.bf16.gmra.mxu0 %v1133
      %v1263 = vpop.f32.mrf.mxu0
      %v1264 = vadd.f32 0.0, %v1263
      %v1265 = vpop.f32.mrf.mxu0
      %v1266 = vadd.f32 0.0, %v1265
      %1267 = vmatmul.bf16.gmra.mxu0 %v1134
      %v1268 = vpop.f32.mrf.mxu0
      %v1269 = vadd.f32 0.0, %v1268
      %v1270 = vpop.f32.mrf.mxu0
      %v1271 = vadd.f32 0.0, %v1270
      %1272 = vmatmul.bf16.gmra.mxu0 %v1135
      %v1273 = vpop.f32.mrf.mxu0
      %v1274 = vadd.f32 0.0, %v1273
      %v1275 = vpop.f32.mrf.mxu0
      %v1276 = vadd.f32 0.0, %v1275
      %1277 = vmatmul.bf16.gmra.mxu0 %v1136
      %v1278 = vpop.f32.mrf.mxu0
      %v1279 = vadd.f32 0.0, %v1278
      %v1280 = vpop.f32.mrf.mxu0
      %v1281 = vadd.f32 0.0, %v1280
      %1282 = vmatmul.bf16.gmra.mxu0 %v1137
      %v1283 = vpop.f32.mrf.mxu0
      %v1284 = vadd.f32 0.0, %v1283
      %v1285 = vpop.f32.mrf.mxu0
      %v1286 = vadd.f32 0.0, %v1285
      %1287 = vmatmul.bf16.gmra.mxu0 %v1138
      %v1288 = vpop.f32.mrf.mxu0
      %v1289 = vadd.f32 0.0, %v1288
      %v1290 = vpop.f32.mrf.mxu0
      %v1291 = vadd.f32 0.0, %v1290
      %1292 = vdwg.mxu0
      %v1309 = vunpack.c.l.b16 %v1075
      %v1310 = vunpack.c.l.b16 %v1076
      %v1311 = vunpack.c.l.b16 %v1077
      %v1312 = vunpack.c.l.b16 %v1078
      %v1313 = vunpack.c.l.b16 %v1079
      %v1314 = vunpack.c.l.b16 %v1080
      %v1315 = vunpack.c.l.b16 %v1081
      %v1316 = vunpack.c.l.b16 %v1082
      %v1317 = vunpack.c.l.b16 %v1083
      %v1318 = vunpack.c.l.b16 %v1084
      %v1319 = vunpack.c.l.b16 %v1085
      %v1320 = vunpack.c.l.b16 %v1086
      %v1321 = vunpack.c.l.b16 %v1087
      %v1322 = vunpack.c.l.b16 %v1088
      %v1323 = vunpack.c.l.b16 %v1089
      %v1324 = vunpack.c.l.b16 %v1090
      %v1325 = vpack.c.b16 %v1310, %v1309
      %v1326 = vpack.c.b16 %v1312, %v1311
      %v1327 = vpack.c.b16 %v1314, %v1313
      %v1328 = vpack.c.b16 %v1316, %v1315
      %v1329 = vpack.c.b16 %v1318, %v1317
      %v1330 = vpack.c.b16 %v1320, %v1319
      %v1331 = vpack.c.b16 %v1322, %v1321
      %v1332 = vpack.c.b16 %v1324, %v1323
      %1341 = vmatpush.bf16.msra.mxu0 %v1332
      %1342 = vmatpush.bf16.msra.mxu0 %v1331
      %1343 = vmatpush.bf16.msra.mxu0 %v1330
      %1344 = vmatpush.bf16.msra.mxu0 %v1329
      %1345 = vmatpush.bf16.msra.mxu0 %v1328
      %1346 = vmatpush.bf16.msra.mxu0 %v1327
      %1347 = vmatpush.bf16.msra.mxu0 %v1326
      %1348 = vmatpush.bf16.msra.mxu0 %v1325
      %1349 = vmatmul.bf16.gmra.mxu0 %v1059
      %v1350 = vpop.f32.mrf.mxu0
      %v1351 = vadd.f32 %v1214, %v1350
      %v1352 = vpop.f32.mrf.mxu0
      %v1353 = vadd.f32 %v1216, %v1352
      %1354 = vmatmul.bf16.gmra.mxu0 %v1060
      %v1355 = vpop.f32.mrf.mxu0
      %v1356 = vadd.f32 %v1219, %v1355
      %v1357 = vpop.f32.mrf.mxu0
      %v1358 = vadd.f32 %v1221, %v1357
      %1359 = vmatmul.bf16.gmra.mxu0 %v1061
      %v1360 = vpop.f32.mrf.mxu0
      %v1361 = vadd.f32 %v1224, %v1360
      %v1362 = vpop.f32.mrf.mxu0
      %v1363 = vadd.f32 %v1226, %v1362
      %1364 = vmatmul.bf16.gmra.mxu0 %v1062
      %v1365 = vpop.f32.mrf.mxu0
      %v1366 = vadd.f32 %v1229, %v1365
      %v1367 = vpop.f32.mrf.mxu0
      %v1368 = vadd.f32 %v1231, %v1367
      %1369 = vmatmul.bf16.gmra.mxu0 %v1063
      %v1370 = vpop.f32.mrf.mxu0
      %v1371 = vadd.f32 %v1234, %v1370
      %v1372 = vpop.f32.mrf.mxu0
      %v1373 = vadd.f32 %v1236, %v1372
      %1374 = vmatmul.bf16.gmra.mxu0 %v1064
      %v1375 = vpop.f32.mrf.mxu0
      %v1376 = vadd.f32 %v1239, %v1375
      %v1377 = vpop.f32.mrf.mxu0
      %v1378 = vadd.f32 %v1241, %v1377
      %1379 = vmatmul.bf16.gmra.mxu0 %v1065
      %v1380 = vpop.f32.mrf.mxu0
      %v1381 = vadd.f32 %v1244, %v1380
      %v1382 = vpop.f32.mrf.mxu0
      %v1383 = vadd.f32 %v1246, %v1382
      %1384 = vmatmul.bf16.gmra.mxu0 %v1066
      %v1385 = vpop.f32.mrf.mxu0
      %v1386 = vadd.f32 %v1249, %v1385
      %v1387 = vpop.f32.mrf.mxu0
      %v1388 = vadd.f32 %v1251, %v1387
      %1389 = vmatmul.bf16.gmra.mxu0 %v1067
      %v1390 = vpop.f32.mrf.mxu0
      %v1391 = vadd.f32 %v1254, %v1390
      %v1392 = vpop.f32.mrf.mxu0
      %v1393 = vadd.f32 %v1256, %v1392
      %1394 = vmatmul.bf16.gmra.mxu0 %v1068
      %v1395 = vpop.f32.mrf.mxu0
      %v1396 = vadd.f32 %v1259, %v1395
      %v1397 = vpop.f32.mrf.mxu0
      %v1398 = vadd.f32 %v1261, %v1397
      %1399 = vmatmul.bf16.gmra.mxu0 %v1069
      %v1400 = vpop.f32.mrf.mxu0
      %v1401 = vadd.f32 %v1264, %v1400
      %v1402 = vpop.f32.mrf.mxu0
      %v1403 = vadd.f32 %v1266, %v1402
      %1404 = vmatmul.bf16.gmra.mxu0 %v1070
      %v1405 = vpop.f32.mrf.mxu0
      %v1406 = vadd.f32 %v1269, %v1405
      %v1407 = vpop.f32.mrf.mxu0
      %v1408 = vadd.f32 %v1271, %v1407
      %1409 = vmatmul.bf16.gmra.mxu0 %v1071
      %v1410 = vpop.f32.mrf.mxu0
      %v1411 = vadd.f32 %v1274, %v1410
      %v1412 = vpop.f32.mrf.mxu0
      %v1413 = vadd.f32 %v1276, %v1412
      %1414 = vmatmul.bf16.gmra.mxu0 %v1072
      %v1415 = vpop.f32.mrf.mxu0
      %v1416 = vadd.f32 %v1279, %v1415
      %v1417 = vpop.f32.mrf.mxu0
      %v1418 = vadd.f32 %v1281, %v1417
      %1419 = vmatmul.bf16.gmra.mxu0 %v1073
      %v1420 = vpop.f32.mrf.mxu0
      %v1421 = vadd.f32 %v1284, %v1420
      %v1422 = vpop.f32.mrf.mxu0
      %v1423 = vadd.f32 %v1286, %v1422
      %1424 = vmatmul.bf16.gmra.mxu0 %v1074
      %v1425 = vpop.f32.mrf.mxu0
      %v1426 = vadd.f32 %v1289, %v1425
      %v1427 = vpop.f32.mrf.mxu0
      %v1428 = vadd.f32 %v1291, %v1427
      %1429 = vdwg.mxu0
      %v1430 = vld [vmem:[#allocation2 + $0x9] sm:$0xff]
      %v1431 = vld [vmem:[#allocation2 + $0x11] sm:$0xff]
      %v1432 = vld [vmem:[#allocation2 + $0x19] sm:$0xff]
      %v1433 = vld [vmem:[#allocation2 + $0x21] sm:$0xff]
      %v1434 = vld [vmem:[#allocation2 + $0x29] sm:$0xff]
      %v1435 = vld [vmem:[#allocation2 + $0x31] sm:$0xff]
      %v1436 = vld [vmem:[#allocation2 + $0x39] sm:$0xff]
      %v1437 = vld [vmem:[#allocation2 + $0x41] sm:$0xff]
      %v1438 = vld [vmem:[#allocation2 + $0x49] sm:$0xff]
      %v1439 = vld [vmem:[#allocation2 + $0x51] sm:$0xff]
      %v1440 = vld [vmem:[#allocation2 + $0x59] sm:$0xff]
      %v1441 = vld [vmem:[#allocation2 + $0x61] sm:$0xff]
      %v1442 = vld [vmem:[#allocation2 + $0x69] sm:$0xff]
      %v1443 = vld [vmem:[#allocation2 + $0x71] sm:$0xff]
      %v1444 = vld [vmem:[#allocation2 + $0x79] sm:$0xff]
      %v1445 = vld [vmem:[#allocation2 + $0x81] sm:$0xff]
      %v1446 = vld [vmem:[#allocation2 + $0x89] sm:$0xff]
      %v1447 = vld [vmem:[#allocation2 + $0x91] sm:$0xff]
      %v1448 = vld [vmem:[#allocation2 + $0x99] sm:$0xff]
      %v1449 = vld [vmem:[#allocation2 + $0xa1] sm:$0xff]
      %v1450 = vld [vmem:[#allocation2 + $0xa9] sm:$0xff]
      %v1451 = vld [vmem:[#allocation2 + $0xb1] sm:$0xff]
      %v1452 = vld [vmem:[#allocation2 + $0xb9] sm:$0xff]
      %v1453 = vld [vmem:[#allocation2 + $0xc1] sm:$0xff]
      %v1454 = vld [vmem:[#allocation2 + $0xc9] sm:$0xff]
      %v1455 = vld [vmem:[#allocation2 + $0xd1] sm:$0xff]
      %v1456 = vld [vmem:[#allocation2 + $0xd9] sm:$0xff]
      %v1457 = vld [vmem:[#allocation2 + $0xe1] sm:$0xff]
      %v1458 = vld [vmem:[#allocation2 + $0xe9] sm:$0xff]
      %v1459 = vld [vmem:[#allocation2 + $0xf1] sm:$0xff]
      %v1460 = vld [vmem:[#allocation2 + $0xf9] sm:$0xff]
      %v1461 = vld [vmem:[#allocation2 + $0x101] sm:$0xff]
      %1463 = vset.pattern.permute.xlu0 0
      %1464 = vperm.xlu0 %1463, %v803
      %v1465 = vpop.permute.xlu0 %1464
      %1468 = vset.pattern.permute.xlu0 0
      %1469 = vperm.xlu0 %1468, %v804
      %v1470 = vpop.permute.xlu0 %1469
      %1473 = vset.pattern.permute.xlu0 0
      %1474 = vperm.xlu0 %1473, %v805
      %v1475 = vpop.permute.xlu0 %1474
      %1478 = vset.pattern.permute.xlu0 0
      %1479 = vperm.xlu0 %1478, %v806
      %v1480 = vpop.permute.xlu0 %1479
      %1483 = vset.pattern.permute.xlu0 0
      %1484 = vperm.xlu0 %1483, %v807
      %v1485 = vpop.permute.xlu0 %1484
      %1488 = vset.pattern.permute.xlu0 0
      %1489 = vperm.xlu0 %1488, %v808
      %v1490 = vpop.permute.xlu0 %1489
      %1493 = vset.pattern.permute.xlu0 0
      %1494 = vperm.xlu0 %1493, %v809
      %v1495 = vpop.permute.xlu0 %1494
      %1498 = vset.pattern.permute.xlu0 0
      %1499 = vperm.xlu0 %1498, %v810
      %v1500 = vpop.permute.xlu0 %1499
      %1503 = vset.pattern.permute.xlu0 0
      %1504 = vperm.xlu0 %1503, %v811
      %v1505 = vpop.permute.xlu0 %1504
      %1508 = vset.pattern.permute.xlu0 0
      %1509 = vperm.xlu0 %1508, %v812
      %v1510 = vpop.permute.xlu0 %1509
      %1513 = vset.pattern.permute.xlu0 0
      %1514 = vperm.xlu0 %1513, %v813
      %v1515 = vpop.permute.xlu0 %1514
      %1518 = vset.pattern.permute.xlu0 0
      %1519 = vperm.xlu0 %1518, %v814
      %v1520 = vpop.permute.xlu0 %1519
      %1523 = vset.pattern.permute.xlu0 0
      %1524 = vperm.xlu0 %1523, %v815
      %v1525 = vpop.permute.xlu0 %1524
      %1528 = vset.pattern.permute.xlu0 0
      %1529 = vperm.xlu0 %1528, %v816
      %v1530 = vpop.permute.xlu0 %1529
      %1533 = vset.pattern.permute.xlu0 0
      %1534 = vperm.xlu0 %1533, %v817
      %v1535 = vpop.permute.xlu0 %1534
      %1538 = vset.pattern.permute.xlu0 0
      %1539 = vperm.xlu0 %1538, %v818
      %v1540 = vpop.permute.xlu0 %1539
      %1543 = vset.pattern.permute.xlu0 0
      %1544 = vperm.xlu0 %1543, %v819
      %v1545 = vpop.permute.xlu0 %1544
      %1548 = vset.pattern.permute.xlu0 0
      %1549 = vperm.xlu0 %1548, %v820
      %v1550 = vpop.permute.xlu0 %1549
      %1553 = vset.pattern.permute.xlu0 0
      %1554 = vperm.xlu0 %1553, %v821
      %v1555 = vpop.permute.xlu0 %1554
      %1558 = vset.pattern.permute.xlu0 0
      %1559 = vperm.xlu0 %1558, %v822
      %v1560 = vpop.permute.xlu0 %1559
      %1563 = vset.pattern.permute.xlu0 0
      %1564 = vperm.xlu0 %1563, %v823
      %v1565 = vpop.permute.xlu0 %1564
      %1568 = vset.pattern.permute.xlu0 0
      %1569 = vperm.xlu0 %1568, %v824
      %v1570 = vpop.permute.xlu0 %1569
      %1573 = vset.pattern.permute.xlu0 0
      %1574 = vperm.xlu0 %1573, %v825
      %v1575 = vpop.permute.xlu0 %1574
      %1578 = vset.pattern.permute.xlu0 0
      %1579 = vperm.xlu0 %1578, %v826
      %v1580 = vpop.permute.xlu0 %1579
      %1583 = vset.pattern.permute.xlu0 0
      %1584 = vperm.xlu0 %1583, %v827
      %v1585 = vpop.permute.xlu0 %1584
      %1588 = vset.pattern.permute.xlu0 0
      %1589 = vperm.xlu0 %1588, %v828
      %v1590 = vpop.permute.xlu0 %1589
      %1593 = vset.pattern.permute.xlu0 0
      %1594 = vperm.xlu0 %1593, %v829
      %v1595 = vpop.permute.xlu0 %1594
      %1598 = vset.pattern.permute.xlu0 0
      %1599 = vperm.xlu0 %1598, %v830
      %v1600 = vpop.permute.xlu0 %1599
      %1603 = vset.pattern.permute.xlu0 0
      %1604 = vperm.xlu0 %1603, %v831
      %v1605 = vpop.permute.xlu0 %1604
      %1608 = vset.pattern.permute.xlu0 0
      %1609 = vperm.xlu0 %1608, %v832
      %v1610 = vpop.permute.xlu0 %1609
      %1613 = vset.pattern.permute.xlu0 0
      %1614 = vperm.xlu0 %1613, %v833
      %v1615 = vpop.permute.xlu0 %1614
      %1618 = vset.pattern.permute.xlu0 0
      %1619 = vperm.xlu0 %1618, %v834
      %v1620 = vpop.permute.xlu0 %1619
      %v1622 = vmul.f32 %v1430, %v1465
      %v1623 = vmul.f32 %v1431, %v1470
      %v1624 = vmul.f32 %v1432, %v1475
      %v1625 = vmul.f32 %v1433, %v1480
      %v1626 = vmul.f32 %v1434, %v1485
      %v1627 = vmul.f32 %v1435, %v1490
      %v1628 = vmul.f32 %v1436, %v1495
      %v1629 = vmul.f32 %v1437, %v1500
      %v1630 = vmul.f32 %v1438, %v1505
      %v1631 = vmul.f32 %v1439, %v1510
      %v1632 = vmul.f32 %v1440, %v1515
      %v1633 = vmul.f32 %v1441, %v1520
      %v1634 = vmul.f32 %v1442, %v1525
      %v1635 = vmul.f32 %v1443, %v1530
      %v1636 = vmul.f32 %v1444, %v1535
      %v1637 = vmul.f32 %v1445, %v1540
      %v1638 = vmul.f32 %v1446, %v1545
      %v1639 = vmul.f32 %v1447, %v1550
      %v1640 = vmul.f32 %v1448, %v1555
      %v1641 = vmul.f32 %v1449, %v1560
      %v1642 = vmul.f32 %v1450, %v1565
      %v1643 = vmul.f32 %v1451, %v1570
      %v1644 = vmul.f32 %v1452, %v1575
      %v1645 = vmul.f32 %v1453, %v1580
      %v1646 = vmul.f32 %v1454, %v1585
      %v1647 = vmul.f32 %v1455, %v1590
      %v1648 = vmul.f32 %v1456, %v1595
      %v1649 = vmul.f32 %v1457, %v1600
      %v1650 = vmul.f32 %v1458, %v1605
      %v1651 = vmul.f32 %v1459, %v1610
      %v1652 = vmul.f32 %v1460, %v1615
      %v1653 = vmul.f32 %v1461, %v1620
      %v1654 = vpack.c.bf16 %v1623, %v1622
      %v1655 = vpack.c.bf16 %v1625, %v1624
      %v1656 = vpack.c.bf16 %v1627, %v1626
      %v1657 = vpack.c.bf16 %v1629, %v1628
      %v1658 = vpack.c.bf16 %v1631, %v1630
      %v1659 = vpack.c.bf16 %v1633, %v1632
      %v1660 = vpack.c.bf16 %v1635, %v1634
      %v1661 = vpack.c.bf16 %v1637, %v1636
      %v1662 = vpack.c.bf16 %v1639, %v1638
      %v1663 = vpack.c.bf16 %v1641, %v1640
      %v1664 = vpack.c.bf16 %v1643, %v1642
      %v1665 = vpack.c.bf16 %v1645, %v1644
      %v1666 = vpack.c.bf16 %v1647, %v1646
      %v1667 = vpack.c.bf16 %v1649, %v1648
      %v1668 = vpack.c.bf16 %v1651, %v1650
      %v1669 = vpack.c.bf16 %v1653, %v1652
      %s1670 = scalar_lea.vmem %s6, 128
      %v1671 = vld [vmem:[%s1670] sm:$0xf]
      %v1672 = vld [vmem:[%s1670 + $0x4] sm:$0xf]
      %v1673 = vld [vmem:[%s1670 + $0x8] sm:$0xf]
      %v1674 = vld [vmem:[%s1670 + $0xc] sm:$0xf]
      %v1675 = vld [vmem:[%s1670 + $0x10] sm:$0xf]
      %v1676 = vld [vmem:[%s1670 + $0x14] sm:$0xf]
      %v1677 = vld [vmem:[%s1670 + $0x18] sm:$0xf]
      %v1678 = vld [vmem:[%s1670 + $0x1c] sm:$0xf]
      %v1679 = vld [vmem:[%s1670 + $0x20] sm:$0xf]
      %v1680 = vld [vmem:[%s1670 + $0x24] sm:$0xf]
      %v1681 = vld [vmem:[%s1670 + $0x28] sm:$0xf]
      %v1682 = vld [vmem:[%s1670 + $0x2c] sm:$0xf]
      %v1683 = vld [vmem:[%s1670 + $0x30] sm:$0xf]
      %v1684 = vld [vmem:[%s1670 + $0x34] sm:$0xf]
      %v1685 = vld [vmem:[%s1670 + $0x38] sm:$0xf]
      %v1686 = vld [vmem:[%s1670 + $0x3c] sm:$0xf]
      %v1703 = vunpack.c.l.b16 %v1671
      %v1704 = vunpack.c.l.b16 %v1672
      %v1705 = vunpack.c.l.b16 %v1673
      %v1706 = vunpack.c.l.b16 %v1674
      %v1707 = vunpack.c.l.b16 %v1675
      %v1708 = vunpack.c.l.b16 %v1676
      %v1709 = vunpack.c.l.b16 %v1677
      %v1710 = vunpack.c.l.b16 %v1678
      %v1711 = vunpack.c.l.b16 %v1679
      %v1712 = vunpack.c.l.b16 %v1680
      %v1713 = vunpack.c.l.b16 %v1681
      %v1714 = vunpack.c.l.b16 %v1682
      %v1715 = vunpack.c.l.b16 %v1683
      %v1716 = vunpack.c.l.b16 %v1684
      %v1717 = vunpack.c.l.b16 %v1685
      %v1718 = vunpack.c.l.b16 %v1686
      %v1719 = vpack.c.b16 %v1704, %v1703
      %v1720 = vpack.c.b16 %v1706, %v1705
      %v1721 = vpack.c.b16 %v1708, %v1707
      %v1722 = vpack.c.b16 %v1710, %v1709
      %v1723 = vpack.c.b16 %v1712, %v1711
      %v1724 = vpack.c.b16 %v1714, %v1713
      %v1725 = vpack.c.b16 %v1716, %v1715
      %v1726 = vpack.c.b16 %v1718, %v1717
      %1735 = vmatpush.bf16.msra.mxu0 %v1726
      %1736 = vmatpush.bf16.msra.mxu0 %v1725
      %1737 = vmatpush.bf16.msra.mxu0 %v1724
      %1738 = vmatpush.bf16.msra.mxu0 %v1723
      %1739 = vmatpush.bf16.msra.mxu0 %v1722
      %1740 = vmatpush.bf16.msra.mxu0 %v1721
      %1741 = vmatpush.bf16.msra.mxu0 %v1720
      %1742 = vmatpush.bf16.msra.mxu0 %v1719
      %1743 = vmatmul.bf16.gmra.mxu0 %v1654
      %v1744 = vpop.f32.mrf.mxu0
      %v1745 = vadd.f32 0.0, %v1744
      %v1746 = vpop.f32.mrf.mxu0
      %v1747 = vadd.f32 0.0, %v1746
      %1748 = vmatmul.bf16.gmra.mxu0 %v1655
      %v1749 = vpop.f32.mrf.mxu0
      %v1750 = vadd.f32 0.0, %v1749
      %v1751 = vpop.f32.mrf.mxu0
      %v1752 = vadd.f32 0.0, %v1751
      %1753 = vmatmul.bf16.gmra.mxu0 %v1656
      %v1754 = vpop.f32.mrf.mxu0
      %v1755 = vadd.f32 0.0, %v1754
      %v1756 = vpop.f32.mrf.mxu0
      %v1757 = vadd.f32 0.0, %v1756
      %1758 = vmatmul.bf16.gmra.mxu0 %v1657
      %v1759 = vpop.f32.mrf.mxu0
      %v1760 = vadd.f32 0.0, %v1759
      %v1761 = vpop.f32.mrf.mxu0
      %v1762 = vadd.f32 0.0, %v1761
      %1763 = vmatmul.bf16.gmra.mxu0 %v1658
      %v1764 = vpop.f32.mrf.mxu0
      %v1765 = vadd.f32 0.0, %v1764
      %v1766 = vpop.f32.mrf.mxu0
      %v1767 = vadd.f32 0.0, %v1766
      %1768 = vmatmul.bf16.gmra.mxu0 %v1659
      %v1769 = vpop.f32.mrf.mxu0
      %v1770 = vadd.f32 0.0, %v1769
      %v1771 = vpop.f32.mrf.mxu0
      %v1772 = vadd.f32 0.0, %v1771
      %1773 = vmatmul.bf16.gmra.mxu0 %v1660
      %v1774 = vpop.f32.mrf.mxu0
      %v1775 = vadd.f32 0.0, %v1774
      %v1776 = vpop.f32.mrf.mxu0
      %v1777 = vadd.f32 0.0, %v1776
      %1778 = vmatmul.bf16.gmra.mxu0 %v1661
      %v1779 = vpop.f32.mrf.mxu0
      %v1780 = vadd.f32 0.0, %v1779
      %v1781 = vpop.f32.mrf.mxu0
      %v1782 = vadd.f32 0.0, %v1781
      %1783 = vmatmul.bf16.gmra.mxu0 %v1662
      %v1784 = vpop.f32.mrf.mxu0
      %v1785 = vadd.f32 0.0, %v1784
      %v1786 = vpop.f32.mrf.mxu0
      %v1787 = vadd.f32 0.0, %v1786
      %1788 = vmatmul.bf16.gmra.mxu0 %v1663
      %v1789 = vpop.f32.mrf.mxu0
      %v1790 = vadd.f32 0.0, %v1789
      %v1791 = vpop.f32.mrf.mxu0
      %v1792 = vadd.f32 0.0, %v1791
      %1793 = vmatmul.bf16.gmra.mxu0 %v1664
      %v1794 = vpop.f32.mrf.mxu0
      %v1795 = vadd.f32 0.0, %v1794
      %v1796 = vpop.f32.mrf.mxu0
      %v1797 = vadd.f32 0.0, %v1796
      %1798 = vmatmul.bf16.gmra.mxu0 %v1665
      %v1799 = vpop.f32.mrf.mxu0
      %v1800 = vadd.f32 0.0, %v1799
      %v1801 = vpop.f32.mrf.mxu0
      %v1802 = vadd.f32 0.0, %v1801
      %1803 = vmatmul.bf16.gmra.mxu0 %v1666
      %v1804 = vpop.f32.mrf.mxu0
      %v1805 = vadd.f32 0.0, %v1804
      %v1806 = vpop.f32.mrf.mxu0
      %v1807 = vadd.f32 0.0, %v1806
      %1808 = vmatmul.bf16.gmra.mxu0 %v1667
      %v1809 = vpop.f32.mrf.mxu0
      %v1810 = vadd.f32 0.0, %v1809
      %v1811 = vpop.f32.mrf.mxu0
      %v1812 = vadd.f32 0.0, %v1811
      %1813 = vmatmul.bf16.gmra.mxu0 %v1668
      %v1814 = vpop.f32.mrf.mxu0
      %v1815 = vadd.f32 0.0, %v1814
      %v1816 = vpop.f32.mrf.mxu0
      %v1817 = vadd.f32 0.0, %v1816
      %1818 = vmatmul.bf16.gmra.mxu0 %v1669
      %v1819 = vpop.f32.mrf.mxu0
      %v1820 = vadd.f32 0.0, %v1819
      %v1821 = vpop.f32.mrf.mxu0
      %v1822 = vadd.f32 0.0, %v1821
      %1823 = vdwg.mxu0
      %v1824 = vadd.f32 %v1351, %v1745
      %v1825 = vadd.f32 %v1353, %v1747
      %v1826 = vadd.f32 %v1356, %v1750
      %v1827 = vadd.f32 %v1358, %v1752
      %v1828 = vadd.f32 %v1361, %v1755
      %v1829 = vadd.f32 %v1363, %v1757
      %v1830 = vadd.f32 %v1366, %v1760
      %v1831 = vadd.f32 %v1368, %v1762
      %v1832 = vadd.f32 %v1371, %v1765
      %v1833 = vadd.f32 %v1373, %v1767
      %v1834 = vadd.f32 %v1376, %v1770
      %v1835 = vadd.f32 %v1378, %v1772
      %v1836 = vadd.f32 %v1381, %v1775
      %v1837 = vadd.f32 %v1383, %v1777
      %v1838 = vadd.f32 %v1386, %v1780
      %v1839 = vadd.f32 %v1388, %v1782
      %v1840 = vadd.f32 %v1391, %v1785
      %v1841 = vadd.f32 %v1393, %v1787
      %v1842 = vadd.f32 %v1396, %v1790
      %v1843 = vadd.f32 %v1398, %v1792
      %v1844 = vadd.f32 %v1401, %v1795
      %v1845 = vadd.f32 %v1403, %v1797
      %v1846 = vadd.f32 %v1406, %v1800
      %v1847 = vadd.f32 %v1408, %v1802
      %v1848 = vadd.f32 %v1411, %v1805
      %v1849 = vadd.f32 %v1413, %v1807
      %v1850 = vadd.f32 %v1416, %v1810
      %v1851 = vadd.f32 %v1418, %v1812
      %v1852 = vadd.f32 %v1421, %v1815
      %v1853 = vadd.f32 %v1423, %v1817
      %v1854 = vadd.f32 %v1426, %v1820
      %v1855 = vadd.f32 %v1428, %v1822
      %v1856 = vld [vmem:[#allocation2 + $0x17] sm:$0xff]
      %v1857 = vld [vmem:[#allocation2 + $0x1f] sm:$0xff]
      %v1858 = vld [vmem:[#allocation2 + $0x27] sm:$0xff]
      %v1859 = vld [vmem:[#allocation2 + $0x2f] sm:$0xff]
      %v1860 = vld [vmem:[#allocation2 + $0x37] sm:$0xff]
      %v1861 = vld [vmem:[#allocation2 + $0x3f] sm:$0xff]
      %v1862 = vld [vmem:[#allocation2 + $0x47] sm:$0xff]
      %v1863 = vld [vmem:[#allocation2 + $0x4f] sm:$0xff]
      %v1864 = vld [vmem:[#allocation2 + $0x57] sm:$0xff]
      %v1865 = vld [vmem:[#allocation2 + $0x5f] sm:$0xff]
      %v1866 = vld [vmem:[#allocation2 + $0x67] sm:$0xff]
      %v1867 = vld [vmem:[#allocation2 + $0x6f] sm:$0xff]
      %v1868 = vld [vmem:[#allocation2 + $0x77] sm:$0xff]
      %v1869 = vld [vmem:[#allocation2 + $0x7f] sm:$0xff]
      %v1870 = vld [vmem:[#allocation2 + $0x87] sm:$0xff]
      %v1871 = vld [vmem:[#allocation2 + $0x8f] sm:$0xff]
      %v1872 = vld [vmem:[#allocation2 + $0x97] sm:$0xff]
      %v1873 = vld [vmem:[#allocation2 + $0x9f] sm:$0xff]
      %v1874 = vld [vmem:[#allocation2 + $0xa7] sm:$0xff]
      %v1875 = vld [vmem:[#allocation2 + $0xaf] sm:$0xff]
      %v1876 = vld [vmem:[#allocation2 + $0xb7] sm:$0xff]
      %v1877 = vld [vmem:[#allocation2 + $0xbf] sm:$0xff]
      %v1878 = vld [vmem:[#allocation2 + $0xc7] sm:$0xff]
      %v1879 = vld [vmem:[#allocation2 + $0xcf] sm:$0xff]
      %v1880 = vld [vmem:[#allocation2 + $0xd7] sm:$0xff]
      %v1881 = vld [vmem:[#allocation2 + $0xdf] sm:$0xff]
      %v1882 = vld [vmem:[#allocation2 + $0xe7] sm:$0xff]
      %v1883 = vld [vmem:[#allocation2 + $0xef] sm:$0xff]
      %v1884 = vld [vmem:[#allocation2 + $0xf7] sm:$0xff]
      %v1885 = vld [vmem:[#allocation2 + $0xff] sm:$0xff]
      %v1886 = vld [vmem:[#allocation2 + $0x107] sm:$0xff]
      %v1887 = vld [vmem:[#allocation2 + $0x10f] sm:$0xff]
      %v1888 = vmul.f32 %v1856, %v870
      %v1889 = vmul.f32 %v1857, %v875
      %v1890 = vmul.f32 %v1858, %v880
      %v1891 = vmul.f32 %v1859, %v885
      %v1892 = vmul.f32 %v1860, %v890
      %v1893 = vmul.f32 %v1861, %v895
      %v1894 = vmul.f32 %v1862, %v900
      %v1895 = vmul.f32 %v1863, %v905
      %v1896 = vmul.f32 %v1864, %v910
      %v1897 = vmul.f32 %v1865, %v915
      %v1898 = vmul.f32 %v1866, %v920
      %v1899 = vmul.f32 %v1867, %v925
      %v1900 = vmul.f32 %v1868, %v930
      %v1901 = vmul.f32 %v1869, %v935
      %v1902 = vmul.f32 %v1870, %v940
      %v1903 = vmul.f32 %v1871, %v945
      %v1904 = vmul.f32 %v1872, %v950
      %v1905 = vmul.f32 %v1873, %v955
      %v1906 = vmul.f32 %v1874, %v960
      %v1907 = vmul.f32 %v1875, %v965
      %v1908 = vmul.f32 %v1876, %v970
      %v1909 = vmul.f32 %v1877, %v975
      %v1910 = vmul.f32 %v1878, %v980
      %v1911 = vmul.f32 %v1879, %v985
      %v1912 = vmul.f32 %v1880, %v990
      %v1913 = vmul.f32 %v1881, %v995
      %v1914 = vmul.f32 %v1882, %v1000
      %v1915 = vmul.f32 %v1883, %v1005
      %v1916 = vmul.f32 %v1884, %v1010
      %v1917 = vmul.f32 %v1885, %v1015
      %v1918 = vmul.f32 %v1886, %v1020
      %v1919 = vmul.f32 %v1887, %v1025
      %v1920 = vpack.c.bf16 %v1889, %v1888
      %v1921 = vpack.c.bf16 %v1891, %v1890
      %v1922 = vpack.c.bf16 %v1893, %v1892
      %v1923 = vpack.c.bf16 %v1895, %v1894
      %v1924 = vpack.c.bf16 %v1897, %v1896
      %v1925 = vpack.c.bf16 %v1899, %v1898
      %v1926 = vpack.c.bf16 %v1901, %v1900
      %v1927 = vpack.c.bf16 %v1903, %v1902
      %v1928 = vpack.c.bf16 %v1905, %v1904
      %v1929 = vpack.c.bf16 %v1907, %v1906
      %v1930 = vpack.c.bf16 %v1909, %v1908
      %v1931 = vpack.c.bf16 %v1911, %v1910
      %v1932 = vpack.c.bf16 %v1913, %v1912
      %v1933 = vpack.c.bf16 %v1915, %v1914
      %v1934 = vpack.c.bf16 %v1917, %v1916
      %v1935 = vpack.c.bf16 %v1919, %v1918
      %s1936 = scalar_lea.vmem %s6, 192
      %v1937 = vld [vmem:[%s1936] sm:$0xf]
      %v1938 = vld [vmem:[%s1936 + $0x4] sm:$0xf]
      %v1939 = vld [vmem:[%s1936 + $0x8] sm:$0xf]
      %v1940 = vld [vmem:[%s1936 + $0xc] sm:$0xf]
      %v1941 = vld [vmem:[%s1936 + $0x10] sm:$0xf]
      %v1942 = vld [vmem:[%s1936 + $0x14] sm:$0xf]
      %v1943 = vld [vmem:[%s1936 + $0x18] sm:$0xf]
      %v1944 = vld [vmem:[%s1936 + $0x1c] sm:$0xf]
      %v1945 = vld [vmem:[%s1936 + $0x20] sm:$0xf]
      %v1946 = vld [vmem:[%s1936 + $0x24] sm:$0xf]
      %v1947 = vld [vmem:[%s1936 + $0x28] sm:$0xf]
      %v1948 = vld [vmem:[%s1936 + $0x2c] sm:$0xf]
      %v1949 = vld [vmem:[%s1936 + $0x30] sm:$0xf]
      %v1950 = vld [vmem:[%s1936 + $0x34] sm:$0xf]
      %v1951 = vld [vmem:[%s1936 + $0x38] sm:$0xf]
      %v1952 = vld [vmem:[%s1936 + $0x3c] sm:$0xf]
      %v1969 = vunpack.c.l.b16 %v1937
      %v1970 = vunpack.c.l.b16 %v1938
      %v1971 = vunpack.c.l.b16 %v1939
      %v1972 = vunpack.c.l.b16 %v1940
      %v1973 = vunpack.c.l.b16 %v1941
      %v1974 = vunpack.c.l.b16 %v1942
      %v1975 = vunpack.c.l.b16 %v1943
      %v1976 = vunpack.c.l.b16 %v1944
      %v1977 = vunpack.c.l.b16 %v1945
      %v1978 = vunpack.c.l.b16 %v1946
      %v1979 = vunpack.c.l.b16 %v1947
      %v1980 = vunpack.c.l.b16 %v1948
      %v1981 = vunpack.c.l.b16 %v1949
      %v1982 = vunpack.c.l.b16 %v1950
      %v1983 = vunpack.c.l.b16 %v1951
      %v1984 = vunpack.c.l.b16 %v1952
      %v1985 = vpack.c.b16 %v1970, %v1969
      %v1986 = vpack.c.b16 %v1972, %v1971
      %v1987 = vpack.c.b16 %v1974, %v1973
      %v1988 = vpack.c.b16 %v1976, %v1975
      %v1989 = vpack.c.b16 %v1978, %v1977
      %v1990 = vpack.c.b16 %v1980, %v1979
      %v1991 = vpack.c.b16 %v1982, %v1981
      %v1992 = vpack.c.b16 %v1984, %v1983
      %2001 = vmatpush.bf16.msra.mxu0 %v1992
      %2002 = vmatpush.bf16.msra.mxu0 %v1991
      %2003 = vmatpush.bf16.msra.mxu0 %v1990
      %2004 = vmatpush.bf16.msra.mxu0 %v1989
      %2005 = vmatpush.bf16.msra.mxu0 %v1988
      %2006 = vmatpush.bf16.msra.mxu0 %v1987
      %2007 = vmatpush.bf16.msra.mxu0 %v1986
      %2008 = vmatpush.bf16.msra.mxu0 %v1985
      %2009 = vmatmul.bf16.gmra.mxu0 %v1920
      %v2010 = vpop.f32.mrf.mxu0
      %v2011 = vadd.f32 0.0, %v2010
      %v2012 = vpop.f32.mrf.mxu0
      %v2013 = vadd.f32 0.0, %v2012
      %2014 = vmatmul.bf16.gmra.mxu0 %v1921
      %v2015 = vpop.f32.mrf.mxu0
      %v2016 = vadd.f32 0.0, %v2015
      %v2017 = vpop.f32.mrf.mxu0
      %v2018 = vadd.f32 0.0, %v2017
      %2019 = vmatmul.bf16.gmra.mxu0 %v1922
      %v2020 = vpop.f32.mrf.mxu0
      %v2021 = vadd.f32 0.0, %v2020
      %v2022 = vpop.f32.mrf.mxu0
      %v2023 = vadd.f32 0.0, %v2022
      %2024 = vmatmul.bf16.gmra.mxu0 %v1923
      %v2025 = vpop.f32.mrf.mxu0
      %v2026 = vadd.f32 0.0, %v2025
      %v2027 = vpop.f32.mrf.mxu0
      %v2028 = vadd.f32 0.0, %v2027
      %2029 = vmatmul.bf16.gmra.mxu0 %v1924
      %v2030 = vpop.f32.mrf.mxu0
      %v2031 = vadd.f32 0.0, %v2030
      %v2032 = vpop.f32.mrf.mxu0
      %v2033 = vadd.f32 0.0, %v2032
      %2034 = vmatmul.bf16.gmra.mxu0 %v1925
      %v2035 = vpop.f32.mrf.mxu0
      %v2036 = vadd.f32 0.0, %v2035
      %v2037 = vpop.f32.mrf.mxu0
      %v2038 = vadd.f32 0.0, %v2037
      %2039 = vmatmul.bf16.gmra.mxu0 %v1926
      %v2040 = vpop.f32.mrf.mxu0
      %v2041 = vadd.f32 0.0, %v2040
      %v2042 = vpop.f32.mrf.mxu0
      %v2043 = vadd.f32 0.0, %v2042
      %2044 = vmatmul.bf16.gmra.mxu0 %v1927
      %v2045 = vpop.f32.mrf.mxu0
      %v2046 = vadd.f32 0.0, %v2045
      %v2047 = vpop.f32.mrf.mxu0
      %v2048 = vadd.f32 0.0, %v2047
      %2049 = vmatmul.bf16.gmra.mxu0 %v1928
      %v2050 = vpop.f32.mrf.mxu0
      %v2051 = vadd.f32 0.0, %v2050
      %v2052 = vpop.f32.mrf.mxu0
      %v2053 = vadd.f32 0.0, %v2052
      %2054 = vmatmul.bf16.gmra.mxu0 %v1929
      %v2055 = vpop.f32.mrf.mxu0
      %v2056 = vadd.f32 0.0, %v2055
      %v2057 = vpop.f32.mrf.mxu0
      %v2058 = vadd.f32 0.0, %v2057
      %2059 = vmatmul.bf16.gmra.mxu0 %v1930
      %v2060 = vpop.f32.mrf.mxu0
      %v2061 = vadd.f32 0.0, %v2060
      %v2062 = vpop.f32.mrf.mxu0
      %v2063 = vadd.f32 0.0, %v2062
      %2064 = vmatmul.bf16.gmra.mxu0 %v1931
      %v2065 = vpop.f32.mrf.mxu0
      %v2066 = vadd.f32 0.0, %v2065
      %v2067 = vpop.f32.mrf.mxu0
      %v2068 = vadd.f32 0.0, %v2067
      %2069 = vmatmul.bf16.gmra.mxu0 %v1932
      %v2070 = vpop.f32.mrf.mxu0
      %v2071 = vadd.f32 0.0, %v2070
      %v2072 = vpop.f32.mrf.mxu0
      %v2073 = vadd.f32 0.0, %v2072
      %2074 = vmatmul.bf16.gmra.mxu0 %v1933
      %v2075 = vpop.f32.mrf.mxu0
      %v2076 = vadd.f32 0.0, %v2075
      %v2077 = vpop.f32.mrf.mxu0
      %v2078 = vadd.f32 0.0, %v2077
      %2079 = vmatmul.bf16.gmra.mxu0 %v1934
      %v2080 = vpop.f32.mrf.mxu0
      %v2081 = vadd.f32 0.0, %v2080
      %v2082 = vpop.f32.mrf.mxu0
      %v2083 = vadd.f32 0.0, %v2082
      %2084 = vmatmul.bf16.gmra.mxu0 %v1935
      %v2085 = vpop.f32.mrf.mxu0
      %v2086 = vadd.f32 0.0, %v2085
      %v2087 = vpop.f32.mrf.mxu0
      %v2088 = vadd.f32 0.0, %v2087
      %2089 = vdwg.mxu0
      %v2090 = vadd.f32 %v1824, %v2011
      %v2091 = vadd.f32 %v1825, %v2013
      %v2092 = vadd.f32 %v1826, %v2016
      %v2093 = vadd.f32 %v1827, %v2018
      %v2094 = vadd.f32 %v1828, %v2021
      %v2095 = vadd.f32 %v1829, %v2023
      %v2096 = vadd.f32 %v1830, %v2026
      %v2097 = vadd.f32 %v1831, %v2028
      %v2098 = vadd.f32 %v1832, %v2031
      %v2099 = vadd.f32 %v1833, %v2033
      %v2100 = vadd.f32 %v1834, %v2036
      %v2101 = vadd.f32 %v1835, %v2038
      %v2102 = vadd.f32 %v1836, %v2041
      %v2103 = vadd.f32 %v1837, %v2043
      %v2104 = vadd.f32 %v1838, %v2046
      %v2105 = vadd.f32 %v1839, %v2048
      %v2106 = vadd.f32 %v1840, %v2051
      %v2107 = vadd.f32 %v1841, %v2053
      %v2108 = vadd.f32 %v1842, %v2056
      %v2109 = vadd.f32 %v1843, %v2058
      %v2110 = vadd.f32 %v1844, %v2061
      %v2111 = vadd.f32 %v1845, %v2063
      %v2112 = vadd.f32 %v1846, %v2066
      %v2113 = vadd.f32 %v1847, %v2068
      %v2114 = vadd.f32 %v1848, %v2071
      %v2115 = vadd.f32 %v1849, %v2073
      %v2116 = vadd.f32 %v1850, %v2076
      %v2117 = vadd.f32 %v1851, %v2078
      %v2118 = vadd.f32 %v1852, %v2081
      %v2119 = vadd.f32 %v1853, %v2083
      %v2120 = vadd.f32 %v1854, %v2086
      %v2121 = vadd.f32 %v1855, %v2088
      %v2122 = vld [vmem:[#allocation2 + $0x18] sm:$0xff]
      %v2123 = vld [vmem:[#allocation2 + $0x20] sm:$0xff]
      %v2124 = vld [vmem:[#allocation2 + $0x28] sm:$0xff]
      %v2125 = vld [vmem:[#allocation2 + $0x30] sm:$0xff]
      %v2126 = vld [vmem:[#allocation2 + $0x38] sm:$0xff]
      %v2127 = vld [vmem:[#allocation2 + $0x40] sm:$0xff]
      %v2128 = vld [vmem:[#allocation2 + $0x48] sm:$0xff]
      %v2129 = vld [vmem:[#allocation2 + $0x50] sm:$0xff]
      %v2130 = vld [vmem:[#allocation2 + $0x58] sm:$0xff]
      %v2131 = vld [vmem:[#allocation2 + $0x60] sm:$0xff]
      %v2132 = vld [vmem:[#allocation2 + $0x68] sm:$0xff]
      %v2133 = vld [vmem:[#allocation2 + $0x70] sm:$0xff]
      %v2134 = vld [vmem:[#allocation2 + $0x78] sm:$0xff]
      %v2135 = vld [vmem:[#allocation2 + $0x80] sm:$0xff]
      %v2136 = vld [vmem:[#allocation2 + $0x88] sm:$0xff]
      %v2137 = vld [vmem:[#allocation2 + $0x90] sm:$0xff]
      %v2138 = vld [vmem:[#allocation2 + $0x98] sm:$0xff]
      %v2139 = vld [vmem:[#allocation2 + $0xa0] sm:$0xff]
      %v2140 = vld [vmem:[#allocation2 + $0xa8] sm:$0xff]
      %v2141 = vld [vmem:[#allocation2 + $0xb0] sm:$0xff]
      %v2142 = vld [vmem:[#allocation2 + $0xb8] sm:$0xff]
      %v2143 = vld [vmem:[#allocation2 + $0xc0] sm:$0xff]
      %v2144 = vld [vmem:[#allocation2 + $0xc8] sm:$0xff]
      %v2145 = vld [vmem:[#allocation2 + $0xd0] sm:$0xff]
      %v2146 = vld [vmem:[#allocation2 + $0xd8] sm:$0xff]
      %v2147 = vld [vmem:[#allocation2 + $0xe0] sm:$0xff]
      %v2148 = vld [vmem:[#allocation2 + $0xe8] sm:$0xff]
      %v2149 = vld [vmem:[#allocation2 + $0xf0] sm:$0xff]
      %v2150 = vld [vmem:[#allocation2 + $0xf8] sm:$0xff]
      %v2151 = vld [vmem:[#allocation2 + $0x100] sm:$0xff]
      %v2152 = vld [vmem:[#allocation2 + $0x108] sm:$0xff]
      %v2153 = vld [vmem:[#allocation2 + $0x110] sm:$0xff]
      %v2154 = vpack.c.bf16 %v2123, %v2122
      %v2155 = vpack.c.bf16 %v2125, %v2124
      %v2156 = vpack.c.bf16 %v2127, %v2126
      %v2157 = vpack.c.bf16 %v2129, %v2128
      %v2158 = vpack.c.bf16 %v2131, %v2130
      %v2159 = vpack.c.bf16 %v2133, %v2132
      %v2160 = vpack.c.bf16 %v2135, %v2134
      %v2161 = vpack.c.bf16 %v2137, %v2136
      %v2162 = vpack.c.bf16 %v2139, %v2138
      %v2163 = vpack.c.bf16 %v2141, %v2140
      %v2164 = vpack.c.bf16 %v2143, %v2142
      %v2165 = vpack.c.bf16 %v2145, %v2144
      %v2166 = vpack.c.bf16 %v2147, %v2146
      %v2167 = vpack.c.bf16 %v2149, %v2148
      %v2168 = vpack.c.bf16 %v2151, %v2150
      %v2169 = vpack.c.bf16 %v2153, %v2152
      %s2170 = scalar_lea.vmem %s6, 256
      %v2171 = vld [vmem:[%s2170] sm:$0xf]
      %v2172 = vld [vmem:[%s2170 + $0x4] sm:$0xf]
      %v2173 = vld [vmem:[%s2170 + $0x8] sm:$0xf]
      %v2174 = vld [vmem:[%s2170 + $0xc] sm:$0xf]
      %v2175 = vld [vmem:[%s2170 + $0x10] sm:$0xf]
      %v2176 = vld [vmem:[%s2170 + $0x14] sm:$0xf]
      %v2177 = vld [vmem:[%s2170 + $0x18] sm:$0xf]
      %v2178 = vld [vmem:[%s2170 + $0x1c] sm:$0xf]
      %v2179 = vld [vmem:[%s2170 + $0x20] sm:$0xf]
      %v2180 = vld [vmem:[%s2170 + $0x24] sm:$0xf]
      %v2181 = vld [vmem:[%s2170 + $0x28] sm:$0xf]
      %v2182 = vld [vmem:[%s2170 + $0x2c] sm:$0xf]
      %v2183 = vld [vmem:[%s2170 + $0x30] sm:$0xf]
      %v2184 = vld [vmem:[%s2170 + $0x34] sm:$0xf]
      %v2185 = vld [vmem:[%s2170 + $0x38] sm:$0xf]
      %v2186 = vld [vmem:[%s2170 + $0x3c] sm:$0xf]
      %v2203 = vunpack.c.l.b16 %v2171
      %v2204 = vunpack.c.l.b16 %v2172
      %v2205 = vunpack.c.l.b16 %v2173
      %v2206 = vunpack.c.l.b16 %v2174
      %v2207 = vunpack.c.l.b16 %v2175
      %v2208 = vunpack.c.l.b16 %v2176
      %v2209 = vunpack.c.l.b16 %v2177
      %v2210 = vunpack.c.l.b16 %v2178
      %v2211 = vunpack.c.l.b16 %v2179
      %v2212 = vunpack.c.l.b16 %v2180
      %v2213 = vunpack.c.l.b16 %v2181
      %v2214 = vunpack.c.l.b16 %v2182
      %v2215 = vunpack.c.l.b16 %v2183
      %v2216 = vunpack.c.l.b16 %v2184
      %v2217 = vunpack.c.l.b16 %v2185
      %v2218 = vunpack.c.l.b16 %v2186
      %v2219 = vpack.c.b16 %v2204, %v2203
      %v2220 = vpack.c.b16 %v2206, %v2205
      %v2221 = vpack.c.b16 %v2208, %v2207
      %v2222 = vpack.c.b16 %v2210, %v2209
      %v2223 = vpack.c.b16 %v2212, %v2211
      %v2224 = vpack.c.b16 %v2214, %v2213
      %v2225 = vpack.c.b16 %v2216, %v2215
      %v2226 = vpack.c.b16 %v2218, %v2217
      %2235 = vmatpush.bf16.msra.mxu0 %v2226
      %2236 = vmatpush.bf16.msra.mxu0 %v2225
      %2237 = vmatpush.bf16.msra.mxu0 %v2224
      %2238 = vmatpush.bf16.msra.mxu0 %v2223
      %2239 = vmatpush.bf16.msra.mxu0 %v2222
      %2240 = vmatpush.bf16.msra.mxu0 %v2221
      %2241 = vmatpush.bf16.msra.mxu0 %v2220
      %2242 = vmatpush.bf16.msra.mxu0 %v2219
      %2243 = vmatmul.bf16.gmra.mxu0 %v2154
      %v2244 = vpop.f32.mrf.mxu0
      %v2245 = vadd.f32 0.0, %v2244
      %v2246 = vpop.f32.mrf.mxu0
      %v2247 = vadd.f32 0.0, %v2246
      %2248 = vmatmul.bf16.gmra.mxu0 %v2155
      %v2249 = vpop.f32.mrf.mxu0
      %v2250 = vadd.f32 0.0, %v2249
      %v2251 = vpop.f32.mrf.mxu0
      %v2252 = vadd.f32 0.0, %v2251
      %2253 = vmatmul.bf16.gmra.mxu0 %v2156
      %v2254 = vpop.f32.mrf.mxu0
      %v2255 = vadd.f32 0.0, %v2254
      %v2256 = vpop.f32.mrf.mxu0
      %v2257 = vadd.f32 0.0, %v2256
      %2258 = vmatmul.bf16.gmra.mxu0 %v2157
      %v2259 = vpop.f32.mrf.mxu0
      %v2260 = vadd.f32 0.0, %v2259
      %v2261 = vpop.f32.mrf.mxu0
      %v2262 = vadd.f32 0.0, %v2261
      %2263 = vmatmul.bf16.gmra.mxu0 %v2158
      %v2264 = vpop.f32.mrf.mxu0
      %v2265 = vadd.f32 0.0, %v2264
      %v2266 = vpop.f32.mrf.mxu0
      %v2267 = vadd.f32 0.0, %v2266
      %2268 = vmatmul.bf16.gmra.mxu0 %v2159
      %v2269 = vpop.f32.mrf.mxu0
      %v2270 = vadd.f32 0.0, %v2269
      %v2271 = vpop.f32.mrf.mxu0
      %v2272 = vadd.f32 0.0, %v2271
      %2273 = vmatmul.bf16.gmra.mxu0 %v2160
      %v2274 = vpop.f32.mrf.mxu0
      %v2275 = vadd.f32 0.0, %v2274
      %v2276 = vpop.f32.mrf.mxu0
      %v2277 = vadd.f32 0.0, %v2276
      %2278 = vmatmul.bf16.gmra.mxu0 %v2161
      %v2279 = vpop.f32.mrf.mxu0
      %v2280 = vadd.f32 0.0, %v2279
      %v2281 = vpop.f32.mrf.mxu0
      %v2282 = vadd.f32 0.0, %v2281
      %2283 = vmatmul.bf16.gmra.mxu0 %v2162
      %v2284 = vpop.f32.mrf.mxu0
      %v2285 = vadd.f32 0.0, %v2284
      %v2286 = vpop.f32.mrf.mxu0
      %v2287 = vadd.f32 0.0, %v2286
      %2288 = vmatmul.bf16.gmra.mxu0 %v2163
      %v2289 = vpop.f32.mrf.mxu0
      %v2290 = vadd.f32 0.0, %v2289
      %v2291 = vpop.f32.mrf.mxu0
      %v2292 = vadd.f32 0.0, %v2291
      %2293 = vmatmul.bf16.gmra.mxu0 %v2164
      %v2294 = vpop.f32.mrf.mxu0
      %v2295 = vadd.f32 0.0, %v2294
      %v2296 = vpop.f32.mrf.mxu0
      %v2297 = vadd.f32 0.0, %v2296
      %2298 = vmatmul.bf16.gmra.mxu0 %v2165
      %v2299 = vpop.f32.mrf.mxu0
      %v2300 = vadd.f32 0.0, %v2299
      %v2301 = vpop.f32.mrf.mxu0
      %v2302 = vadd.f32 0.0, %v2301
      %2303 = vmatmul.bf16.gmra.mxu0 %v2166
      %v2304 = vpop.f32.mrf.mxu0
      %v2305 = vadd.f32 0.0, %v2304
      %v2306 = vpop.f32.mrf.mxu0
      %v2307 = vadd.f32 0.0, %v2306
      %2308 = vmatmul.bf16.gmra.mxu0 %v2167
      %v2309 = vpop.f32.mrf.mxu0
      %v2310 = vadd.f32 0.0, %v2309
      %v2311 = vpop.f32.mrf.mxu0
      %v2312 = vadd.f32 0.0, %v2311
      %2313 = vmatmul.bf16.gmra.mxu0 %v2168
      %v2314 = vpop.f32.mrf.mxu0
      %v2315 = vadd.f32 0.0, %v2314
      %v2316 = vpop.f32.mrf.mxu0
      %v2317 = vadd.f32 0.0, %v2316
      %2318 = vmatmul.bf16.gmra.mxu0 %v2169
      %v2319 = vpop.f32.mrf.mxu0
      %v2320 = vadd.f32 0.0, %v2319
      %v2321 = vpop.f32.mrf.mxu0
      %v2322 = vadd.f32 0.0, %v2321
      %2323 = vdwg.mxu0
      %v2324 = vadd.f32 %v2090, %v2245
      %v2325 = vadd.f32 %v2091, %v2247
      %v2326 = vadd.f32 %v2092, %v2250
      %v2327 = vadd.f32 %v2093, %v2252
      %v2328 = vadd.f32 %v2094, %v2255
      %v2329 = vadd.f32 %v2095, %v2257
      %v2330 = vadd.f32 %v2096, %v2260
      %v2331 = vadd.f32 %v2097, %v2262
      %v2332 = vadd.f32 %v2098, %v2265
      %v2333 = vadd.f32 %v2099, %v2267
      %v2334 = vadd.f32 %v2100, %v2270
      %v2335 = vadd.f32 %v2101, %v2272
      %v2336 = vadd.f32 %v2102, %v2275
      %v2337 = vadd.f32 %v2103, %v2277
      %v2338 = vadd.f32 %v2104, %v2280
      %v2339 = vadd.f32 %v2105, %v2282
      %v2340 = vadd.f32 %v2106, %v2285
      %v2341 = vadd.f32 %v2107, %v2287
      %v2342 = vadd.f32 %v2108, %v2290
      %v2343 = vadd.f32 %v2109, %v2292
      %v2344 = vadd.f32 %v2110, %v2295
      %v2345 = vadd.f32 %v2111, %v2297
      %v2346 = vadd.f32 %v2112, %v2300
      %v2347 = vadd.f32 %v2113, %v2302
      %v2348 = vadd.f32 %v2114, %v2305
      %v2349 = vadd.f32 %v2115, %v2307
      %v2350 = vadd.f32 %v2116, %v2310
      %v2351 = vadd.f32 %v2117, %v2312
      %v2352 = vadd.f32 %v2118, %v2315
      %v2353 = vadd.f32 %v2119, %v2317
      %v2354 = vadd.f32 %v2120, %v2320
      %v2355 = vadd.f32 %v2121, %v2322
      %v2356 = vld [vmem:[#allocation2 + $0x19] sm:$0xff]
      %v2357 = vld [vmem:[#allocation2 + $0x21] sm:$0xff]
      %v2358 = vld [vmem:[#allocation2 + $0x29] sm:$0xff]
      %v2359 = vld [vmem:[#allocation2 + $0x31] sm:$0xff]
      %v2360 = vld [vmem:[#allocation2 + $0x39] sm:$0xff]
      %v2361 = vld [vmem:[#allocation2 + $0x41] sm:$0xff]
      %v2362 = vld [vmem:[#allocation2 + $0x49] sm:$0xff]
      %v2363 = vld [vmem:[#allocation2 + $0x51] sm:$0xff]
      %v2364 = vld [vmem:[#allocation2 + $0x59] sm:$0xff]
      %v2365 = vld [vmem:[#allocation2 + $0x61] sm:$0xff]
      %v2366 = vld [vmem:[#allocation2 + $0x69] sm:$0xff]
      %v2367 = vld [vmem:[#allocation2 + $0x71] sm:$0xff]
      %v2368 = vld [vmem:[#allocation2 + $0x79] sm:$0xff]
      %v2369 = vld [vmem:[#allocation2 + $0x81] sm:$0xff]
      %v2370 = vld [vmem:[#allocation2 + $0x89] sm:$0xff]
      %v2371 = vld [vmem:[#allocation2 + $0x91] sm:$0xff]
      %v2372 = vld [vmem:[#allocation2 + $0x99] sm:$0xff]
      %v2373 = vld [vmem:[#allocation2 + $0xa1] sm:$0xff]
      %v2374 = vld [vmem:[#allocation2 + $0xa9] sm:$0xff]
      %v2375 = vld [vmem:[#allocation2 + $0xb1] sm:$0xff]
      %v2376 = vld [vmem:[#allocation2 + $0xb9] sm:$0xff]
      %v2377 = vld [vmem:[#allocation2 + $0xc1] sm:$0xff]
      %v2378 = vld [vmem:[#allocation2 + $0xc9] sm:$0xff]
      %v2379 = vld [vmem:[#allocation2 + $0xd1] sm:$0xff]
      %v2380 = vld [vmem:[#allocation2 + $0xd9] sm:$0xff]
      %v2381 = vld [vmem:[#allocation2 + $0xe1] sm:$0xff]
      %v2382 = vld [vmem:[#allocation2 + $0xe9] sm:$0xff]
      %v2383 = vld [vmem:[#allocation2 + $0xf1] sm:$0xff]
      %v2384 = vld [vmem:[#allocation2 + $0xf9] sm:$0xff]
      %v2385 = vld [vmem:[#allocation2 + $0x101] sm:$0xff]
      %v2386 = vld [vmem:[#allocation2 + $0x109] sm:$0xff]
      %v2387 = vld [vmem:[#allocation2 + $0x111] sm:$0xff]
      %v2388 = vmul.f32 %v2356, %v1465
      %v2389 = vmul.f32 %v2357, %v1470
      %v2390 = vmul.f32 %v2358, %v1475
      %v2391 = vmul.f32 %v2359, %v1480
      %v2392 = vmul.f32 %v2360, %v1485
      %v2393 = vmul.f32 %v2361, %v1490
      %v2394 = vmul.f32 %v2362, %v1495
      %v2395 = vmul.f32 %v2363, %v1500
      %v2396 = vmul.f32 %v2364, %v1505
      %v2397 = vmul.f32 %v2365, %v1510
      %v2398 = vmul.f32 %v2366, %v1515
      %v2399 = vmul.f32 %v2367, %v1520
      %v2400 = vmul.f32 %v2368, %v1525
      %v2401 = vmul.f32 %v2369, %v1530
      %v2402 = vmul.f32 %v2370, %v1535
      %v2403 = vmul.f32 %v2371, %v1540
      %v2404 = vmul.f32 %v2372, %v1545
      %v2405 = vmul.f32 %v2373, %v1550
      %v2406 = vmul.f32 %v2374, %v1555
      %v2407 = vmul.f32 %v2375, %v1560
      %v2408 = vmul.f32 %v2376, %v1565
      %v2409 = vmul.f32 %v2377, %v1570
      %v2410 = vmul.f32 %v2378, %v1575
      %v2411 = vmul.f32 %v2379, %v1580
      %v2412 = vmul.f32 %v2380, %v1585
      %v2413 = vmul.f32 %v2381, %v1590
      %v2414 = vmul.f32 %v2382, %v1595
      %v2415 = vmul.f32 %v2383, %v1600
      %v2416 = vmul.f32 %v2384, %v1605
      %v2417 = vmul.f32 %v2385, %v1610
      %v2418 = vmul.f32 %v2386, %v1615
      %v2419 = vmul.f32 %v2387, %v1620
      %v2420 = vpack.c.bf16 %v2389, %v2388
      %v2421 = vpack.c.bf16 %v2391, %v2390
      %v2422 = vpack.c.bf16 %v2393, %v2392
      %v2423 = vpack.c.bf16 %v2395, %v2394
      %v2424 = vpack.c.bf16 %v2397, %v2396
      %v2425 = vpack.c.bf16 %v2399, %v2398
      %v2426 = vpack.c.bf16 %v2401, %v2400
      %v2427 = vpack.c.bf16 %v2403, %v2402
      %v2428 = vpack.c.bf16 %v2405, %v2404
      %v2429 = vpack.c.bf16 %v2407, %v2406
      %v2430 = vpack.c.bf16 %v2409, %v2408
      %v2431 = vpack.c.bf16 %v2411, %v2410
      %v2432 = vpack.c.bf16 %v2413, %v2412
      %v2433 = vpack.c.bf16 %v2415, %v2414
      %v2434 = vpack.c.bf16 %v2417, %v2416
      %v2435 = vpack.c.bf16 %v2419, %v2418
      %s2436 = scalar_lea.vmem %s6, 320
      %v2437 = vld [vmem:[%s2436] sm:$0xf]
      %v2438 = vld [vmem:[%s2436 + $0x4] sm:$0xf]
      %v2439 = vld [vmem:[%s2436 + $0x8] sm:$0xf]
      %v2440 = vld [vmem:[%s2436 + $0xc] sm:$0xf]
      %v2441 = vld [vmem:[%s2436 + $0x10] sm:$0xf]
      %v2442 = vld [vmem:[%s2436 + $0x14] sm:$0xf]
      %v2443 = vld [vmem:[%s2436 + $0x18] sm:$0xf]
      %v2444 = vld [vmem:[%s2436 + $0x1c] sm:$0xf]
      %v2445 = vld [vmem:[%s2436 + $0x20] sm:$0xf]
      %v2446 = vld [vmem:[%s2436 + $0x24] sm:$0xf]
      %v2447 = vld [vmem:[%s2436 + $0x28] sm:$0xf]
      %v2448 = vld [vmem:[%s2436 + $0x2c] sm:$0xf]
      %v2449 = vld [vmem:[%s2436 + $0x30] sm:$0xf]
      %v2450 = vld [vmem:[%s2436 + $0x34] sm:$0xf]
      %v2451 = vld [vmem:[%s2436 + $0x38] sm:$0xf]
      %v2452 = vld [vmem:[%s2436 + $0x3c] sm:$0xf]
      %v2469 = vunpack.c.l.b16 %v2437
      %v2470 = vunpack.c.l.b16 %v2438
      %v2471 = vunpack.c.l.b16 %v2439
      %v2472 = vunpack.c.l.b16 %v2440
      %v2473 = vunpack.c.l.b16 %v2441
      %v2474 = vunpack.c.l.b16 %v2442
      %v2475 = vunpack.c.l.b16 %v2443
      %v2476 = vunpack.c.l.b16 %v2444
      %v2477 = vunpack.c.l.b16 %v2445
      %v2478 = vunpack.c.l.b16 %v2446
      %v2479 = vunpack.c.l.b16 %v2447
      %v2480 = vunpack.c.l.b16 %v2448
      %v2481 = vunpack.c.l.b16 %v2449
      %v2482 = vunpack.c.l.b16 %v2450
      %v2483 = vunpack.c.l.b16 %v2451
      %v2484 = vunpack.c.l.b16 %v2452
      %v2485 = vpack.c.b16 %v2470, %v2469
      %v2486 = vpack.c.b16 %v2472, %v2471
      %v2487 = vpack.c.b16 %v2474, %v2473
      %v2488 = vpack.c.b16 %v2476, %v2475
      %v2489 = vpack.c.b16 %v2478, %v2477
      %v2490 = vpack.c.b16 %v2480, %v2479
      %v2491 = vpack.c.b16 %v2482, %v2481
      %v2492 = vpack.c.b16 %v2484, %v2483
      %2501 = vmatpush.bf16.msra.mxu0 %v2492
      %2502 = vmatpush.bf16.msra.mxu0 %v2491
      %2503 = vmatpush.bf16.msra.mxu0 %v2490
      %2504 = vmatpush.bf16.msra.mxu0 %v2489
      %2505 = vmatpush.bf16.msra.mxu0 %v2488
      %2506 = vmatpush.bf16.msra.mxu0 %v2487
      %2507 = vmatpush.bf16.msra.mxu0 %v2486
      %2508 = vmatpush.bf16.msra.mxu0 %v2485
      %2509 = vmatmul.bf16.gmra.mxu0 %v2420
      %v2510 = vpop.f32.mrf.mxu0
      %v2511 = vadd.f32 0.0, %v2510
      %v2512 = vpop.f32.mrf.mxu0
      %v2513 = vadd.f32 0.0, %v2512
      %2514 = vmatmul.bf16.gmra.mxu0 %v2421
      %v2515 = vpop.f32.mrf.mxu0
      %v2516 = vadd.f32 0.0, %v2515
      %v2517 = vpop.f32.mrf.mxu0
      %v2518 = vadd.f32 0.0, %v2517
      %2519 = vmatmul.bf16.gmra.mxu0 %v2422
      %v2520 = vpop.f32.mrf.mxu0
      %v2521 = vadd.f32 0.0, %v2520
      %v2522 = vpop.f32.mrf.mxu0
      %v2523 = vadd.f32 0.0, %v2522
      %2524 = vmatmul.bf16.gmra.mxu0 %v2423
      %v2525 = vpop.f32.mrf.mxu0
      %v2526 = vadd.f32 0.0, %v2525
      %v2527 = vpop.f32.mrf.mxu0
      %v2528 = vadd.f32 0.0, %v2527
      %2529 = vmatmul.bf16.gmra.mxu0 %v2424
      %v2530 = vpop.f32.mrf.mxu0
      %v2531 = vadd.f32 0.0, %v2530
      %v2532 = vpop.f32.mrf.mxu0
      %v2533 = vadd.f32 0.0, %v2532
      %2534 = vmatmul.bf16.gmra.mxu0 %v2425
      %v2535 = vpop.f32.mrf.mxu0
      %v2536 = vadd.f32 0.0, %v2535
      %v2537 = vpop.f32.mrf.mxu0
      %v2538 = vadd.f32 0.0, %v2537
      %2539 = vmatmul.bf16.gmra.mxu0 %v2426
      %v2540 = vpop.f32.mrf.mxu0
      %v2541 = vadd.f32 0.0, %v2540
      %v2542 = vpop.f32.mrf.mxu0
      %v2543 = vadd.f32 0.0, %v2542
      %2544 = vmatmul.bf16.gmra.mxu0 %v2427
      %v2545 = vpop.f32.mrf.mxu0
      %v2546 = vadd.f32 0.0, %v2545
      %v2547 = vpop.f32.mrf.mxu0
      %v2548 = vadd.f32 0.0, %v2547
      %2549 = vmatmul.bf16.gmra.mxu0 %v2428
      %v2550 = vpop.f32.mrf.mxu0
      %v2551 = vadd.f32 0.0, %v2550
      %v2552 = vpop.f32.mrf.mxu0
      %v2553 = vadd.f32 0.0, %v2552
      %2554 = vmatmul.bf16.gmra.mxu0 %v2429
      %v2555 = vpop.f32.mrf.mxu0
      %v2556 = vadd.f32 0.0, %v2555
      %v2557 = vpop.f32.mrf.mxu0
      %v2558 = vadd.f32 0.0, %v2557
      %2559 = vmatmul.bf16.gmra.mxu0 %v2430
      %v2560 = vpop.f32.mrf.mxu0
      %v2561 = vadd.f32 0.0, %v2560
      %v2562 = vpop.f32.mrf.mxu0
      %v2563 = vadd.f32 0.0, %v2562
      %2564 = vmatmul.bf16.gmra.mxu0 %v2431
      %v2565 = vpop.f32.mrf.mxu0
      %v2566 = vadd.f32 0.0, %v2565
      %v2567 = vpop.f32.mrf.mxu0
      %v2568 = vadd.f32 0.0, %v2567
      %2569 = vmatmul.bf16.gmra.mxu0 %v2432
      %v2570 = vpop.f32.mrf.mxu0
      %v2571 = vadd.f32 0.0, %v2570
      %v2572 = vpop.f32.mrf.mxu0
      %v2573 = vadd.f32 0.0, %v2572
      %2574 = vmatmul.bf16.gmra.mxu0 %v2433
      %v2575 = vpop.f32.mrf.mxu0
      %v2576 = vadd.f32 0.0, %v2575
      %v2577 = vpop.f32.mrf.mxu0
      %v2578 = vadd.f32 0.0, %v2577
      %2579 = vmatmul.bf16.gmra.mxu0 %v2434
      %v2580 = vpop.f32.mrf.mxu0
      %v2581 = vadd.f32 0.0, %v2580
      %v2582 = vpop.f32.mrf.mxu0
      %v2583 = vadd.f32 0.0, %v2582
      %2584 = vmatmul.bf16.gmra.mxu0 %v2435
      %v2585 = vpop.f32.mrf.mxu0
      %v2586 = vadd.f32 0.0, %v2585
      %v2587 = vpop.f32.mrf.mxu0
      %v2588 = vadd.f32 0.0, %v2587
      %2589 = vdwg.mxu0
      %v2590 = vadd.f32 %v2324, %v2511
      %v2591 = vadd.f32 %v2325, %v2513
      %v2592 = vadd.f32 %v2326, %v2516
      %v2593 = vadd.f32 %v2327, %v2518
      %v2594 = vadd.f32 %v2328, %v2521
      %v2595 = vadd.f32 %v2329, %v2523
      %v2596 = vadd.f32 %v2330, %v2526
      %v2597 = vadd.f32 %v2331, %v2528
      %v2598 = vadd.f32 %v2332, %v2531
      %v2599 = vadd.f32 %v2333, %v2533
      %v2600 = vadd.f32 %v2334, %v2536
      %v2601 = vadd.f32 %v2335, %v2538
      %v2602 = vadd.f32 %v2336, %v2541
      %v2603 = vadd.f32 %v2337, %v2543
      %v2604 = vadd.f32 %v2338, %v2546
      %v2605 = vadd.f32 %v2339, %v2548
      %v2606 = vadd.f32 %v2340, %v2551
      %v2607 = vadd.f32 %v2341, %v2553
      %v2608 = vadd.f32 %v2342, %v2556
      %v2609 = vadd.f32 %v2343, %v2558
      %v2610 = vadd.f32 %v2344, %v2561
      %v2611 = vadd.f32 %v2345, %v2563
      %v2612 = vadd.f32 %v2346, %v2566
      %v2613 = vadd.f32 %v2347, %v2568
      %v2614 = vadd.f32 %v2348, %v2571
      %v2615 = vadd.f32 %v2349, %v2573
      %v2616 = vadd.f32 %v2350, %v2576
      %v2617 = vadd.f32 %v2351, %v2578
      %v2618 = vadd.f32 %v2352, %v2581
      %v2619 = vadd.f32 %v2353, %v2583
      %v2620 = vadd.f32 %v2354, %v2586
      %v2621 = vadd.f32 %v2355, %v2588
      %v2622 = vld [vmem:[#allocation2 + $0x27] sm:$0xff]
      %v2623 = vld [vmem:[#allocation2 + $0x2f] sm:$0xff]
      %v2624 = vld [vmem:[#allocation2 + $0x37] sm:$0xff]
      %v2625 = vld [vmem:[#allocation2 + $0x3f] sm:$0xff]
      %v2626 = vld [vmem:[#allocation2 + $0x47] sm:$0xff]
      %v2627 = vld [vmem:[#allocation2 + $0x4f] sm:$0xff]
      %v2628 = vld [vmem:[#allocation2 + $0x57] sm:$0xff]
      %v2629 = vld [vmem:[#allocation2 + $0x5f] sm:$0xff]
      %v2630 = vld [vmem:[#allocation2 + $0x67] sm:$0xff]
      %v2631 = vld [vmem:[#allocation2 + $0x6f] sm:$0xff]
      %v2632 = vld [vmem:[#allocation2 + $0x77] sm:$0xff]
      %v2633 = vld [vmem:[#allocation2 + $0x7f] sm:$0xff]
      %v2634 = vld [vmem:[#allocation2 + $0x87] sm:$0xff]
      %v2635 = vld [vmem:[#allocation2 + $0x8f] sm:$0xff]
      %v2636 = vld [vmem:[#allocation2 + $0x97] sm:$0xff]
      %v2637 = vld [vmem:[#allocation2 + $0x9f] sm:$0xff]
      %v2638 = vld [vmem:[#allocation2 + $0xa7] sm:$0xff]
      %v2639 = vld [vmem:[#allocation2 + $0xaf] sm:$0xff]
      %v2640 = vld [vmem:[#allocation2 + $0xb7] sm:$0xff]
      %v2641 = vld [vmem:[#allocation2 + $0xbf] sm:$0xff]
      %v2642 = vld [vmem:[#allocation2 + $0xc7] sm:$0xff]
      %v2643 = vld [vmem:[#allocation2 + $0xcf] sm:$0xff]
      %v2644 = vld [vmem:[#allocation2 + $0xd7] sm:$0xff]
      %v2645 = vld [vmem:[#allocation2 + $0xdf] sm:$0xff]
      %v2646 = vld [vmem:[#allocation2 + $0xe7] sm:$0xff]
      %v2647 = vld [vmem:[#allocation2 + $0xef] sm:$0xff]
      %v2648 = vld [vmem:[#allocation2 + $0xf7] sm:$0xff]
      %v2649 = vld [vmem:[#allocation2 + $0xff] sm:$0xff]
      %v2650 = vld [vmem:[#allocation2 + $0x107] sm:$0xff]
      %v2651 = vld [vmem:[#allocation2 + $0x10f] sm:$0xff]
      %v2652 = vld [vmem:[#allocation2 + $0x117] sm:$0xff]
      %v2653 = vld [vmem:[#allocation2 + $0x11f] sm:$0xff]
      %v2654 = vmul.f32 %v2622, %v870
      %v2655 = vmul.f32 %v2623, %v875
      %v2656 = vmul.f32 %v2624, %v880
      %v2657 = vmul.f32 %v2625, %v885
      %v2658 = vmul.f32 %v2626, %v890
      %v2659 = vmul.f32 %v2627, %v895
      %v2660 = vmul.f32 %v2628, %v900
      %v2661 = vmul.f32 %v2629, %v905
      %v2662 = vmul.f32 %v2630, %v910
      %v2663 = vmul.f32 %v2631, %v915
      %v2664 = vmul.f32 %v2632, %v920
      %v2665 = vmul.f32 %v2633, %v925
      %v2666 = vmul.f32 %v2634, %v930
      %v2667 = vmul.f32 %v2635, %v935
      %v2668 = vmul.f32 %v2636, %v940
      %v2669 = vmul.f32 %v2637, %v945
      %v2670 = vmul.f32 %v2638, %v950
      %v2671 = vmul.f32 %v2639, %v955
      %v2672 = vmul.f32 %v2640, %v960
      %v2673 = vmul.f32 %v2641, %v965
      %v2674 = vmul.f32 %v2642, %v970
      %v2675 = vmul.f32 %v2643, %v975
      %v2676 = vmul.f32 %v2644, %v980
      %v2677 = vmul.f32 %v2645, %v985
      %v2678 = vmul.f32 %v2646, %v990
      %v2679 = vmul.f32 %v2647, %v995
      %v2680 = vmul.f32 %v2648, %v1000
      %v2681 = vmul.f32 %v2649, %v1005
      %v2682 = vmul.f32 %v2650, %v1010
      %v2683 = vmul.f32 %v2651, %v1015
      %v2684 = vmul.f32 %v2652, %v1020
      %v2685 = vmul.f32 %v2653, %v1025
      %v2686 = vpack.c.bf16 %v2655, %v2654
      %v2687 = vpack.c.bf16 %v2657, %v2656
      %v2688 = vpack.c.bf16 %v2659, %v2658
      %v2689 = vpack.c.bf16 %v2661, %v2660
      %v2690 = vpack.c.bf16 %v2663, %v2662
      %v2691 = vpack.c.bf16 %v2665, %v2664
      %v2692 = vpack.c.bf16 %v2667, %v2666
      %v2693 = vpack.c.bf16 %v2669, %v2668
      %v2694 = vpack.c.bf16 %v2671, %v2670
      %v2695 = vpack.c.bf16 %v2673, %v2672
      %v2696 = vpack.c.bf16 %v2675, %v2674
      %v2697 = vpack.c.bf16 %v2677, %v2676
      %v2698 = vpack.c.bf16 %v2679, %v2678
      %v2699 = vpack.c.bf16 %v2681, %v2680
      %v2700 = vpack.c.bf16 %v2683, %v2682
      %v2701 = vpack.c.bf16 %v2685, %v2684
      %s2702 = scalar_lea.vmem %s6, 384
      %v2703 = vld [vmem:[%s2702] sm:$0xf]
      %v2704 = vld [vmem:[%s2702 + $0x4] sm:$0xf]
      %v2705 = vld [vmem:[%s2702 + $0x8] sm:$0xf]
      %v2706 = vld [vmem:[%s2702 + $0xc] sm:$0xf]
      %v2707 = vld [vmem:[%s2702 + $0x10] sm:$0xf]
      %v2708 = vld [vmem:[%s2702 + $0x14] sm:$0xf]
      %v2709 = vld [vmem:[%s2702 + $0x18] sm:$0xf]
      %v2710 = vld [vmem:[%s2702 + $0x1c] sm:$0xf]
      %v2711 = vld [vmem:[%s2702 + $0x20] sm:$0xf]
      %v2712 = vld [vmem:[%s2702 + $0x24] sm:$0xf]
      %v2713 = vld [vmem:[%s2702 + $0x28] sm:$0xf]
      %v2714 = vld [vmem:[%s2702 + $0x2c] sm:$0xf]
      %v2715 = vld [vmem:[%s2702 + $0x30] sm:$0xf]
      %v2716 = vld [vmem:[%s2702 + $0x34] sm:$0xf]
      %v2717 = vld [vmem:[%s2702 + $0x38] sm:$0xf]
      %v2718 = vld [vmem:[%s2702 + $0x3c] sm:$0xf]
      %v2735 = vunpack.c.l.b16 %v2703
      %v2736 = vunpack.c.l.b16 %v2704
      %v2737 = vunpack.c.l.b16 %v2705
      %v2738 = vunpack.c.l.b16 %v2706
      %v2739 = vunpack.c.l.b16 %v2707
      %v2740 = vunpack.c.l.b16 %v2708
      %v2741 = vunpack.c.l.b16 %v2709
      %v2742 = vunpack.c.l.b16 %v2710
      %v2743 = vunpack.c.l.b16 %v2711
      %v2744 = vunpack.c.l.b16 %v2712
      %v2745 = vunpack.c.l.b16 %v2713
      %v2746 = vunpack.c.l.b16 %v2714
      %v2747 = vunpack.c.l.b16 %v2715
      %v2748 = vunpack.c.l.b16 %v2716
      %v2749 = vunpack.c.l.b16 %v2717
      %v2750 = vunpack.c.l.b16 %v2718
      %v2751 = vpack.c.b16 %v2736, %v2735
      %v2752 = vpack.c.b16 %v2738, %v2737
      %v2753 = vpack.c.b16 %v2740, %v2739
      %v2754 = vpack.c.b16 %v2742, %v2741
      %v2755 = vpack.c.b16 %v2744, %v2743
      %v2756 = vpack.c.b16 %v2746, %v2745
      %v2757 = vpack.c.b16 %v2748, %v2747
      %v2758 = vpack.c.b16 %v2750, %v2749
      %2767 = vmatpush.bf16.msra.mxu0 %v2758
      %2768 = vmatpush.bf16.msra.mxu0 %v2757
      %2769 = vmatpush.bf16.msra.mxu0 %v2756
      %2770 = vmatpush.bf16.msra.mxu0 %v2755
      %2771 = vmatpush.bf16.msra.mxu0 %v2754
      %2772 = vmatpush.bf16.msra.mxu0 %v2753
      %2773 = vmatpush.bf16.msra.mxu0 %v2752
      %2774 = vmatpush.bf16.msra.mxu0 %v2751
      %2775 = vmatmul.bf16.gmra.mxu0 %v2686
      %v2776 = vpop.f32.mrf.mxu0
      %v2777 = vadd.f32 0.0, %v2776
      %v2778 = vpop.f32.mrf.mxu0
      %v2779 = vadd.f32 0.0, %v2778
      %2780 = vmatmul.bf16.gmra.mxu0 %v2687
      %v2781 = vpop.f32.mrf.mxu0
      %v2782 = vadd.f32 0.0, %v2781
      %v2783 = vpop.f32.mrf.mxu0
      %v2784 = vadd.f32 0.0, %v2783
      %2785 = vmatmul.bf16.gmra.mxu0 %v2688
      %v2786 = vpop.f32.mrf.mxu0
      %v2787 = vadd.f32 0.0, %v2786
      %v2788 = vpop.f32.mrf.mxu0
      %v2789 = vadd.f32 0.0, %v2788
      %2790 = vmatmul.bf16.gmra.mxu0 %v2689
      %v2791 = vpop.f32.mrf.mxu0
      %v2792 = vadd.f32 0.0, %v2791
      %v2793 = vpop.f32.mrf.mxu0
      %v2794 = vadd.f32 0.0, %v2793
      %2795 = vmatmul.bf16.gmra.mxu0 %v2690
      %v2796 = vpop.f32.mrf.mxu0
      %v2797 = vadd.f32 0.0, %v2796
      %v2798 = vpop.f32.mrf.mxu0
      %v2799 = vadd.f32 0.0, %v2798
      %2800 = vmatmul.bf16.gmra.mxu0 %v2691
      %v2801 = vpop.f32.mrf.mxu0
      %v2802 = vadd.f32 0.0, %v2801
      %v2803 = vpop.f32.mrf.mxu0
      %v2804 = vadd.f32 0.0, %v2803
      %2805 = vmatmul.bf16.gmra.mxu0 %v2692
      %v2806 = vpop.f32.mrf.mxu0
      %v2807 = vadd.f32 0.0, %v2806
      %v2808 = vpop.f32.mrf.mxu0
      %v2809 = vadd.f32 0.0, %v2808
      %2810 = vmatmul.bf16.gmra.mxu0 %v2693
      %v2811 = vpop.f32.mrf.mxu0
      %v2812 = vadd.f32 0.0, %v2811
      %v2813 = vpop.f32.mrf.mxu0
      %v2814 = vadd.f32 0.0, %v2813
      %2815 = vmatmul.bf16.gmra.mxu0 %v2694
      %v2816 = vpop.f32.mrf.mxu0
      %v2817 = vadd.f32 0.0, %v2816
      %v2818 = vpop.f32.mrf.mxu0
      %v2819 = vadd.f32 0.0, %v2818
      %2820 = vmatmul.bf16.gmra.mxu0 %v2695
      %v2821 = vpop.f32.mrf.mxu0
      %v2822 = vadd.f32 0.0, %v2821
      %v2823 = vpop.f32.mrf.mxu0
      %v2824 = vadd.f32 0.0, %v2823
      %2825 = vmatmul.bf16.gmra.mxu0 %v2696
      %v2826 = vpop.f32.mrf.mxu0
      %v2827 = vadd.f32 0.0, %v2826
      %v2828 = vpop.f32.mrf.mxu0
      %v2829 = vadd.f32 0.0, %v2828
      %2830 = vmatmul.bf16.gmra.mxu0 %v2697
      %v2831 = vpop.f32.mrf.mxu0
      %v2832 = vadd.f32 0.0, %v2831
      %v2833 = vpop.f32.mrf.mxu0
      %v2834 = vadd.f32 0.0, %v2833
      %2835 = vmatmul.bf16.gmra.mxu0 %v2698
      %v2836 = vpop.f32.mrf.mxu0
      %v2837 = vadd.f32 0.0, %v2836
      %v2838 = vpop.f32.mrf.mxu0
      %v2839 = vadd.f32 0.0, %v2838
      %2840 = vmatmul.bf16.gmra.mxu0 %v2699
      %v2841 = vpop.f32.mrf.mxu0
      %v2842 = vadd.f32 0.0, %v2841
      %v2843 = vpop.f32.mrf.mxu0
      %v2844 = vadd.f32 0.0, %v2843
      %2845 = vmatmul.bf16.gmra.mxu0 %v2700
      %v2846 = vpop.f32.mrf.mxu0
      %v2847 = vadd.f32 0.0, %v2846
      %v2848 = vpop.f32.mrf.mxu0
      %v2849 = vadd.f32 0.0, %v2848
      %2850 = vmatmul.bf16.gmra.mxu0 %v2701
      %v2851 = vpop.f32.mrf.mxu0
      %v2852 = vadd.f32 0.0, %v2851
      %v2853 = vpop.f32.mrf.mxu0
      %v2854 = vadd.f32 0.0, %v2853
      %2855 = vdwg.mxu0
      %v2856 = vadd.f32 %v2590, %v2777
      %v2857 = vadd.f32 %v2591, %v2779
      %v2858 = vadd.f32 %v2592, %v2782
      %v2859 = vadd.f32 %v2593, %v2784
      %v2860 = vadd.f32 %v2594, %v2787
      %v2861 = vadd.f32 %v2595, %v2789
      %v2862 = vadd.f32 %v2596, %v2792
      %v2863 = vadd.f32 %v2597, %v2794
      %v2864 = vadd.f32 %v2598, %v2797
      %v2865 = vadd.f32 %v2599, %v2799
      %v2866 = vadd.f32 %v2600, %v2802
      %v2867 = vadd.f32 %v2601, %v2804
      %v2868 = vadd.f32 %v2602, %v2807
      %v2869 = vadd.f32 %v2603, %v2809
      %v2870 = vadd.f32 %v2604, %v2812
      %v2871 = vadd.f32 %v2605, %v2814
      %v2872 = vadd.f32 %v2606, %v2817
      %v2873 = vadd.f32 %v2607, %v2819
      %v2874 = vadd.f32 %v2608, %v2822
      %v2875 = vadd.f32 %v2609, %v2824
      %v2876 = vadd.f32 %v2610, %v2827
      %v2877 = vadd.f32 %v2611, %v2829
      %v2878 = vadd.f32 %v2612, %v2832
      %v2879 = vadd.f32 %v2613, %v2834
      %v2880 = vadd.f32 %v2614, %v2837
      %v2881 = vadd.f32 %v2615, %v2839
      %v2882 = vadd.f32 %v2616, %v2842
      %v2883 = vadd.f32 %v2617, %v2844
      %v2884 = vadd.f32 %v2618, %v2847
      %v2885 = vadd.f32 %v2619, %v2849
      %v2886 = vadd.f32 %v2620, %v2852
      %v2887 = vadd.f32 %v2621, %v2854
      %v2888 = vld [vmem:[#allocation2 + $0x28] sm:$0xff]
      %v2889 = vld [vmem:[#allocation2 + $0x30] sm:$0xff]
      %v2890 = vld [vmem:[#allocation2 + $0x38] sm:$0xff]
      %v2891 = vld [vmem:[#allocation2 + $0x40] sm:$0xff]
      %v2892 = vld [vmem:[#allocation2 + $0x48] sm:$0xff]
      %v2893 = vld [vmem:[#allocation2 + $0x50] sm:$0xff]
      %v2894 = vld [vmem:[#allocation2 + $0x58] sm:$0xff]
      %v2895 = vld [vmem:[#allocation2 + $0x60] sm:$0xff]
      %v2896 = vld [vmem:[#allocation2 + $0x68] sm:$0xff]
      %v2897 = vld [vmem:[#allocation2 + $0x70] sm:$0xff]
      %v2898 = vld [vmem:[#allocation2 + $0x78] sm:$0xff]
      %v2899 = vld [vmem:[#allocation2 + $0x80] sm:$0xff]
      %v2900 = vld [vmem:[#allocation2 + $0x88] sm:$0xff]
      %v2901 = vld [vmem:[#allocation2 + $0x90] sm:$0xff]
      %v2902 = vld [vmem:[#allocation2 + $0x98] sm:$0xff]
      %v2903 = vld [vmem:[#allocation2 + $0xa0] sm:$0xff]
      %v2904 = vld [vmem:[#allocation2 + $0xa8] sm:$0xff]
      %v2905 = vld [vmem:[#allocation2 + $0xb0] sm:$0xff]
      %v2906 = vld [vmem:[#allocation2 + $0xb8] sm:$0xff]
      %v2907 = vld [vmem:[#allocation2 + $0xc0] sm:$0xff]
      %v2908 = vld [vmem:[#allocation2 + $0xc8] sm:$0xff]
      %v2909 = vld [vmem:[#allocation2 + $0xd0] sm:$0xff]
      %v2910 = vld [vmem:[#allocation2 + $0xd8] sm:$0xff]
      %v2911 = vld [vmem:[#allocation2 + $0xe0] sm:$0xff]
      %v2912 = vld [vmem:[#allocation2 + $0xe8] sm:$0xff]
      %v2913 = vld [vmem:[#allocation2 + $0xf0] sm:$0xff]
      %v2914 = vld [vmem:[#allocation2 + $0xf8] sm:$0xff]
      %v2915 = vld [vmem:[#allocation2 + $0x100] sm:$0xff]
      %v2916 = vld [vmem:[#allocation2 + $0x108] sm:$0xff]
      %v2917 = vld [vmem:[#allocation2 + $0x110] sm:$0xff]
      %v2918 = vld [vmem:[#allocation2 + $0x118] sm:$0xff]
      %v2919 = vld [vmem:[#allocation2 + $0x120] sm:$0xff]
      %v2920 = vpack.c.bf16 %v2889, %v2888
      %v2921 = vpack.c.bf16 %v2891, %v2890
      %v2922 = vpack.c.bf16 %v2893, %v2892
      %v2923 = vpack.c.bf16 %v2895, %v2894
      %v2924 = vpack.c.bf16 %v2897, %v2896
      %v2925 = vpack.c.bf16 %v2899, %v2898
      %v2926 = vpack.c.bf16 %v2901, %v2900
      %v2927 = vpack.c.bf16 %v2903, %v2902
      %v2928 = vpack.c.bf16 %v2905, %v2904
      %v2929 = vpack.c.bf16 %v2907, %v2906
      %v2930 = vpack.c.bf16 %v2909, %v2908
      %v2931 = vpack.c.bf16 %v2911, %v2910
      %v2932 = vpack.c.bf16 %v2913, %v2912
      %v2933 = vpack.c.bf16 %v2915, %v2914
      %v2934 = vpack.c.bf16 %v2917, %v2916
      %v2935 = vpack.c.bf16 %v2919, %v2918
      %s2936 = scalar_lea.vmem %s6, 448
      %v2937 = vld [vmem:[%s2936] sm:$0xf]
      %v2938 = vld [vmem:[%s2936 + $0x4] sm:$0xf]
      %v2939 = vld [vmem:[%s2936 + $0x8] sm:$0xf]
      %v2940 = vld [vmem:[%s2936 + $0xc] sm:$0xf]
      %v2941 = vld [vmem:[%s2936 + $0x10] sm:$0xf]
      %v2942 = vld [vmem:[%s2936 + $0x14] sm:$0xf]
      %v2943 = vld [vmem:[%s2936 + $0x18] sm:$0xf]
      %v2944 = vld [vmem:[%s2936 + $0x1c] sm:$0xf]
      %v2945 = vld [vmem:[%s2936 + $0x20] sm:$0xf]
      %v2946 = vld [vmem:[%s2936 + $0x24] sm:$0xf]
      %v2947 = vld [vmem:[%s2936 + $0x28] sm:$0xf]
      %v2948 = vld [vmem:[%s2936 + $0x2c] sm:$0xf]
      %v2949 = vld [vmem:[%s2936 + $0x30] sm:$0xf]
      %v2950 = vld [vmem:[%s2936 + $0x34] sm:$0xf]
      %v2951 = vld [vmem:[%s2936 + $0x38] sm:$0xf]
      %v2952 = vld [vmem:[%s2936 + $0x3c] sm:$0xf]
      %v2969 = vunpack.c.l.b16 %v2937
      %v2970 = vunpack.c.l.b16 %v2938
      %v2971 = vunpack.c.l.b16 %v2939
      %v2972 = vunpack.c.l.b16 %v2940
      %v2973 = vunpack.c.l.b16 %v2941
      %v2974 = vunpack.c.l.b16 %v2942
      %v2975 = vunpack.c.l.b16 %v2943
      %v2976 = vunpack.c.l.b16 %v2944
      %v2977 = vunpack.c.l.b16 %v2945
      %v2978 = vunpack.c.l.b16 %v2946
      %v2979 = vunpack.c.l.b16 %v2947
      %v2980 = vunpack.c.l.b16 %v2948
      %v2981 = vunpack.c.l.b16 %v2949
      %v2982 = vunpack.c.l.b16 %v2950
      %v2983 = vunpack.c.l.b16 %v2951
      %v2984 = vunpack.c.l.b16 %v2952
      %v2985 = vpack.c.b16 %v2970, %v2969
      %v2986 = vpack.c.b16 %v2972, %v2971
      %v2987 = vpack.c.b16 %v2974, %v2973
      %v2988 = vpack.c.b16 %v2976, %v2975
      %v2989 = vpack.c.b16 %v2978, %v2977
      %v2990 = vpack.c.b16 %v2980, %v2979
      %v2991 = vpack.c.b16 %v2982, %v2981
      %v2992 = vpack.c.b16 %v2984, %v2983
      %3001 = vmatpush.bf16.msra.mxu0 %v2992
      %3002 = vmatpush.bf16.msra.mxu0 %v2991
      %3003 = vmatpush.bf16.msra.mxu0 %v2990
      %3004 = vmatpush.bf16.msra.mxu0 %v2989
      %3005 = vmatpush.bf16.msra.mxu0 %v2988
      %3006 = vmatpush.bf16.msra.mxu0 %v2987
      %3007 = vmatpush.bf16.msra.mxu0 %v2986
      %3008 = vmatpush.bf16.msra.mxu0 %v2985
      %3009 = vmatmul.bf16.gmra.mxu0 %v2920
      %v3010 = vpop.f32.mrf.mxu0
      %v3011 = vadd.f32 0.0, %v3010
      %v3012 = vpop.f32.mrf.mxu0
      %v3013 = vadd.f32 0.0, %v3012
      %3014 = vmatmul.bf16.gmra.mxu0 %v2921
      %v3015 = vpop.f32.mrf.mxu0
      %v3016 = vadd.f32 0.0, %v3015
      %v3017 = vpop.f32.mrf.mxu0
      %v3018 = vadd.f32 0.0, %v3017
      %3019 = vmatmul.bf16.gmra.mxu0 %v2922
      %v3020 = vpop.f32.mrf.mxu0
      %v3021 = vadd.f32 0.0, %v3020
      %v3022 = vpop.f32.mrf.mxu0
      %v3023 = vadd.f32 0.0, %v3022
      %3024 = vmatmul.bf16.gmra.mxu0 %v2923
      %v3025 = vpop.f32.mrf.mxu0
      %v3026 = vadd.f32 0.0, %v3025
      %v3027 = vpop.f32.mrf.mxu0
      %v3028 = vadd.f32 0.0, %v3027
      %3029 = vmatmul.bf16.gmra.mxu0 %v2924
      %v3030 = vpop.f32.mrf.mxu0
      %v3031 = vadd.f32 0.0, %v3030
      %v3032 = vpop.f32.mrf.mxu0
      %v3033 = vadd.f32 0.0, %v3032
      %3034 = vmatmul.bf16.gmra.mxu0 %v2925
      %v3035 = vpop.f32.mrf.mxu0
      %v3036 = vadd.f32 0.0, %v3035
      %v3037 = vpop.f32.mrf.mxu0
      %v3038 = vadd.f32 0.0, %v3037
      %3039 = vmatmul.bf16.gmra.mxu0 %v2926
      %v3040 = vpop.f32.mrf.mxu0
      %v3041 = vadd.f32 0.0, %v3040
      %v3042 = vpop.f32.mrf.mxu0
      %v3043 = vadd.f32 0.0, %v3042
      %3044 = vmatmul.bf16.gmra.mxu0 %v2927
      %v3045 = vpop.f32.mrf.mxu0
      %v3046 = vadd.f32 0.0, %v3045
      %v3047 = vpop.f32.mrf.mxu0
      %v3048 = vadd.f32 0.0, %v3047
      %3049 = vmatmul.bf16.gmra.mxu0 %v2928
      %v3050 = vpop.f32.mrf.mxu0
      %v3051 = vadd.f32 0.0, %v3050
      %v3052 = vpop.f32.mrf.mxu0
      %v3053 = vadd.f32 0.0, %v3052
      %3054 = vmatmul.bf16.gmra.mxu0 %v2929
      %v3055 = vpop.f32.mrf.mxu0
      %v3056 = vadd.f32 0.0, %v3055
      %v3057 = vpop.f32.mrf.mxu0
      %v3058 = vadd.f32 0.0, %v3057
      %3059 = vmatmul.bf16.gmra.mxu0 %v2930
      %v3060 = vpop.f32.mrf.mxu0
      %v3061 = vadd.f32 0.0, %v3060
      %v3062 = vpop.f32.mrf.mxu0
      %v3063 = vadd.f32 0.0, %v3062
      %3064 = vmatmul.bf16.gmra.mxu0 %v2931
      %v3065 = vpop.f32.mrf.mxu0
      %v3066 = vadd.f32 0.0, %v3065
      %v3067 = vpop.f32.mrf.mxu0
      %v3068 = vadd.f32 0.0, %v3067
      %3069 = vmatmul.bf16.gmra.mxu0 %v2932
      %v3070 = vpop.f32.mrf.mxu0
      %v3071 = vadd.f32 0.0, %v3070
      %v3072 = vpop.f32.mrf.mxu0
      %v3073 = vadd.f32 0.0, %v3072
      %3074 = vmatmul.bf16.gmra.mxu0 %v2933
      %v3075 = vpop.f32.mrf.mxu0
      %v3076 = vadd.f32 0.0, %v3075
      %v3077 = vpop.f32.mrf.mxu0
      %v3078 = vadd.f32 0.0, %v3077
      %3079 = vmatmul.bf16.gmra.mxu0 %v2934
      %v3080 = vpop.f32.mrf.mxu0
      %v3081 = vadd.f32 0.0, %v3080
      %v3082 = vpop.f32.mrf.mxu0
      %v3083 = vadd.f32 0.0, %v3082
      %3084 = vmatmul.bf16.gmra.mxu0 %v2935
      %v3085 = vpop.f32.mrf.mxu0
      %v3086 = vadd.f32 0.0, %v3085
      %v3087 = vpop.f32.mrf.mxu0
      %v3088 = vadd.f32 0.0, %v3087
      %3089 = vdwg.mxu0
      %v3090 = vadd.f32 %v2856, %v3011
      %v3091 = vadd.f32 %v2857, %v3013
      %v3092 = vadd.f32 %v2858, %v3016
      %v3093 = vadd.f32 %v2859, %v3018
      %v3094 = vadd.f32 %v2860, %v3021
      %v3095 = vadd.f32 %v2861, %v3023
      %v3096 = vadd.f32 %v2862, %v3026
      %v3097 = vadd.f32 %v2863, %v3028
      %v3098 = vadd.f32 %v2864, %v3031
      %v3099 = vadd.f32 %v2865, %v3033
      %v3100 = vadd.f32 %v2866, %v3036
      %v3101 = vadd.f32 %v2867, %v3038
      %v3102 = vadd.f32 %v2868, %v3041
      %v3103 = vadd.f32 %v2869, %v3043
      %v3104 = vadd.f32 %v2870, %v3046
      %v3105 = vadd.f32 %v2871, %v3048
      %v3106 = vadd.f32 %v2872, %v3051
      %v3107 = vadd.f32 %v2873, %v3053
      %v3108 = vadd.f32 %v2874, %v3056
      %v3109 = vadd.f32 %v2875, %v3058
      %v3110 = vadd.f32 %v2876, %v3061
      %v3111 = vadd.f32 %v2877, %v3063
      %v3112 = vadd.f32 %v2878, %v3066
      %v3113 = vadd.f32 %v2879, %v3068
      %v3114 = vadd.f32 %v2880, %v3071
      %v3115 = vadd.f32 %v2881, %v3073
      %v3116 = vadd.f32 %v2882, %v3076
      %v3117 = vadd.f32 %v2883, %v3078
      %v3118 = vadd.f32 %v2884, %v3081
      %v3119 = vadd.f32 %v2885, %v3083
      %v3120 = vadd.f32 %v2886, %v3086
      %v3121 = vadd.f32 %v2887, %v3088
      %v3122 = vld [vmem:[#allocation2 + $0x29] sm:$0xff]
      %v3123 = vld [vmem:[#allocation2 + $0x31] sm:$0xff]
      %v3124 = vld [vmem:[#allocation2 + $0x39] sm:$0xff]
      %v3125 = vld [vmem:[#allocation2 + $0x41] sm:$0xff]
      %v3126 = vld [vmem:[#allocation2 + $0x49] sm:$0xff]
      %v3127 = vld [vmem:[#allocation2 + $0x51] sm:$0xff]
      %v3128 = vld [vmem:[#allocation2 + $0x59] sm:$0xff]
      %v3129 = vld [vmem:[#allocation2 + $0x61] sm:$0xff]
      %v3130 = vld [vmem:[#allocation2 + $0x69] sm:$0xff]
      %v3131 = vld [vmem:[#allocation2 + $0x71] sm:$0xff]
      %v3132 = vld [vmem:[#allocation2 + $0x79] sm:$0xff]
      %v3133 = vld [vmem:[#allocation2 + $0x81] sm:$0xff]
      %v3134 = vld [vmem:[#allocation2 + $0x89] sm:$0xff]
      %v3135 = vld [vmem:[#allocation2 + $0x91] sm:$0xff]
      %v3136 = vld [vmem:[#allocation2 + $0x99] sm:$0xff]
      %v3137 = vld [vmem:[#allocation2 + $0xa1] sm:$0xff]
      %v3138 = vld [vmem:[#allocation2 + $0xa9] sm:$0xff]
      %v3139 = vld [vmem:[#allocation2 + $0xb1] sm:$0xff]
      %v3140 = vld [vmem:[#allocation2 + $0xb9] sm:$0xff]
      %v3141 = vld [vmem:[#allocation2 + $0xc1] sm:$0xff]
      %v3142 = vld [vmem:[#allocation2 + $0xc9] sm:$0xff]
      %v3143 = vld [vmem:[#allocation2 + $0xd1] sm:$0xff]
      %v3144 = vld [vmem:[#allocation2 + $0xd9] sm:$0xff]
      %v3145 = vld [vmem:[#allocation2 + $0xe1] sm:$0xff]
      %v3146 = vld [vmem:[#allocation2 + $0xe9] sm:$0xff]
      %v3147 = vld [vmem:[#allocation2 + $0xf1] sm:$0xff]
      %v3148 = vld [vmem:[#allocation2 + $0xf9] sm:$0xff]
      %v3149 = vld [vmem:[#allocation2 + $0x101] sm:$0xff]
      %v3150 = vld [vmem:[#allocation2 + $0x109] sm:$0xff]
      %v3151 = vld [vmem:[#allocation2 + $0x111] sm:$0xff]
      %v3152 = vld [vmem:[#allocation2 + $0x119] sm:$0xff]
      %v3153 = vld [vmem:[#allocation2 + $0x121] sm:$0xff]
      %v3154 = vmul.f32 %v3122, %v1465
      %v3155 = vmul.f32 %v3123, %v1470
      %v3156 = vmul.f32 %v3124, %v1475
      %v3157 = vmul.f32 %v3125, %v1480
      %v3158 = vmul.f32 %v3126, %v1485
      %v3159 = vmul.f32 %v3127, %v1490
      %v3160 = vmul.f32 %v3128, %v1495
      %v3161 = vmul.f32 %v3129, %v1500
      %v3162 = vmul.f32 %v3130, %v1505
      %v3163 = vmul.f32 %v3131, %v1510
      %v3164 = vmul.f32 %v3132, %v1515
      %v3165 = vmul.f32 %v3133, %v1520
      %v3166 = vmul.f32 %v3134, %v1525
      %v3167 = vmul.f32 %v3135, %v1530
      %v3168 = vmul.f32 %v3136, %v1535
      %v3169 = vmul.f32 %v3137, %v1540
      %v3170 = vmul.f32 %v3138, %v1545
      %v3171 = vmul.f32 %v3139, %v1550
      %v3172 = vmul.f32 %v3140, %v1555
      %v3173 = vmul.f32 %v3141, %v1560
      %v3174 = vmul.f32 %v3142, %v1565
      %v3175 = vmul.f32 %v3143, %v1570
      %v3176 = vmul.f32 %v3144, %v1575
      %v3177 = vmul.f32 %v3145, %v1580
      %v3178 = vmul.f32 %v3146, %v1585
      %v3179 = vmul.f32 %v3147, %v1590
      %v3180 = vmul.f32 %v3148, %v1595
      %v3181 = vmul.f32 %v3149, %v1600
      %v3182 = vmul.f32 %v3150, %v1605
      %v3183 = vmul.f32 %v3151, %v1610
      %v3184 = vmul.f32 %v3152, %v1615
      %v3185 = vmul.f32 %v3153, %v1620
      %v3186 = vpack.c.bf16 %v3155, %v3154
      %v3187 = vpack.c.bf16 %v3157, %v3156
      %v3188 = vpack.c.bf16 %v3159, %v3158
      %v3189 = vpack.c.bf16 %v3161, %v3160
      %v3190 = vpack.c.bf16 %v3163, %v3162
      %v3191 = vpack.c.bf16 %v3165, %v3164
      %v3192 = vpack.c.bf16 %v3167, %v3166
      %v3193 = vpack.c.bf16 %v3169, %v3168
      %v3194 = vpack.c.bf16 %v3171, %v3170
      %v3195 = vpack.c.bf16 %v3173, %v3172
      %v3196 = vpack.c.bf16 %v3175, %v3174
      %v3197 = vpack.c.bf16 %v3177, %v3176
      %v3198 = vpack.c.bf16 %v3179, %v3178
      %v3199 = vpack.c.bf16 %v3181, %v3180
      %v3200 = vpack.c.bf16 %v3183, %v3182
      %v3201 = vpack.c.bf16 %v3185, %v3184
      %s3202 = scalar_lea.vmem %s6, 512
      %v3203 = vld [vmem:[%s3202] sm:$0xf]
      %v3204 = vld [vmem:[%s3202 + $0x4] sm:$0xf]
      %v3205 = vld [vmem:[%s3202 + $0x8] sm:$0xf]
      %v3206 = vld [vmem:[%s3202 + $0xc] sm:$0xf]
      %v3207 = vld [vmem:[%s3202 + $0x10] sm:$0xf]
      %v3208 = vld [vmem:[%s3202 + $0x14] sm:$0xf]
      %v3209 = vld [vmem:[%s3202 + $0x18] sm:$0xf]
      %v3210 = vld [vmem:[%s3202 + $0x1c] sm:$0xf]
      %v3211 = vld [vmem:[%s3202 + $0x20] sm:$0xf]
      %v3212 = vld [vmem:[%s3202 + $0x24] sm:$0xf]
      %v3213 = vld [vmem:[%s3202 + $0x28] sm:$0xf]
      %v3214 = vld [vmem:[%s3202 + $0x2c] sm:$0xf]
      %v3215 = vld [vmem:[%s3202 + $0x30] sm:$0xf]
      %v3216 = vld [vmem:[%s3202 + $0x34] sm:$0xf]
      %v3217 = vld [vmem:[%s3202 + $0x38] sm:$0xf]
      %v3218 = vld [vmem:[%s3202 + $0x3c] sm:$0xf]
      %v3235 = vunpack.c.l.b16 %v3203
      %v3236 = vunpack.c.l.b16 %v3204
      %v3237 = vunpack.c.l.b16 %v3205
      %v3238 = vunpack.c.l.b16 %v3206
      %v3239 = vunpack.c.l.b16 %v3207
      %v3240 = vunpack.c.l.b16 %v3208
      %v3241 = vunpack.c.l.b16 %v3209
      %v3242 = vunpack.c.l.b16 %v3210
      %v3243 = vunpack.c.l.b16 %v3211
      %v3244 = vunpack.c.l.b16 %v3212
      %v3245 = vunpack.c.l.b16 %v3213
      %v3246 = vunpack.c.l.b16 %v3214
      %v3247 = vunpack.c.l.b16 %v3215
      %v3248 = vunpack.c.l.b16 %v3216
      %v3249 = vunpack.c.l.b16 %v3217
      %v3250 = vunpack.c.l.b16 %v3218
      %v3251 = vpack.c.b16 %v3236, %v3235
      %v3252 = vpack.c.b16 %v3238, %v3237
      %v3253 = vpack.c.b16 %v3240, %v3239
      %v3254 = vpack.c.b16 %v3242, %v3241
      %v3255 = vpack.c.b16 %v3244, %v3243
      %v3256 = vpack.c.b16 %v3246, %v3245
      %v3257 = vpack.c.b16 %v3248, %v3247
      %v3258 = vpack.c.b16 %v3250, %v3249
      %3267 = vmatpush.bf16.msra.mxu0 %v3258
      %3268 = vmatpush.bf16.msra.mxu0 %v3257
      %3269 = vmatpush.bf16.msra.mxu0 %v3256
      %3270 = vmatpush.bf16.msra.mxu0 %v3255
      %3271 = vmatpush.bf16.msra.mxu0 %v3254
      %3272 = vmatpush.bf16.msra.mxu0 %v3253
      %3273 = vmatpush.bf16.msra.mxu0 %v3252
      %3274 = vmatpush.bf16.msra.mxu0 %v3251
      %3275 = vmatmul.bf16.gmra.mxu0 %v3186
      %v3276 = vpop.f32.mrf.mxu0
      %v3277 = vadd.f32 0.0, %v3276
      %v3278 = vpop.f32.mrf.mxu0
      %v3279 = vadd.f32 0.0, %v3278
      %3280 = vmatmul.bf16.gmra.mxu0 %v3187
      %v3281 = vpop.f32.mrf.mxu0
      %v3282 = vadd.f32 0.0, %v3281
      %v3283 = vpop.f32.mrf.mxu0
      %v3284 = vadd.f32 0.0, %v3283
      %3285 = vmatmul.bf16.gmra.mxu0 %v3188
      %v3286 = vpop.f32.mrf.mxu0
      %v3287 = vadd.f32 0.0, %v3286
      %v3288 = vpop.f32.mrf.mxu0
      %v3289 = vadd.f32 0.0, %v3288
      %3290 = vmatmul.bf16.gmra.mxu0 %v3189
      %v3291 = vpop.f32.mrf.mxu0
      %v3292 = vadd.f32 0.0, %v3291
      %v3293 = vpop.f32.mrf.mxu0
      %v3294 = vadd.f32 0.0, %v3293
      %3295 = vmatmul.bf16.gmra.mxu0 %v3190
      %v3296 = vpop.f32.mrf.mxu0
      %v3297 = vadd.f32 0.0, %v3296
      %v3298 = vpop.f32.mrf.mxu0
      %v3299 = vadd.f32 0.0, %v3298
      %3300 = vmatmul.bf16.gmra.mxu0 %v3191
      %v3301 = vpop.f32.mrf.mxu0
      %v3302 = vadd.f32 0.0, %v3301
      %v3303 = vpop.f32.mrf.mxu0
      %v3304 = vadd.f32 0.0, %v3303
      %3305 = vmatmul.bf16.gmra.mxu0 %v3192
      %v3306 = vpop.f32.mrf.mxu0
      %v3307 = vadd.f32 0.0, %v3306
      %v3308 = vpop.f32.mrf.mxu0
      %v3309 = vadd.f32 0.0, %v3308
      %3310 = vmatmul.bf16.gmra.mxu0 %v3193
      %v3311 = vpop.f32.mrf.mxu0
      %v3312 = vadd.f32 0.0, %v3311
      %v3313 = vpop.f32.mrf.mxu0
      %v3314 = vadd.f32 0.0, %v3313
      %3315 = vmatmul.bf16.gmra.mxu0 %v3194
      %v3316 = vpop.f32.mrf.mxu0
      %v3317 = vadd.f32 0.0, %v3316
      %v3318 = vpop.f32.mrf.mxu0
      %v3319 = vadd.f32 0.0, %v3318
      %3320 = vmatmul.bf16.gmra.mxu0 %v3195
      %v3321 = vpop.f32.mrf.mxu0
      %v3322 = vadd.f32 0.0, %v3321
      %v3323 = vpop.f32.mrf.mxu0
      %v3324 = vadd.f32 0.0, %v3323
      %3325 = vmatmul.bf16.gmra.mxu0 %v3196
      %v3326 = vpop.f32.mrf.mxu0
      %v3327 = vadd.f32 0.0, %v3326
      %v3328 = vpop.f32.mrf.mxu0
      %v3329 = vadd.f32 0.0, %v3328
      %3330 = vmatmul.bf16.gmra.mxu0 %v3197
      %v3331 = vpop.f32.mrf.mxu0
      %v3332 = vadd.f32 0.0, %v3331
      %v3333 = vpop.f32.mrf.mxu0
      %v3334 = vadd.f32 0.0, %v3333
      %3335 = vmatmul.bf16.gmra.mxu0 %v3198
      %v3336 = vpop.f32.mrf.mxu0
      %v3337 = vadd.f32 0.0, %v3336
      %v3338 = vpop.f32.mrf.mxu0
      %v3339 = vadd.f32 0.0, %v3338
      %3340 = vmatmul.bf16.gmra.mxu0 %v3199
      %v3341 = vpop.f32.mrf.mxu0
      %v3342 = vadd.f32 0.0, %v3341
      %v3343 = vpop.f32.mrf.mxu0
      %v3344 = vadd.f32 0.0, %v3343
      %3345 = vmatmul.bf16.gmra.mxu0 %v3200
      %v3346 = vpop.f32.mrf.mxu0
      %v3347 = vadd.f32 0.0, %v3346
      %v3348 = vpop.f32.mrf.mxu0
      %v3349 = vadd.f32 0.0, %v3348
      %3350 = vmatmul.bf16.gmra.mxu0 %v3201
      %v3351 = vpop.f32.mrf.mxu0
      %v3352 = vadd.f32 0.0, %v3351
      %v3353 = vpop.f32.mrf.mxu0
      %v3354 = vadd.f32 0.0, %v3353
      %3355 = vdwg.mxu0
      %v3356 = vadd.f32 %v3090, %v3277
      %v3357 = vadd.f32 %v3091, %v3279
      %v3358 = vadd.f32 %v3092, %v3282
      %v3359 = vadd.f32 %v3093, %v3284
      %v3360 = vadd.f32 %v3094, %v3287
      %v3361 = vadd.f32 %v3095, %v3289
      %v3362 = vadd.f32 %v3096, %v3292
      %v3363 = vadd.f32 %v3097, %v3294
      %v3364 = vadd.f32 %v3098, %v3297
      %v3365 = vadd.f32 %v3099, %v3299
      %v3366 = vadd.f32 %v3100, %v3302
      %v3367 = vadd.f32 %v3101, %v3304
      %v3368 = vadd.f32 %v3102, %v3307
      %v3369 = vadd.f32 %v3103, %v3309
      %v3370 = vadd.f32 %v3104, %v3312
      %v3371 = vadd.f32 %v3105, %v3314
      %v3372 = vadd.f32 %v3106, %v3317
      %v3373 = vadd.f32 %v3107, %v3319
      %v3374 = vadd.f32 %v3108, %v3322
      %v3375 = vadd.f32 %v3109, %v3324
      %v3376 = vadd.f32 %v3110, %v3327
      %v3377 = vadd.f32 %v3111, %v3329
      %v3378 = vadd.f32 %v3112, %v3332
      %v3379 = vadd.f32 %v3113, %v3334
      %v3380 = vadd.f32 %v3114, %v3337
      %v3381 = vadd.f32 %v3115, %v3339
      %v3382 = vadd.f32 %v3116, %v3342
      %v3383 = vadd.f32 %v3117, %v3344
      %v3384 = vadd.f32 %v3118, %v3347
      %v3385 = vadd.f32 %v3119, %v3349
      %v3386 = vadd.f32 %v3120, %v3352
      %v3387 = vadd.f32 %v3121, %v3354
      %3388 = vst [vmem:[%s332] sm:$0xff] %v3356
      %3389 = vst [vmem:[%s332 + $0x8] sm:$0xff] %v3357
      %3390 = vst [vmem:[%s332 + $0x10] sm:$0xff] %v3358
      %3391 = vst [vmem:[%s332 + $0x18] sm:$0xff] %v3359
      %3392 = vst [vmem:[%s332 + $0x20] sm:$0xff] %v3360
      %3393 = vst [vmem:[%s332 + $0x28] sm:$0xff] %v3361
      %3394 = vst [vmem:[%s332 + $0x30] sm:$0xff] %v3362
      %3395 = vst [vmem:[%s332 + $0x38] sm:$0xff] %v3363
      %3396 = vst [vmem:[%s332 + $0x40] sm:$0xff] %v3364
      %3397 = vst [vmem:[%s332 + $0x48] sm:$0xff] %v3365
      %3398 = vst [vmem:[%s332 + $0x50] sm:$0xff] %v3366
      %3399 = vst [vmem:[%s332 + $0x58] sm:$0xff] %v3367
      %3400 = vst [vmem:[%s332 + $0x60] sm:$0xff] %v3368
      %3401 = vst [vmem:[%s332 + $0x68] sm:$0xff] %v3369
      %3402 = vst [vmem:[%s332 + $0x70] sm:$0xff] %v3370
      %3403 = vst [vmem:[%s332 + $0x78] sm:$0xff] %v3371
      %3404 = vst [vmem:[%s332 + $0x80] sm:$0xff] %v3372
      %3405 = vst [vmem:[%s332 + $0x88] sm:$0xff] %v3373
      %3406 = vst [vmem:[%s332 + $0x90] sm:$0xff] %v3374
      %3407 = vst [vmem:[%s332 + $0x98] sm:$0xff] %v3375
      %3408 = vst [vmem:[%s332 + $0xa0] sm:$0xff] %v3376
      %3409 = vst [vmem:[%s332 + $0xa8] sm:$0xff] %v3377
      %3410 = vst [vmem:[%s332 + $0xb0] sm:$0xff] %v3378
      %3411 = vst [vmem:[%s332 + $0xb8] sm:$0xff] %v3379
      %3412 = vst [vmem:[%s332 + $0xc0] sm:$0xff] %v3380
      %3413 = vst [vmem:[%s332 + $0xc8] sm:$0xff] %v3381
      %3414 = vst [vmem:[%s332 + $0xd0] sm:$0xff] %v3382
      %3415 = vst [vmem:[%s332 + $0xd8] sm:$0xff] %v3383
      %3416 = vst [vmem:[%s332 + $0xe0] sm:$0xff] %v3384
      %3417 = vst [vmem:[%s332 + $0xe8] sm:$0xff] %v3385
      %3418 = vst [vmem:[%s332 + $0xf0] sm:$0xff] %v3386
      %3419 = vst [vmem:[%s332 + $0xf8] sm:$0xff] %v3387
      %p3420 = scmp.lt.s32.totalorder %s20, 1
      %s3421 = scalar_select %p3420, %s20, 1
      %s3422 = smul.addr %s3421, 32
      %s3423 = smul.addr %s3422, 8
      %s3424 = scalar_lea.vmem %s9, %s3423
      // Predicated region
      $region57: #{bottleneck_block.1} parent=55 // pred_check
        %p3425 = pneg %p232
      $region58: #{bottleneck_block.1} parent=55 // pred_check_branch
        %3427 = sbr.rel (%p3425) target = $region60
      $region59: #{bottleneck_block.1} parent=55 // pred_region
        _
      $region60: #{bottleneck_block.1} parent=55 // pred_fallthru
        _
    $region56: #{bottleneck_block.1} parent=5 // pred_fallthru
      _
    %p3428 = scmp.le.s32.totalorder 2, %s15
    // Predicated region
    $region61: #{bottleneck_block.1} parent=5 // pred_check
      %p3429 = pneg %p3428
    $region62: #{bottleneck_block.1} parent=5 // pred_check_branch
      %3431 = sbr.rel (%p3429) target = $region64
    $region63: #{bottleneck_block.1} parent=5 // pred_region
      %s3432 = ssub.s32 %s15, 2
      // Predicated region
      $region65: #{bottleneck_block.1} parent=63 // pred_check
        %p3433 = pneg %p238
      $region66: #{bottleneck_block.1} parent=63 // pred_check_branch
        %3435 = sbr.rel (%p3433) target = $region68
      $region67: #{bottleneck_block.1} parent=63 // pred_region
        %p3436 = scmp.lt.s32.totalorder %s21, 1
        %s3437 = scalar_select %p3436, %s21, 1
        %s3438 = smul.addr %s3437, 32
        %s3439 = smul.addr %s3438, 8
        %s3440 = scalar_lea.vmem %s9, %s3439
      $region68: #{bottleneck_block.1} parent=63 // pred_fallthru
        _
    $region64: #{bottleneck_block.1} parent=5 // pred_fallthru
      _
  $region6: #{bottleneck_block.1} parent=0 // loop_footer
    %s19 = sadd.s32 1, %s15
  $region7: #{bottleneck_block.1} parent=0 // loop_footer_branch
    %14 = sbr.rel target = $region3
  $region8: #{bottleneck_block.1} parent=0 // loop_exit
    _

</llo_original>
